<compile_context>
chip_gen: v7x
topology: tpu7x:2x2x1
jax: 0.10.0
libtpu: 0.0.40
codegen_flags: <defaults>
</compile_context>

<pallas_src>
import jax
import jax.numpy as jnp
from jax import lax
from jax.experimental import pallas as pl
from jax.experimental.pallas import tpu as pltpu

EMBED_DIM = 50
E_PAD = 64          # embedding dim zero-padded for clean lane/sublane layout
H1 = 128
H2 = 64
H2_PAD = 128        # LSTM2 hidden zero-padded to a full vreg lane width


# ----------------------------------------------------------------------------
# Pallas kernel
# ----------------------------------------------------------------------------
def genre_lstm_kernel(seqlen_ref,                   # (1,) i32 SMEM (scalar prefetch)
                      emb_ref,                      # (Tc*Bp, E_PAD)  bf16 (current time chunk)
                      wih1_ref, whh1_ref, b1_ref,   # (E_PAD,4H1) bf16, (H1,4H1) bf16, (1,4H1) f32
                      wih2_ref, whh2_ref, b2_ref,   # (H1,4H2P) bf16, (H2P,4H2P) bf16, (1,4H2P) f32
                      wfc_ref, bfc_ref,             # (H2P,C) bf16, (1,C) f32
                      out_ref,                      # (Bp, C) f32
                      xp1_ref,                      # (Tc*Bp, 4H1)  f32 scratch: hoisted L1 projection
                      h1all_ref,                    # (Tc*Bp, H1)   bf16 scratch: all h1(t) of the chunk
                      xp2_ref,                      # (Tc*Bp, 4H2P) f32 scratch: hoisted L2 projection
                      h1_ref, c1_ref, h2_ref, c2_ref):   # persistent f32 state scratch
    Bp, H1_ = h1_ref.shape
    H2P = h2_ref.shape[1]
    Tc = h1all_ref.shape[0] // Bp

    t_chunk = pl.program_id(0)
    base = t_chunk * Tc
    t_valid = seqlen_ref[0]
    unroll = Tc if Tc <= 8 else 8

    @pl.when(t_chunk == 0)
    def _init_state():
        h1_ref[...] = jnp.zeros_like(h1_ref)
        c1_ref[...] = jnp.zeros_like(c1_ref)
        h2_ref[...] = jnp.zeros_like(h2_ref)
        c2_ref[...] = jnp.zeros_like(c2_ref)

    # ---- Pass 0: hoisted layer-1 input projection for the whole chunk
    # ---- (one tall M = Tc*Bp MXU matmul instead of T tiny ones on the chain).
    xp1_ref[...] = (jnp.dot(emb_ref[...], wih1_ref[...],
                            preferred_element_type=jnp.float32)
                    + b1_ref[...])

    whh1 = whh1_ref[...]

    # ---- Pass 1: layer-1 recurrence only (h1 @ W_hh1 is the sole chain op).
    # Gate layout in packed weights is [i, f, o, g]: one contiguous sigmoid slab.
    def step1(t, carry):
        h1, c1 = carry
        r = pl.multiple_of(t * Bp, Bp)
        g = xp1_ref[pl.ds(r, Bp), :] + jnp.dot(
            h1.astype(jnp.bfloat16), whh1, preferred_element_type=jnp.float32)
        s = jax.nn.sigmoid(g[:, :3 * H1_])
        i = s[:, 0 * H1_:1 * H1_]
        f = s[:, 1 * H1_:2 * H1_]
        o = s[:, 2 * H1_:3 * H1_]
        gg = jnp.tanh(g[:, 3 * H1_:4 * H1_])
        c_new = f * c1 + i * gg
        h_new = o * jnp.tanh(c_new)
        valid = (base + t) < t_valid            # ragged-tail mask
        h1 = jnp.where(valid, h_new, h1)
        c1 = jnp.where(valid, c_new, c1)
        h1all_ref[pl.ds(r, Bp), :] = h1.astype(jnp.bfloat16)
        return (h1, c1)

    h1, c1 = lax.fori_loop(0, Tc, step1, (h1_ref[...], c1_ref[...]),
                           unroll=unroll)
    h1_ref[...] = h1
    c1_ref[...] = c1

    # ---- Hoisted layer-2 input projection (removed from the serial chain).
    xp2_ref[...] = (jnp.dot(h1all_ref[...], wih2_ref[...],
                            preferred_element_type=jnp.float32)
                    + b2_ref[...])

    whh2 = whh2_ref[...]

    # ---- Pass 2: layer-2 recurrence (H2 zero-padded 64 -> 128; padded lanes
    # ---- provably stay 0: gates=0 => i=f=o=0.5, g=0 => c=h=0).
    def step2(t, carry):
        h2, c2 = carry
        r = pl.multiple_of(t * Bp, Bp)
        g = xp2_ref[pl.ds(r, Bp), :] + jnp.dot(
            h2.astype(jnp.bfloat16), whh2, preferred_element_type=jnp.float32)
        s = jax.nn.sigmoid(g[:, :3 * H2P])
        i = s[:, 0 * H2P:1 * H2P]
        f = s[:, 1 * H2P:2 * H2P]
        o = s[:, 2 * H2P:3 * H2P]
        gg = jnp.tanh(g[:, 3 * H2P:4 * H2P])
        c_new = f * c2 + i * gg
        h_new = o * jnp.tanh(c_new)
        valid = (base + t) < t_valid
        h2 = jnp.where(valid, h_new, h2)
        c2 = jnp.where(valid, c_new, c2)
        return (h2, c2)

    h2, c2 = lax.fori_loop(0, Tc, step2, (h2_ref[...], c2_ref[...]),
                           unroll=unroll)
    h2_ref[...] = h2
    c2_ref[...] = c2

    @pl.when(t_chunk == pl.num_programs(0) - 1)
    def _classify():
        logits = (jnp.dot(h2.astype(jnp.bfloat16), wfc_ref[...],
                          preferred_element_type=jnp.float32)
                  + bfc_ref[...])                       # (Bp, C)
        m = jnp.max(logits, axis=1, keepdims=True)
        e = jnp.exp(logits - m)
        ssum = jnp.sum(e, axis=1, keepdims=True)
        out_ref[...] = e / ssum                         # exact: rows sum to 1


# ----------------------------------------------------------------------------
# Parameters (logical, PyTorch-equivalent shapes) + packing for the kernel
# ----------------------------------------------------------------------------
def make_params(key, vocab_size, embedding_dim, num_classes):
    ks = jax.random.split(key, 10)
    scale = 0.1

    def init(k, shape):
        return (scale * jax.random.normal(k, shape)).astype(jnp.float32)

    return {
        "embedding": init(ks[0], (vocab_size, embedding_dim)),
        # LSTM weights kept transposed (in_features, 4*H); gate order [i,f,g,o]
        # (PyTorch). If importing real nn.LSTM weights, transpose (4H,in)->(in,4H)
        # and pre-sum b_ih + b_hh, preserving gate order.
        "w_ih1": init(ks[1], (embedding_dim, 4 * H1)),
        "w_hh1": init(ks[2], (H1, 4 * H1)),
        "b1": init(ks[3], (1, 4 * H1)),
        "w_ih2": init(ks[4], (H1, 4 * H2)),
        "w_hh2": init(ks[5], (H2, 4 * H2)),
        "b2": init(ks[6], (1, 4 * H2)),
        "w_fc": init(ks[7], (H2, num_classes)),
        "b_fc": init(ks[8], (1, num_classes)),
    }


def pack_params(params):
    """Reorder gates [i,f,g,o]->[i,f,o,g], zero-pad E->E_PAD and H2->H2_PAD,
    cast matmul operands to bf16.

    Zero padding preserves semantics exactly: padded gate preactivations are 0,
    so i=f=o=0.5, g=tanh(0)=0 => padded c stays 0 and padded h stays 0, and the
    zero-padded w_fc rows contribute nothing to the logits.
    """
    bf16 = jnp.bfloat16
    E = params["embedding"].shape[1]
    assert params["w_ih1"].shape == (E, 4 * H1)
    assert params["w_hh1"].shape == (H1, 4 * H1)
    assert params["w_ih2"].shape == (H1, 4 * H2)
    assert params["w_hh2"].shape == (H2, 4 * H2)

    def reorder_pad(w, h_old, h_new):
        # PyTorch gate order [i, f, g, o] -> kernel order [i, f, o, g];
        # zero-pad each gate block h_old -> h_new along the last axis.
        i, f, g, o = jnp.split(w, 4, axis=1)
        blocks = [jnp.pad(b, ((0, 0), (0, h_new - h_old))) for b in (i, f, o, g)]
        return jnp.concatenate(blocks, axis=1)

    emb_p = jnp.pad(params["embedding"], ((0, 0), (0, E_PAD - E)))
    w_ih1 = jnp.pad(reorder_pad(params["w_ih1"], H1, H1), ((0, E_PAD - E), (0, 0)))
    w_hh1 = reorder_pad(params["w_hh1"], H1, H1)
    b1 = reorder_pad(params["b1"], H1, H1)
    w_ih2 = reorder_pad(params["w_ih2"], H2, H2_PAD)
    w_hh2 = jnp.pad(reorder_pad(params["w_hh2"], H2, H2_PAD),
                    ((0, H2_PAD - H2), (0, 0)))
    b2 = reorder_pad(params["b2"], H2, H2_PAD)
    w_fc = jnp.pad(params["w_fc"], ((0, H2_PAD - H2), (0, 0)))

    return {
        "embedding": emb_p.astype(bf16),
        "w_ih1": w_ih1.astype(bf16),
        "w_hh1": w_hh1.astype(bf16),
        "b1": b1.astype(jnp.float32),
        "w_ih2": w_ih2.astype(bf16),
        "w_hh2": w_hh2.astype(bf16),
        "b2": b2.astype(jnp.float32),
        "w_fc": w_fc.astype(bf16),
        "b_fc": params["b_fc"].astype(jnp.float32),
    }


# ----------------------------------------------------------------------------
# Forward pass (wrapper)
# ----------------------------------------------------------------------------
def genre_classifier_forward(tokens, packed, *, time_chunk=32):
    """tokens: (B, T) int32 -> probabilities (B, num_classes) f32."""
    B, T = tokens.shape
    C = packed["w_fc"].shape[1]
    E = packed["embedding"].shape[1]       # E_PAD
    H2P = packed["w_hh2"].shape[0]         # H2_PAD

    Bp = max(16, -(-B // 16) * 16)         # pad batch to bf16 sublane multiple
    Tc = min(time_chunk, T)
    n_chunks = pl.cdiv(T, Tc)
    T_pad = n_chunks * Tc                  # ragged tail masked in-kernel

    # Glue: pad tokens (cheap, int32) BEFORE the gather so the embedded slab is
    # materialized once, directly in padded time-major (T_pad*Bp, E) layout.
    # TODO(synk): the data-dependent embedding gather stays in plain JAX; an
    # in-kernel row-gather DMA via scalar-prefetched token IDs would remove it.
    # TODO(synk): on v7x, a leading "parallel" batch-shard grid axis would use
    # the second TensorCore; omitted here (tiny batch).
    tok = jnp.pad(tokens, ((0, Bp - B), (0, T_pad - T)))          # (Bp, T_pad)
    emb_flat = jnp.take(packed["embedding"],
                        tok.T.reshape(T_pad * Bp), axis=0)        # (T_pad*Bp, E) bf16

    seq_len = jnp.full((1,), T, dtype=jnp.int32)

    grid_spec = pltpu.PrefetchScalarGridSpec(
        num_scalar_prefetch=1,
        grid=(n_chunks,),
        in_specs=[
            pl.BlockSpec((Tc * Bp, E), lambda t, sl: (t, 0)),      # time-chunked emb
            pl.BlockSpec((E, 4 * H1), lambda t, sl: (0, 0)),       # weights: constant
            pl.BlockSpec((H1, 4 * H1), lambda t, sl: (0, 0)),      # block index => DMA'd once
            pl.BlockSpec((1, 4 * H1), lambda t, sl: (0, 0)),
            pl.BlockSpec((H1, 4 * H2P), lambda t, sl: (0, 0)),
            pl.BlockSpec((H2P, 4 * H2P), lambda t, sl: (0, 0)),
            pl.BlockSpec((1, 4 * H2P), lambda t, sl: (0, 0)),
            pl.BlockSpec((H2P, C), lambda t, sl: (0, 0)),
            pl.BlockSpec((1, C), lambda t, sl: (0, 0)),
        ],
        out_specs=pl.BlockSpec((Bp, C), lambda t, sl: (0, 0)),
        scratch_shapes=[
            pltpu.VMEM((Tc * Bp, 4 * H1), jnp.float32),            # xp1 (hoisted L1 proj)
            pltpu.VMEM((Tc * Bp, H1), jnp.bfloat16),               # h1_all (chunk outputs)
            pltpu.VMEM((Tc * Bp, 4 * H2P), jnp.float32),           # xp2 (hoisted L2 proj)
            pltpu.VMEM((Bp, H1), jnp.float32),                     # h1
            pltpu.VMEM((Bp, H1), jnp.float32),                     # c1
            pltpu.VMEM((Bp, H2P), jnp.float32),                    # h2
            pltpu.VMEM((Bp, H2P), jnp.float32),                    # c2
        ],
    )

    probs_p = pl.pallas_call(
        genre_lstm_kernel,
        out_shape=jax.ShapeDtypeStruct((Bp, C), jnp.float32),
        grid_spec=grid_spec,
        compiler_params=pltpu.CompilerParams(
            dimension_semantics=("arbitrary",),                    # serial recurrence
            vmem_limit_bytes=32 * 1024 * 1024),
    )(seq_len, emb_flat,
      packed["w_ih1"], packed["w_hh1"], packed["b1"],
      packed["w_ih2"], packed["w_hh2"], packed["b2"],
      packed["w_fc"], packed["b_fc"])

    return probs_p[:B]


# ----------------------------------------------------------------------------
# Pure-JAX reference (f32, unpadded, PyTorch [i,f,g,o] order) for correctness
# ----------------------------------------------------------------------------
def reference_forward(tokens, params):
    emb = jnp.take(params["embedding"], tokens, axis=0)        # (B, T, E)

    def run_lstm(xs, w_ih, w_hh, b, hdim):
        B = xs.shape[0]

        def cell(carry, x_t):
            h, c = carry
            g = x_t @ w_ih + h @ w_hh + b
            i = jax.nn.sigmoid(g[:, 0 * hdim:1 * hdim])
            f = jax.nn.sigmoid(g[:, 1 * hdim:2 * hdim])
            gg = jnp.tanh(g[:, 2 * hdim:3 * hdim])
            o = jax.nn.sigmoid(g[:, 3 * hdim:4 * hdim])
            c = f * c + i * gg
            h = o * jnp.tanh(c)
            return (h, c), h

        init = (jnp.zeros((B, hdim), jnp.float32), jnp.zeros((B, hdim), jnp.float32))
        _, hs = lax.scan(cell, init, jnp.swapaxes(xs, 0, 1))
        return jnp.swapaxes(hs, 0, 1)

    h1 = run_lstm(emb, params["w_ih1"], params["w_hh1"], params["b1"], H1)
    h2 = run_lstm(h1, params["w_ih2"], params["w_hh2"], params["b2"], H2)
    logits = h2[:, -1, :] @ params["w_fc"] + params["b_fc"]
    return jax.nn.softmax(logits, axis=1)


if __name__ == "__main__":
    vocab_size = 10000
    num_classes = 5
    batch, seq = 2, 8

    key = jax.random.PRNGKey(0)
    k_params, k_tokens = jax.random.split(key)
    params = make_params(k_params, vocab_size, EMBED_DIM, num_classes)
    tokens = jax.random.randint(k_tokens, (batch, seq), 0, vocab_size,
                                dtype=jnp.int32)

    packed = pack_params(params)
    fwd = jax.jit(genre_classifier_forward)
    probs = jax.block_until_ready(fwd(tokens, packed))

    ref = reference_forward(tokens, params)

    assert probs.shape == (batch, num_classes)
    assert bool(jnp.all(jnp.isfinite(probs)))
    assert bool(jnp.allclose(jnp.sum(probs, axis=1), 1.0, atol=1e-5))
    # bf16 matmuls inside the LSTM => modest tolerance vs f32 reference
    assert bool(jnp.allclose(probs, ref, atol=3e-2))
    print("KERNEL_OK")
</pallas_src>

<mosaic_0001>
module attributes {stable_mosaic.version = 11 : i64} {
  func.func @genre_lstm_kernel(%arg0: i32, %arg1: memref<1xi32, #tpu.memory_space<smem>>, %arg2: memref<128x64xbf16, #tpu.memory_space<vmem>>, %arg3: memref<64x512xbf16, #tpu.memory_space<vmem>>, %arg4: memref<128x512xbf16, #tpu.memory_space<vmem>>, %arg5: memref<1x512xf32, #tpu.memory_space<vmem>>, %arg6: memref<128x512xbf16, #tpu.memory_space<vmem>>, %arg7: memref<128x512xbf16, #tpu.memory_space<vmem>>, %arg8: memref<1x512xf32, #tpu.memory_space<vmem>>, %arg9: memref<128x5xbf16, #tpu.memory_space<vmem>>, %arg10: memref<1x5xf32, #tpu.memory_space<vmem>>, %arg11: memref<16x5xf32, #tpu.memory_space<vmem>>, %arg12: memref<128x512xf32, #tpu.memory_space<vmem>>, %arg13: memref<128x128xbf16, #tpu.memory_space<vmem>>, %arg14: memref<128x512xf32, #tpu.memory_space<vmem>>, %arg15: memref<16x128xf32, #tpu.memory_space<vmem>>, %arg16: memref<16x128xf32, #tpu.memory_space<vmem>>, %arg17: memref<16x128xf32, #tpu.memory_space<vmem>>, %arg18: memref<16x128xf32, #tpu.memory_space<vmem>>) attributes {dimension_semantics = [#tpu.dimension_semantics<arbitrary>], iteration_bounds = array<i64: 1>, scalar_prefetch = 1 : i64, scratch_operands = 7 : i64, tpu.core_type = #tpu.core_type<tc>, window_params = [{transform_indices = @transform_0, window_bounds = array<i64: 128, 64>}, {pipeline_mode = #tpu.pipeline_mode<synchronous>, transform_indices = @transform_1, window_bounds = array<i64: 64, 512>}, {pipeline_mode = #tpu.pipeline_mode<synchronous>, transform_indices = @transform_2, window_bounds = array<i64: 128, 512>}, {pipeline_mode = #tpu.pipeline_mode<synchronous>, transform_indices = @transform_3, window_bounds = array<i64: 1, 512>}, {pipeline_mode = #tpu.pipeline_mode<synchronous>, transform_indices = @transform_4, window_bounds = array<i64: 128, 512>}, {pipeline_mode = #tpu.pipeline_mode<synchronous>, transform_indices = @transform_5, window_bounds = array<i64: 128, 512>}, {pipeline_mode = #tpu.pipeline_mode<synchronous>, transform_indices = @transform_6, window_bounds = array<i64: 1, 512>}, {pipeline_mode = #tpu.pipeline_mode<synchronous>, transform_indices = @transform_7, window_bounds = array<i64: 128, 5>}, {pipeline_mode = #tpu.pipeline_mode<synchronous>, transform_indices = @transform_8, window_bounds = array<i64: 1, 5>}, {pipeline_mode = #tpu.pipeline_mode<synchronous>, transform_indices = @transform_9, window_bounds = array<i64: 16, 5>}]} {
    %c8_i32 = arith.constant 8 : i32
    %0 = arith.muli %arg0, %c8_i32 : i32
    %c0 = arith.constant 0 : index
    %1 = memref.load %arg1[%c0] : memref<1xi32, #tpu.memory_space<smem>>
    %c0_i32 = arith.constant 0 : i32
    %2 = arith.cmpi eq, %arg0, %c0_i32 : i32
    %3 = arith.extui %2 : i1 to i32
    %c0_i32_0 = arith.constant 0 : i32
    %4 = arith.cmpi ne, %3, %c0_i32_0 : i32
    scf.if %4 {
      %cst_122 = arith.constant 0.000000e+00 : f32
      %488 = vector.broadcast %cst_122 : f32 to vector<16x128xf32>
      %c0_123 = arith.constant 0 : index
      %c0_124 = arith.constant 0 : index
      %489 = vector.load %arg15[%c0_123, %c0_124] : memref<16x128xf32, #tpu.memory_space<vmem>>, vector<16x128xf32>
      tpu.vector_store %arg15[%c0_123, %c0_124], %488 {strides = array<i32>} : memref<16x128xf32, #tpu.memory_space<vmem>>, vector<16x128xf32>,
      %cst_125 = arith.constant 0.000000e+00 : f32
      %490 = vector.broadcast %cst_125 : f32 to vector<16x128xf32>
      %c0_126 = arith.constant 0 : index
      %c0_127 = arith.constant 0 : index
      %491 = vector.load %arg16[%c0_126, %c0_127] : memref<16x128xf32, #tpu.memory_space<vmem>>, vector<16x128xf32>
      tpu.vector_store %arg16[%c0_126, %c0_127], %490 {strides = array<i32>} : memref<16x128xf32, #tpu.memory_space<vmem>>, vector<16x128xf32>,
      %cst_128 = arith.constant 0.000000e+00 : f32
      %492 = vector.broadcast %cst_128 : f32 to vector<16x128xf32>
      %c0_129 = arith.constant 0 : index
      %c0_130 = arith.constant 0 : index
      %493 = vector.load %arg17[%c0_129, %c0_130] : memref<16x128xf32, #tpu.memory_space<vmem>>, vector<16x128xf32>
      tpu.vector_store %arg17[%c0_129, %c0_130], %492 {strides = array<i32>} : memref<16x128xf32, #tpu.memory_space<vmem>>, vector<16x128xf32>,
      %cst_131 = arith.constant 0.000000e+00 : f32
      %494 = vector.broadcast %cst_131 : f32 to vector<16x128xf32>
      %c0_132 = arith.constant 0 : index
      %c0_133 = arith.constant 0 : index
      %495 = vector.load %arg18[%c0_132, %c0_133] : memref<16x128xf32, #tpu.memory_space<vmem>>, vector<16x128xf32>
      tpu.vector_store %arg18[%c0_132, %c0_133], %494 {strides = array<i32>} : memref<16x128xf32, #tpu.memory_space<vmem>>, vector<16x128xf32>,
    } else {
    }
    %c0_1 = arith.constant 0 : index
    %c0_2 = arith.constant 0 : index
    %5 = vector.load %arg2[%c0_1, %c0_2] : memref<128x64xbf16, #tpu.memory_space<vmem>>, vector<128x64xbf16>
    %c0_3 = arith.constant 0 : index
    %c0_4 = arith.constant 0 : index
    %6 = vector.load %arg3[%c0_3, %c0_4] : memref<64x512xbf16, #tpu.memory_space<vmem>>, vector<64x512xbf16>
    %cst = arith.constant dense<0.000000e+00> : vector<128x512xf32>
    %7 = tpu.matmul %5, %6, %cst {dimension_numbers = #tpu.dot_dimension_numbers<[1], [0], [0], [1], [0, 0, 1, 1], [], []>} : vector<128x64xbf16>, vector<64x512xbf16>, vector<128x512xf32> -> vector<128x512xf32>
    %c0_5 = arith.constant 0 : index
    %c0_6 = arith.constant 0 : index
    %8 = vector.load %arg5[%c0_5, %c0_6] : memref<1x512xf32, #tpu.memory_space<vmem>>, vector<1x512xf32>
    %9 = vector.broadcast %8 : vector<1x512xf32> to vector<128x512xf32>
    %10 = arith.addf %7, %9 : vector<128x512xf32>
    %c0_7 = arith.constant 0 : index
    %c0_8 = arith.constant 0 : index
    %11 = vector.load %arg12[%c0_7, %c0_8] : memref<128x512xf32, #tpu.memory_space<vmem>>, vector<128x512xf32>
    tpu.vector_store %arg12[%c0_7, %c0_8], %10 {strides = array<i32>} : memref<128x512xf32, #tpu.memory_space<vmem>>, vector<128x512xf32>,
    %c0_9 = arith.constant 0 : index
    %c0_10 = arith.constant 0 : index
    %12 = vector.load %arg4[%c0_9, %c0_10] : memref<128x512xbf16, #tpu.memory_space<vmem>>, vector<128x512xbf16>
    %c0_11 = arith.constant 0 : index
    %c0_12 = arith.constant 0 : index
    %13 = vector.load %arg15[%c0_11, %c0_12] : memref<16x128xf32, #tpu.memory_space<vmem>>, vector<16x128xf32>
    %c0_13 = arith.constant 0 : index
    %c0_14 = arith.constant 0 : index
    %14 = vector.load %arg16[%c0_13, %c0_14] : memref<16x128xf32, #tpu.memory_space<vmem>>, vector<16x128xf32>
    %c0_i32_15 = arith.constant 0 : i32
    %c16_i32 = arith.constant 16 : i32
    %15 = arith.muli %c0_i32_15, %c16_i32 : i32
    %16 = tpu.assume_multiple %15, 16 : i32
    %17 = arith.index_cast %16 : i32 to index
    %c0_16 = arith.constant 0 : index
    %18 = vector.load %arg12[%17, %c0_16] : memref<128x512xf32, #tpu.memory_space<vmem>>, vector<16x512xf32>
    %19 = arith.truncf %13 : vector<16x128xf32> to vector<16x128xbf16>
    %cst_17 = arith.constant dense<0.000000e+00> : vector<16x512xf32>
    %20 = tpu.matmul %19, %12, %cst_17 {dimension_numbers = #tpu.dot_dimension_numbers<[1], [0], [0], [1], [0, 0, 1, 1], [], []>} : vector<16x128xbf16>, vector<128x512xbf16>, vector<16x512xf32> -> vector<16x512xf32>
    %21 = arith.addf %18, %20 : vector<16x512xf32>
    %22 = vector.extract_strided_slice %21 {offsets = [0, 0], sizes = [16, 384], strides = [1, 1]} : vector<16x512xf32> to vector<16x384xf32>
    %23 = arith.negf %22 : vector<16x384xf32>
    %24 = math.exp %23 : vector<16x384xf32>
    %cst_18 = arith.constant 1.000000e+00 : f32
    %25 = vector.broadcast %cst_18 : f32 to vector<16x384xf32>
    %26 = arith.addf %25, %24 : vector<16x384xf32>
    %27 = arith.divf %25, %26 : vector<16x384xf32>
    %28 = vector.extract_strided_slice %27 {offsets = [0, 0], sizes = [16, 128], strides = [1, 1]} : vector<16x384xf32> to vector<16x128xf32>
    %29 = vector.extract_strided_slice %27 {offsets = [0, 128], sizes = [16, 128], strides = [1, 1]} : vector<16x384xf32> to vector<16x128xf32>
    %30 = vector.extract_strided_slice %27 {offsets = [0, 256], sizes = [16, 128], strides = [1, 1]} : vector<16x384xf32> to vector<16x128xf32>
    %31 = vector.extract_strided_slice %21 {offsets = [0, 384], sizes = [16, 128], strides = [1, 1]} : vector<16x512xf32> to vector<16x128xf32>
    %32 = math.tanh %31 : vector<16x128xf32>
    %33 = arith.mulf %29, %14 : vector<16x128xf32>
    %34 = arith.mulf %28, %32 : vector<16x128xf32>
    %35 = arith.addf %33, %34 : vector<16x128xf32>
    %36 = math.tanh %35 : vector<16x128xf32>
    %37 = arith.mulf %30, %36 : vector<16x128xf32>
    %38 = arith.addi %0, %c0_i32_15 : i32
    %39 = arith.cmpi slt, %38, %1 : i32
    %40 = arith.select %39, %37, %13 : vector<16x128xf32>
    %41 = arith.select %39, %35, %14 : vector<16x128xf32>
    %42 = arith.truncf %40 : vector<16x128xf32> to vector<16x128xbf16>
    %43 = arith.index_cast %16 : i32 to index
    %c0_19 = arith.constant 0 : index
    %44 = vector.load %arg13[%43, %c0_19] : memref<128x128xbf16, #tpu.memory_space<vmem>>, vector<16x128xbf16>
    tpu.vector_store %arg13[%43, %c0_19], %42 {strides = array<i32>} : memref<128x128xbf16, #tpu.memory_space<vmem>>, vector<16x128xbf16>,
    %c1_i32 = arith.constant 1 : i32
    %c16_i32_20 = arith.constant 16 : i32
    %45 = arith.muli %c1_i32, %c16_i32_20 : i32
    %46 = tpu.assume_multiple %45, 16 : i32
    %47 = arith.index_cast %46 : i32 to index
    %c0_21 = arith.constant 0 : index
    %48 = vector.load %arg12[%47, %c0_21] : memref<128x512xf32, #tpu.memory_space<vmem>>, vector<16x512xf32>
    %49 = arith.truncf %40 : vector<16x128xf32> to vector<16x128xbf16>
    %cst_22 = arith.constant dense<0.000000e+00> : vector<16x512xf32>
    %50 = tpu.matmul %49, %12, %cst_22 {dimension_numbers = #tpu.dot_dimension_numbers<[1], [0], [0], [1], [0, 0, 1, 1], [], []>} : vector<16x128xbf16>, vector<128x512xbf16>, vector<16x512xf32> -> vector<16x512xf32>
    %51 = arith.addf %48, %50 : vector<16x512xf32>
    %52 = vector.extract_strided_slice %51 {offsets = [0, 0], sizes = [16, 384], strides = [1, 1]} : vector<16x512xf32> to vector<16x384xf32>
    %53 = arith.negf %52 : vector<16x384xf32>
    %54 = math.exp %53 : vector<16x384xf32>
    %cst_23 = arith.constant 1.000000e+00 : f32
    %55 = vector.broadcast %cst_23 : f32 to vector<16x384xf32>
    %56 = arith.addf %55, %54 : vector<16x384xf32>
    %57 = arith.divf %55, %56 : vector<16x384xf32>
    %58 = vector.extract_strided_slice %57 {offsets = [0, 0], sizes = [16, 128], strides = [1, 1]} : vector<16x384xf32> to vector<16x128xf32>
    %59 = vector.extract_strided_slice %57 {offsets = [0, 128], sizes = [16, 128], strides = [1, 1]} : vector<16x384xf32> to vector<16x128xf32>
    %60 = vector.extract_strided_slice %57 {offsets = [0, 256], sizes = [16, 128], strides = [1, 1]} : vector<16x384xf32> to vector<16x128xf32>
    %61 = vector.extract_strided_slice %51 {offsets = [0, 384], sizes = [16, 128], strides = [1, 1]} : vector<16x512xf32> to vector<16x128xf32>
    %62 = math.tanh %61 : vector<16x128xf32>
    %63 = arith.mulf %59, %41 : vector<16x128xf32>
    %64 = arith.mulf %58, %62 : vector<16x128xf32>
    %65 = arith.addf %63, %64 : vector<16x128xf32>
    %66 = math.tanh %65 : vector<16x128xf32>
    %67 = arith.mulf %60, %66 : vector<16x128xf32>
    %68 = arith.addi %0, %c1_i32 : i32
    %69 = arith.cmpi slt, %68, %1 : i32
    %70 = arith.select %69, %67, %40 : vector<16x128xf32>
    %71 = arith.select %69, %65, %41 : vector<16x128xf32>
    %72 = arith.truncf %70 : vector<16x128xf32> to vector<16x128xbf16>
    %73 = arith.index_cast %46 : i32 to index
    %c0_24 = arith.constant 0 : index
    %74 = vector.load %arg13[%73, %c0_24] : memref<128x128xbf16, #tpu.memory_space<vmem>>, vector<16x128xbf16>
    tpu.vector_store %arg13[%73, %c0_24], %72 {strides = array<i32>} : memref<128x128xbf16, #tpu.memory_space<vmem>>, vector<16x128xbf16>,
    %c2_i32 = arith.constant 2 : i32
    %c16_i32_25 = arith.constant 16 : i32
    %75 = arith.muli %c2_i32, %c16_i32_25 : i32
    %76 = tpu.assume_multiple %75, 16 : i32
    %77 = arith.index_cast %76 : i32 to index
    %c0_26 = arith.constant 0 : index
    %78 = vector.load %arg12[%77, %c0_26] : memref<128x512xf32, #tpu.memory_space<vmem>>, vector<16x512xf32>
    %79 = arith.truncf %70 : vector<16x128xf32> to vector<16x128xbf16>
    %cst_27 = arith.constant dense<0.000000e+00> : vector<16x512xf32>
    %80 = tpu.matmul %79, %12, %cst_27 {dimension_numbers = #tpu.dot_dimension_numbers<[1], [0], [0], [1], [0, 0, 1, 1], [], []>} : vector<16x128xbf16>, vector<128x512xbf16>, vector<16x512xf32> -> vector<16x512xf32>
    %81 = arith.addf %78, %80 : vector<16x512xf32>
    %82 = vector.extract_strided_slice %81 {offsets = [0, 0], sizes = [16, 384], strides = [1, 1]} : vector<16x512xf32> to vector<16x384xf32>
    %83 = arith.negf %82 : vector<16x384xf32>
    %84 = math.exp %83 : vector<16x384xf32>
    %cst_28 = arith.constant 1.000000e+00 : f32
    %85 = vector.broadcast %cst_28 : f32 to vector<16x384xf32>
    %86 = arith.addf %85, %84 : vector<16x384xf32>
    %87 = arith.divf %85, %86 : vector<16x384xf32>
    %88 = vector.extract_strided_slice %87 {offsets = [0, 0], sizes = [16, 128], strides = [1, 1]} : vector<16x384xf32> to vector<16x128xf32>
    %89 = vector.extract_strided_slice %87 {offsets = [0, 128], sizes = [16, 128], strides = [1, 1]} : vector<16x384xf32> to vector<16x128xf32>
    %90 = vector.extract_strided_slice %87 {offsets = [0, 256], sizes = [16, 128], strides = [1, 1]} : vector<16x384xf32> to vector<16x128xf32>
    %91 = vector.extract_strided_slice %81 {offsets = [0, 384], sizes = [16, 128], strides = [1, 1]} : vector<16x512xf32> to vector<16x128xf32>
    %92 = math.tanh %91 : vector<16x128xf32>
    %93 = arith.mulf %89, %71 : vector<16x128xf32>
    %94 = arith.mulf %88, %92 : vector<16x128xf32>
    %95 = arith.addf %93, %94 : vector<16x128xf32>
    %96 = math.tanh %95 : vector<16x128xf32>
    %97 = arith.mulf %90, %96 : vector<16x128xf32>
    %98 = arith.addi %0, %c2_i32 : i32
    %99 = arith.cmpi slt, %98, %1 : i32
    %100 = arith.select %99, %97, %70 : vector<16x128xf32>
    %101 = arith.select %99, %95, %71 : vector<16x128xf32>
    %102 = arith.truncf %100 : vector<16x128xf32> to vector<16x128xbf16>
    %103 = arith.index_cast %76 : i32 to index
    %c0_29 = arith.constant 0 : index
    %104 = vector.load %arg13[%103, %c0_29] : memref<128x128xbf16, #tpu.memory_space<vmem>>, vector<16x128xbf16>
    tpu.vector_store %arg13[%103, %c0_29], %102 {strides = array<i32>} : memref<128x128xbf16, #tpu.memory_space<vmem>>, vector<16x128xbf16>,
    %c3_i32 = arith.constant 3 : i32
    %c16_i32_30 = arith.constant 16 : i32
    %105 = arith.muli %c3_i32, %c16_i32_30 : i32
    %106 = tpu.assume_multiple %105, 16 : i32
    %107 = arith.index_cast %106 : i32 to index
    %c0_31 = arith.constant 0 : index
    %108 = vector.load %arg12[%107, %c0_31] : memref<128x512xf32, #tpu.memory_space<vmem>>, vector<16x512xf32>
    %109 = arith.truncf %100 : vector<16x128xf32> to vector<16x128xbf16>
    %cst_32 = arith.constant dense<0.000000e+00> : vector<16x512xf32>
    %110 = tpu.matmul %109, %12, %cst_32 {dimension_numbers = #tpu.dot_dimension_numbers<[1], [0], [0], [1], [0, 0, 1, 1], [], []>} : vector<16x128xbf16>, vector<128x512xbf16>, vector<16x512xf32> -> vector<16x512xf32>
    %111 = arith.addf %108, %110 : vector<16x512xf32>
    %112 = vector.extract_strided_slice %111 {offsets = [0, 0], sizes = [16, 384], strides = [1, 1]} : vector<16x512xf32> to vector<16x384xf32>
    %113 = arith.negf %112 : vector<16x384xf32>
    %114 = math.exp %113 : vector<16x384xf32>
    %cst_33 = arith.constant 1.000000e+00 : f32
    %115 = vector.broadcast %cst_33 : f32 to vector<16x384xf32>
    %116 = arith.addf %115, %114 : vector<16x384xf32>
    %117 = arith.divf %115, %116 : vector<16x384xf32>
    %118 = vector.extract_strided_slice %117 {offsets = [0, 0], sizes = [16, 128], strides = [1, 1]} : vector<16x384xf32> to vector<16x128xf32>
    %119 = vector.extract_strided_slice %117 {offsets = [0, 128], sizes = [16, 128], strides = [1, 1]} : vector<16x384xf32> to vector<16x128xf32>
    %120 = vector.extract_strided_slice %117 {offsets = [0, 256], sizes = [16, 128], strides = [1, 1]} : vector<16x384xf32> to vector<16x128xf32>
    %121 = vector.extract_strided_slice %111 {offsets = [0, 384], sizes = [16, 128], strides = [1, 1]} : vector<16x512xf32> to vector<16x128xf32>
    %122 = math.tanh %121 : vector<16x128xf32>
    %123 = arith.mulf %119, %101 : vector<16x128xf32>
    %124 = arith.mulf %118, %122 : vector<16x128xf32>
    %125 = arith.addf %123, %124 : vector<16x128xf32>
    %126 = math.tanh %125 : vector<16x128xf32>
    %127 = arith.mulf %120, %126 : vector<16x128xf32>
    %128 = arith.addi %0, %c3_i32 : i32
    %129 = arith.cmpi slt, %128, %1 : i32
    %130 = arith.select %129, %127, %100 : vector<16x128xf32>
    %131 = arith.select %129, %125, %101 : vector<16x128xf32>
    %132 = arith.truncf %130 : vector<16x128xf32> to vector<16x128xbf16>
    %133 = arith.index_cast %106 : i32 to index
    %c0_34 = arith.constant 0 : index
    %134 = vector.load %arg13[%133, %c0_34] : memref<128x128xbf16, #tpu.memory_space<vmem>>, vector<16x128xbf16>
    tpu.vector_store %arg13[%133, %c0_34], %132 {strides = array<i32>} : memref<128x128xbf16, #tpu.memory_space<vmem>>, vector<16x128xbf16>,
    %c4_i32 = arith.constant 4 : i32
    %c16_i32_35 = arith.constant 16 : i32
    %135 = arith.muli %c4_i32, %c16_i32_35 : i32
    %136 = tpu.assume_multiple %135, 16 : i32
    %137 = arith.index_cast %136 : i32 to index
    %c0_36 = arith.constant 0 : index
    %138 = vector.load %arg12[%137, %c0_36] : memref<128x512xf32, #tpu.memory_space<vmem>>, vector<16x512xf32>
    %139 = arith.truncf %130 : vector<16x128xf32> to vector<16x128xbf16>
    %cst_37 = arith.constant dense<0.000000e+00> : vector<16x512xf32>
    %140 = tpu.matmul %139, %12, %cst_37 {dimension_numbers = #tpu.dot_dimension_numbers<[1], [0], [0], [1], [0, 0, 1, 1], [], []>} : vector<16x128xbf16>, vector<128x512xbf16>, vector<16x512xf32> -> vector<16x512xf32>
    %141 = arith.addf %138, %140 : vector<16x512xf32>
    %142 = vector.extract_strided_slice %141 {offsets = [0, 0], sizes = [16, 384], strides = [1, 1]} : vector<16x512xf32> to vector<16x384xf32>
    %143 = arith.negf %142 : vector<16x384xf32>
    %144 = math.exp %143 : vector<16x384xf32>
    %cst_38 = arith.constant 1.000000e+00 : f32
    %145 = vector.broadcast %cst_38 : f32 to vector<16x384xf32>
    %146 = arith.addf %145, %144 : vector<16x384xf32>
    %147 = arith.divf %145, %146 : vector<16x384xf32>
    %148 = vector.extract_strided_slice %147 {offsets = [0, 0], sizes = [16, 128], strides = [1, 1]} : vector<16x384xf32> to vector<16x128xf32>
    %149 = vector.extract_strided_slice %147 {offsets = [0, 128], sizes = [16, 128], strides = [1, 1]} : vector<16x384xf32> to vector<16x128xf32>
    %150 = vector.extract_strided_slice %147 {offsets = [0, 256], sizes = [16, 128], strides = [1, 1]} : vector<16x384xf32> to vector<16x128xf32>
    %151 = vector.extract_strided_slice %141 {offsets = [0, 384], sizes = [16, 128], strides = [1, 1]} : vector<16x512xf32> to vector<16x128xf32>
    %152 = math.tanh %151 : vector<16x128xf32>
    %153 = arith.mulf %149, %131 : vector<16x128xf32>
    %154 = arith.mulf %148, %152 : vector<16x128xf32>
    %155 = arith.addf %153, %154 : vector<16x128xf32>
    %156 = math.tanh %155 : vector<16x128xf32>
    %157 = arith.mulf %150, %156 : vector<16x128xf32>
    %158 = arith.addi %0, %c4_i32 : i32
    %159 = arith.cmpi slt, %158, %1 : i32
    %160 = arith.select %159, %157, %130 : vector<16x128xf32>
    %161 = arith.select %159, %155, %131 : vector<16x128xf32>
    %162 = arith.truncf %160 : vector<16x128xf32> to vector<16x128xbf16>
    %163 = arith.index_cast %136 : i32 to index
    %c0_39 = arith.constant 0 : index
    %164 = vector.load %arg13[%163, %c0_39] : memref<128x128xbf16, #tpu.memory_space<vmem>>, vector<16x128xbf16>
    tpu.vector_store %arg13[%163, %c0_39], %162 {strides = array<i32>} : memref<128x128xbf16, #tpu.memory_space<vmem>>, vector<16x128xbf16>,
    %c5_i32 = arith.constant 5 : i32
    %c16_i32_40 = arith.constant 16 : i32
    %165 = arith.muli %c5_i32, %c16_i32_40 : i32
    %166 = tpu.assume_multiple %165, 16 : i32
    %167 = arith.index_cast %166 : i32 to index
    %c0_41 = arith.constant 0 : index
    %168 = vector.load %arg12[%167, %c0_41] : memref<128x512xf32, #tpu.memory_space<vmem>>, vector<16x512xf32>
    %169 = arith.truncf %160 : vector<16x128xf32> to vector<16x128xbf16>
    %cst_42 = arith.constant dense<0.000000e+00> : vector<16x512xf32>
    %170 = tpu.matmul %169, %12, %cst_42 {dimension_numbers = #tpu.dot_dimension_numbers<[1], [0], [0], [1], [0, 0, 1, 1], [], []>} : vector<16x128xbf16>, vector<128x512xbf16>, vector<16x512xf32> -> vector<16x512xf32>
    %171 = arith.addf %168, %170 : vector<16x512xf32>
    %172 = vector.extract_strided_slice %171 {offsets = [0, 0], sizes = [16, 384], strides = [1, 1]} : vector<16x512xf32> to vector<16x384xf32>
    %173 = arith.negf %172 : vector<16x384xf32>
    %174 = math.exp %173 : vector<16x384xf32>
    %cst_43 = arith.constant 1.000000e+00 : f32
    %175 = vector.broadcast %cst_43 : f32 to vector<16x384xf32>
    %176 = arith.addf %175, %174 : vector<16x384xf32>
    %177 = arith.divf %175, %176 : vector<16x384xf32>
    %178 = vector.extract_strided_slice %177 {offsets = [0, 0], sizes = [16, 128], strides = [1, 1]} : vector<16x384xf32> to vector<16x128xf32>
    %179 = vector.extract_strided_slice %177 {offsets = [0, 128], sizes = [16, 128], strides = [1, 1]} : vector<16x384xf32> to vector<16x128xf32>
    %180 = vector.extract_strided_slice %177 {offsets = [0, 256], sizes = [16, 128], strides = [1, 1]} : vector<16x384xf32> to vector<16x128xf32>
    %181 = vector.extract_strided_slice %171 {offsets = [0, 384], sizes = [16, 128], strides = [1, 1]} : vector<16x512xf32> to vector<16x128xf32>
    %182 = math.tanh %181 : vector<16x128xf32>
    %183 = arith.mulf %179, %161 : vector<16x128xf32>
    %184 = arith.mulf %178, %182 : vector<16x128xf32>
    %185 = arith.addf %183, %184 : vector<16x128xf32>
    %186 = math.tanh %185 : vector<16x128xf32>
    %187 = arith.mulf %180, %186 : vector<16x128xf32>
    %188 = arith.addi %0, %c5_i32 : i32
    %189 = arith.cmpi slt, %188, %1 : i32
    %190 = arith.select %189, %187, %160 : vector<16x128xf32>
    %191 = arith.select %189, %185, %161 : vector<16x128xf32>
    %192 = arith.truncf %190 : vector<16x128xf32> to vector<16x128xbf16>
    %193 = arith.index_cast %166 : i32 to index
    %c0_44 = arith.constant 0 : index
    %194 = vector.load %arg13[%193, %c0_44] : memref<128x128xbf16, #tpu.memory_space<vmem>>, vector<16x128xbf16>
    tpu.vector_store %arg13[%193, %c0_44], %192 {strides = array<i32>} : memref<128x128xbf16, #tpu.memory_space<vmem>>, vector<16x128xbf16>,
    %c6_i32 = arith.constant 6 : i32
    %c16_i32_45 = arith.constant 16 : i32
    %195 = arith.muli %c6_i32, %c16_i32_45 : i32
    %196 = tpu.assume_multiple %195, 16 : i32
    %197 = arith.index_cast %196 : i32 to index
    %c0_46 = arith.constant 0 : index
    %198 = vector.load %arg12[%197, %c0_46] : memref<128x512xf32, #tpu.memory_space<vmem>>, vector<16x512xf32>
    %199 = arith.truncf %190 : vector<16x128xf32> to vector<16x128xbf16>
    %cst_47 = arith.constant dense<0.000000e+00> : vector<16x512xf32>
    %200 = tpu.matmul %199, %12, %cst_47 {dimension_numbers = #tpu.dot_dimension_numbers<[1], [0], [0], [1], [0, 0, 1, 1], [], []>} : vector<16x128xbf16>, vector<128x512xbf16>, vector<16x512xf32> -> vector<16x512xf32>
    %201 = arith.addf %198, %200 : vector<16x512xf32>
    %202 = vector.extract_strided_slice %201 {offsets = [0, 0], sizes = [16, 384], strides = [1, 1]} : vector<16x512xf32> to vector<16x384xf32>
    %203 = arith.negf %202 : vector<16x384xf32>
    %204 = math.exp %203 : vector<16x384xf32>
    %cst_48 = arith.constant 1.000000e+00 : f32
    %205 = vector.broadcast %cst_48 : f32 to vector<16x384xf32>
    %206 = arith.addf %205, %204 : vector<16x384xf32>
    %207 = arith.divf %205, %206 : vector<16x384xf32>
    %208 = vector.extract_strided_slice %207 {offsets = [0, 0], sizes = [16, 128], strides = [1, 1]} : vector<16x384xf32> to vector<16x128xf32>
    %209 = vector.extract_strided_slice %207 {offsets = [0, 128], sizes = [16, 128], strides = [1, 1]} : vector<16x384xf32> to vector<16x128xf32>
    %210 = vector.extract_strided_slice %207 {offsets = [0, 256], sizes = [16, 128], strides = [1, 1]} : vector<16x384xf32> to vector<16x128xf32>
    %211 = vector.extract_strided_slice %201 {offsets = [0, 384], sizes = [16, 128], strides = [1, 1]} : vector<16x512xf32> to vector<16x128xf32>
    %212 = math.tanh %211 : vector<16x128xf32>
    %213 = arith.mulf %209, %191 : vector<16x128xf32>
    %214 = arith.mulf %208, %212 : vector<16x128xf32>
    %215 = arith.addf %213, %214 : vector<16x128xf32>
    %216 = math.tanh %215 : vector<16x128xf32>
    %217 = arith.mulf %210, %216 : vector<16x128xf32>
    %218 = arith.addi %0, %c6_i32 : i32
    %219 = arith.cmpi slt, %218, %1 : i32
    %220 = arith.select %219, %217, %190 : vector<16x128xf32>
    %221 = arith.select %219, %215, %191 : vector<16x128xf32>
    %222 = arith.truncf %220 : vector<16x128xf32> to vector<16x128xbf16>
    %223 = arith.index_cast %196 : i32 to index
    %c0_49 = arith.constant 0 : index
    %224 = vector.load %arg13[%223, %c0_49] : memref<128x128xbf16, #tpu.memory_space<vmem>>, vector<16x128xbf16>
    tpu.vector_store %arg13[%223, %c0_49], %222 {strides = array<i32>} : memref<128x128xbf16, #tpu.memory_space<vmem>>, vector<16x128xbf16>,
    %c7_i32 = arith.constant 7 : i32
    %c16_i32_50 = arith.constant 16 : i32
    %225 = arith.muli %c7_i32, %c16_i32_50 : i32
    %226 = tpu.assume_multiple %225, 16 : i32
    %227 = arith.index_cast %226 : i32 to index
    %c0_51 = arith.constant 0 : index
    %228 = vector.load %arg12[%227, %c0_51] : memref<128x512xf32, #tpu.memory_space<vmem>>, vector<16x512xf32>
    %229 = arith.truncf %220 : vector<16x128xf32> to vector<16x128xbf16>
    %cst_52 = arith.constant dense<0.000000e+00> : vector<16x512xf32>
    %230 = tpu.matmul %229, %12, %cst_52 {dimension_numbers = #tpu.dot_dimension_numbers<[1], [0], [0], [1], [0, 0, 1, 1], [], []>} : vector<16x128xbf16>, vector<128x512xbf16>, vector<16x512xf32> -> vector<16x512xf32>
    %231 = arith.addf %228, %230 : vector<16x512xf32>
    %232 = vector.extract_strided_slice %231 {offsets = [0, 0], sizes = [16, 384], strides = [1, 1]} : vector<16x512xf32> to vector<16x384xf32>
    %233 = arith.negf %232 : vector<16x384xf32>
    %234 = math.exp %233 : vector<16x384xf32>
    %cst_53 = arith.constant 1.000000e+00 : f32
    %235 = vector.broadcast %cst_53 : f32 to vector<16x384xf32>
    %236 = arith.addf %235, %234 : vector<16x384xf32>
    %237 = arith.divf %235, %236 : vector<16x384xf32>
    %238 = vector.extract_strided_slice %237 {offsets = [0, 0], sizes = [16, 128], strides = [1, 1]} : vector<16x384xf32> to vector<16x128xf32>
    %239 = vector.extract_strided_slice %237 {offsets = [0, 128], sizes = [16, 128], strides = [1, 1]} : vector<16x384xf32> to vector<16x128xf32>
    %240 = vector.extract_strided_slice %237 {offsets = [0, 256], sizes = [16, 128], strides = [1, 1]} : vector<16x384xf32> to vector<16x128xf32>
    %241 = vector.extract_strided_slice %231 {offsets = [0, 384], sizes = [16, 128], strides = [1, 1]} : vector<16x512xf32> to vector<16x128xf32>
    %242 = math.tanh %241 : vector<16x128xf32>
    %243 = arith.mulf %239, %221 : vector<16x128xf32>
    %244 = arith.mulf %238, %242 : vector<16x128xf32>
    %245 = arith.addf %243, %244 : vector<16x128xf32>
    %246 = math.tanh %245 : vector<16x128xf32>
    %247 = arith.mulf %240, %246 : vector<16x128xf32>
    %248 = arith.addi %0, %c7_i32 : i32
    %249 = arith.cmpi slt, %248, %1 : i32
    %250 = arith.select %249, %247, %220 : vector<16x128xf32>
    %251 = arith.select %249, %245, %221 : vector<16x128xf32>
    %252 = arith.truncf %250 : vector<16x128xf32> to vector<16x128xbf16>
    %253 = arith.index_cast %226 : i32 to index
    %c0_54 = arith.constant 0 : index
    %254 = vector.load %arg13[%253, %c0_54] : memref<128x128xbf16, #tpu.memory_space<vmem>>, vector<16x128xbf16>
    tpu.vector_store %arg13[%253, %c0_54], %252 {strides = array<i32>} : memref<128x128xbf16, #tpu.memory_space<vmem>>, vector<16x128xbf16>,
    %c8_i32_55 = arith.constant 8 : i32
    %c0_56 = arith.constant 0 : index
    %c0_57 = arith.constant 0 : index
    %255 = vector.load %arg15[%c0_56, %c0_57] : memref<16x128xf32, #tpu.memory_space<vmem>>, vector<16x128xf32>
    tpu.vector_store %arg15[%c0_56, %c0_57], %250 {strides = array<i32>} : memref<16x128xf32, #tpu.memory_space<vmem>>, vector<16x128xf32>,
    %c0_58 = arith.constant 0 : index
    %c0_59 = arith.constant 0 : index
    %256 = vector.load %arg16[%c0_58, %c0_59] : memref<16x128xf32, #tpu.memory_space<vmem>>, vector<16x128xf32>
    tpu.vector_store %arg16[%c0_58, %c0_59], %251 {strides = array<i32>} : memref<16x128xf32, #tpu.memory_space<vmem>>, vector<16x128xf32>,
    %c0_60 = arith.constant 0 : index
    %c0_61 = arith.constant 0 : index
    %257 = vector.load %arg13[%c0_60, %c0_61] : memref<128x128xbf16, #tpu.memory_space<vmem>>, vector<128x128xbf16>
    %c0_62 = arith.constant 0 : index
    %c0_63 = arith.constant 0 : index
    %258 = vector.load %arg6[%c0_62, %c0_63] : memref<128x512xbf16, #tpu.memory_space<vmem>>, vector<128x512xbf16>
    %cst_64 = arith.constant dense<0.000000e+00> : vector<128x512xf32>
    %259 = tpu.matmul %257, %258, %cst_64 {dimension_numbers = #tpu.dot_dimension_numbers<[1], [0], [0], [1], [0, 0, 1, 1], [], []>} : vector<128x128xbf16>, vector<128x512xbf16>, vector<128x512xf32> -> vector<128x512xf32>
    %c0_65 = arith.constant 0 : index
    %c0_66 = arith.constant 0 : index
    %260 = vector.load %arg8[%c0_65, %c0_66] : memref<1x512xf32, #tpu.memory_space<vmem>>, vector<1x512xf32>
    %261 = vector.broadcast %260 : vector<1x512xf32> to vector<128x512xf32>
    %262 = arith.addf %259, %261 : vector<128x512xf32>
    %c0_67 = arith.constant 0 : index
    %c0_68 = arith.constant 0 : index
    %263 = vector.load %arg14[%c0_67, %c0_68] : memref<128x512xf32, #tpu.memory_space<vmem>>, vector<128x512xf32>
    tpu.vector_store %arg14[%c0_67, %c0_68], %262 {strides = array<i32>} : memref<128x512xf32, #tpu.memory_space<vmem>>, vector<128x512xf32>,
    %c0_69 = arith.constant 0 : index
    %c0_70 = arith.constant 0 : index
    %264 = vector.load %arg7[%c0_69, %c0_70] : memref<128x512xbf16, #tpu.memory_space<vmem>>, vector<128x512xbf16>
    %c0_71 = arith.constant 0 : index
    %c0_72 = arith.constant 0 : index
    %265 = vector.load %arg17[%c0_71, %c0_72] : memref<16x128xf32, #tpu.memory_space<vmem>>, vector<16x128xf32>
    %c0_73 = arith.constant 0 : index
    %c0_74 = arith.constant 0 : index
    %266 = vector.load %arg18[%c0_73, %c0_74] : memref<16x128xf32, #tpu.memory_space<vmem>>, vector<16x128xf32>
    %c0_i32_75 = arith.constant 0 : i32
    %c16_i32_76 = arith.constant 16 : i32
    %267 = arith.muli %c0_i32_75, %c16_i32_76 : i32
    %268 = tpu.assume_multiple %267, 16 : i32
    %269 = arith.index_cast %268 : i32 to index
    %c0_77 = arith.constant 0 : index
    %270 = vector.load %arg14[%269, %c0_77] : memref<128x512xf32, #tpu.memory_space<vmem>>, vector<16x512xf32>
    %271 = arith.truncf %265 : vector<16x128xf32> to vector<16x128xbf16>
    %cst_78 = arith.constant dense<0.000000e+00> : vector<16x512xf32>
    %272 = tpu.matmul %271, %264, %cst_78 {dimension_numbers = #tpu.dot_dimension_numbers<[1], [0], [0], [1], [0, 0, 1, 1], [], []>} : vector<16x128xbf16>, vector<128x512xbf16>, vector<16x512xf32> -> vector<16x512xf32>
    %273 = arith.addf %270, %272 : vector<16x512xf32>
    %274 = vector.extract_strided_slice %273 {offsets = [0, 0], sizes = [16, 384], strides = [1, 1]} : vector<16x512xf32> to vector<16x384xf32>
    %275 = arith.negf %274 : vector<16x384xf32>
    %276 = math.exp %275 : vector<16x384xf32>
    %cst_79 = arith.constant 1.000000e+00 : f32
    %277 = vector.broadcast %cst_79 : f32 to vector<16x384xf32>
    %278 = arith.addf %277, %276 : vector<16x384xf32>
    %279 = arith.divf %277, %278 : vector<16x384xf32>
    %280 = vector.extract_strided_slice %279 {offsets = [0, 0], sizes = [16, 128], strides = [1, 1]} : vector<16x384xf32> to vector<16x128xf32>
    %281 = vector.extract_strided_slice %279 {offsets = [0, 128], sizes = [16, 128], strides = [1, 1]} : vector<16x384xf32> to vector<16x128xf32>
    %282 = vector.extract_strided_slice %279 {offsets = [0, 256], sizes = [16, 128], strides = [1, 1]} : vector<16x384xf32> to vector<16x128xf32>
    %283 = vector.extract_strided_slice %273 {offsets = [0, 384], sizes = [16, 128], strides = [1, 1]} : vector<16x512xf32> to vector<16x128xf32>
    %284 = math.tanh %283 : vector<16x128xf32>
    %285 = arith.mulf %281, %266 : vector<16x128xf32>
    %286 = arith.mulf %280, %284 : vector<16x128xf32>
    %287 = arith.addf %285, %286 : vector<16x128xf32>
    %288 = math.tanh %287 : vector<16x128xf32>
    %289 = arith.mulf %282, %288 : vector<16x128xf32>
    %290 = arith.addi %0, %c0_i32_75 : i32
    %291 = arith.cmpi slt, %290, %1 : i32
    %292 = arith.select %291, %289, %265 : vector<16x128xf32>
    %293 = arith.select %291, %287, %266 : vector<16x128xf32>
    %c1_i32_80 = arith.constant 1 : i32
    %c16_i32_81 = arith.constant 16 : i32
    %294 = arith.muli %c1_i32_80, %c16_i32_81 : i32
    %295 = tpu.assume_multiple %294, 16 : i32
    %296 = arith.index_cast %295 : i32 to index
    %c0_82 = arith.constant 0 : index
    %297 = vector.load %arg14[%296, %c0_82] : memref<128x512xf32, #tpu.memory_space<vmem>>, vector<16x512xf32>
    %298 = arith.truncf %292 : vector<16x128xf32> to vector<16x128xbf16>
    %cst_83 = arith.constant dense<0.000000e+00> : vector<16x512xf32>
    %299 = tpu.matmul %298, %264, %cst_83 {dimension_numbers = #tpu.dot_dimension_numbers<[1], [0], [0], [1], [0, 0, 1, 1], [], []>} : vector<16x128xbf16>, vector<128x512xbf16>, vector<16x512xf32> -> vector<16x512xf32>
    %300 = arith.addf %297, %299 : vector<16x512xf32>
    %301 = vector.extract_strided_slice %300 {offsets = [0, 0], sizes = [16, 384], strides = [1, 1]} : vector<16x512xf32> to vector<16x384xf32>
    %302 = arith.negf %301 : vector<16x384xf32>
    %303 = math.exp %302 : vector<16x384xf32>
    %cst_84 = arith.constant 1.000000e+00 : f32
    %304 = vector.broadcast %cst_84 : f32 to vector<16x384xf32>
    %305 = arith.addf %304, %303 : vector<16x384xf32>
    %306 = arith.divf %304, %305 : vector<16x384xf32>
    %307 = vector.extract_strided_slice %306 {offsets = [0, 0], sizes = [16, 128], strides = [1, 1]} : vector<16x384xf32> to vector<16x128xf32>
    %308 = vector.extract_strided_slice %306 {offsets = [0, 128], sizes = [16, 128], strides = [1, 1]} : vector<16x384xf32> to vector<16x128xf32>
    %309 = vector.extract_strided_slice %306 {offsets = [0, 256], sizes = [16, 128], strides = [1, 1]} : vector<16x384xf32> to vector<16x128xf32>
    %310 = vector.extract_strided_slice %300 {offsets = [0, 384], sizes = [16, 128], strides = [1, 1]} : vector<16x512xf32> to vector<16x128xf32>
    %311 = math.tanh %310 : vector<16x128xf32>
    %312 = arith.mulf %308, %293 : vector<16x128xf32>
    %313 = arith.mulf %307, %311 : vector<16x128xf32>
    %314 = arith.addf %312, %313 : vector<16x128xf32>
    %315 = math.tanh %314 : vector<16x128xf32>
    %316 = arith.mulf %309, %315 : vector<16x128xf32>
    %317 = arith.addi %0, %c1_i32_80 : i32
    %318 = arith.cmpi slt, %317, %1 : i32
    %319 = arith.select %318, %316, %292 : vector<16x128xf32>
    %320 = arith.select %318, %314, %293 : vector<16x128xf32>
    %c2_i32_85 = arith.constant 2 : i32
    %c16_i32_86 = arith.constant 16 : i32
    %321 = arith.muli %c2_i32_85, %c16_i32_86 : i32
    %322 = tpu.assume_multiple %321, 16 : i32
    %323 = arith.index_cast %322 : i32 to index
    %c0_87 = arith.constant 0 : index
    %324 = vector.load %arg14[%323, %c0_87] : memref<128x512xf32, #tpu.memory_space<vmem>>, vector<16x512xf32>
    %325 = arith.truncf %319 : vector<16x128xf32> to vector<16x128xbf16>
    %cst_88 = arith.constant dense<0.000000e+00> : vector<16x512xf32>
    %326 = tpu.matmul %325, %264, %cst_88 {dimension_numbers = #tpu.dot_dimension_numbers<[1], [0], [0], [1], [0, 0, 1, 1], [], []>} : vector<16x128xbf16>, vector<128x512xbf16>, vector<16x512xf32> -> vector<16x512xf32>
    %327 = arith.addf %324, %326 : vector<16x512xf32>
    %328 = vector.extract_strided_slice %327 {offsets = [0, 0], sizes = [16, 384], strides = [1, 1]} : vector<16x512xf32> to vector<16x384xf32>
    %329 = arith.negf %328 : vector<16x384xf32>
    %330 = math.exp %329 : vector<16x384xf32>
    %cst_89 = arith.constant 1.000000e+00 : f32
    %331 = vector.broadcast %cst_89 : f32 to vector<16x384xf32>
    %332 = arith.addf %331, %330 : vector<16x384xf32>
    %333 = arith.divf %331, %332 : vector<16x384xf32>
    %334 = vector.extract_strided_slice %333 {offsets = [0, 0], sizes = [16, 128], strides = [1, 1]} : vector<16x384xf32> to vector<16x128xf32>
    %335 = vector.extract_strided_slice %333 {offsets = [0, 128], sizes = [16, 128], strides = [1, 1]} : vector<16x384xf32> to vector<16x128xf32>
    %336 = vector.extract_strided_slice %333 {offsets = [0, 256], sizes = [16, 128], strides = [1, 1]} : vector<16x384xf32> to vector<16x128xf32>
    %337 = vector.extract_strided_slice %327 {offsets = [0, 384], sizes = [16, 128], strides = [1, 1]} : vector<16x512xf32> to vector<16x128xf32>
    %338 = math.tanh %337 : vector<16x128xf32>
    %339 = arith.mulf %335, %320 : vector<16x128xf32>
    %340 = arith.mulf %334, %338 : vector<16x128xf32>
    %341 = arith.addf %339, %340 : vector<16x128xf32>
    %342 = math.tanh %341 : vector<16x128xf32>
    %343 = arith.mulf %336, %342 : vector<16x128xf32>
    %344 = arith.addi %0, %c2_i32_85 : i32
    %345 = arith.cmpi slt, %344, %1 : i32
    %346 = arith.select %345, %343, %319 : vector<16x128xf32>
    %347 = arith.select %345, %341, %320 : vector<16x128xf32>
    %c3_i32_90 = arith.constant 3 : i32
    %c16_i32_91 = arith.constant 16 : i32
    %348 = arith.muli %c3_i32_90, %c16_i32_91 : i32
    %349 = tpu.assume_multiple %348, 16 : i32
    %350 = arith.index_cast %349 : i32 to index
    %c0_92 = arith.constant 0 : index
    %351 = vector.load %arg14[%350, %c0_92] : memref<128x512xf32, #tpu.memory_space<vmem>>, vector<16x512xf32>
    %352 = arith.truncf %346 : vector<16x128xf32> to vector<16x128xbf16>
    %cst_93 = arith.constant dense<0.000000e+00> : vector<16x512xf32>
    %353 = tpu.matmul %352, %264, %cst_93 {dimension_numbers = #tpu.dot_dimension_numbers<[1], [0], [0], [1], [0, 0, 1, 1], [], []>} : vector<16x128xbf16>, vector<128x512xbf16>, vector<16x512xf32> -> vector<16x512xf32>
    %354 = arith.addf %351, %353 : vector<16x512xf32>
    %355 = vector.extract_strided_slice %354 {offsets = [0, 0], sizes = [16, 384], strides = [1, 1]} : vector<16x512xf32> to vector<16x384xf32>
    %356 = arith.negf %355 : vector<16x384xf32>
    %357 = math.exp %356 : vector<16x384xf32>
    %cst_94 = arith.constant 1.000000e+00 : f32
    %358 = vector.broadcast %cst_94 : f32 to vector<16x384xf32>
    %359 = arith.addf %358, %357 : vector<16x384xf32>
    %360 = arith.divf %358, %359 : vector<16x384xf32>
    %361 = vector.extract_strided_slice %360 {offsets = [0, 0], sizes = [16, 128], strides = [1, 1]} : vector<16x384xf32> to vector<16x128xf32>
    %362 = vector.extract_strided_slice %360 {offsets = [0, 128], sizes = [16, 128], strides = [1, 1]} : vector<16x384xf32> to vector<16x128xf32>
    %363 = vector.extract_strided_slice %360 {offsets = [0, 256], sizes = [16, 128], strides = [1, 1]} : vector<16x384xf32> to vector<16x128xf32>
    %364 = vector.extract_strided_slice %354 {offsets = [0, 384], sizes = [16, 128], strides = [1, 1]} : vector<16x512xf32> to vector<16x128xf32>
    %365 = math.tanh %364 : vector<16x128xf32>
    %366 = arith.mulf %362, %347 : vector<16x128xf32>
    %367 = arith.mulf %361, %365 : vector<16x128xf32>
    %368 = arith.addf %366, %367 : vector<16x128xf32>
    %369 = math.tanh %368 : vector<16x128xf32>
    %370 = arith.mulf %363, %369 : vector<16x128xf32>
    %371 = arith.addi %0, %c3_i32_90 : i32
    %372 = arith.cmpi slt, %371, %1 : i32
    %373 = arith.select %372, %370, %346 : vector<16x128xf32>
    %374 = arith.select %372, %368, %347 : vector<16x128xf32>
    %c4_i32_95 = arith.constant 4 : i32
    %c16_i32_96 = arith.constant 16 : i32
    %375 = arith.muli %c4_i32_95, %c16_i32_96 : i32
    %376 = tpu.assume_multiple %375, 16 : i32
    %377 = arith.index_cast %376 : i32 to index
    %c0_97 = arith.constant 0 : index
    %378 = vector.load %arg14[%377, %c0_97] : memref<128x512xf32, #tpu.memory_space<vmem>>, vector<16x512xf32>
    %379 = arith.truncf %373 : vector<16x128xf32> to vector<16x128xbf16>
    %cst_98 = arith.constant dense<0.000000e+00> : vector<16x512xf32>
    %380 = tpu.matmul %379, %264, %cst_98 {dimension_numbers = #tpu.dot_dimension_numbers<[1], [0], [0], [1], [0, 0, 1, 1], [], []>} : vector<16x128xbf16>, vector<128x512xbf16>, vector<16x512xf32> -> vector<16x512xf32>
    %381 = arith.addf %378, %380 : vector<16x512xf32>
    %382 = vector.extract_strided_slice %381 {offsets = [0, 0], sizes = [16, 384], strides = [1, 1]} : vector<16x512xf32> to vector<16x384xf32>
    %383 = arith.negf %382 : vector<16x384xf32>
    %384 = math.exp %383 : vector<16x384xf32>
    %cst_99 = arith.constant 1.000000e+00 : f32
    %385 = vector.broadcast %cst_99 : f32 to vector<16x384xf32>
    %386 = arith.addf %385, %384 : vector<16x384xf32>
    %387 = arith.divf %385, %386 : vector<16x384xf32>
    %388 = vector.extract_strided_slice %387 {offsets = [0, 0], sizes = [16, 128], strides = [1, 1]} : vector<16x384xf32> to vector<16x128xf32>
    %389 = vector.extract_strided_slice %387 {offsets = [0, 128], sizes = [16, 128], strides = [1, 1]} : vector<16x384xf32> to vector<16x128xf32>
    %390 = vector.extract_strided_slice %387 {offsets = [0, 256], sizes = [16, 128], strides = [1, 1]} : vector<16x384xf32> to vector<16x128xf32>
    %391 = vector.extract_strided_slice %381 {offsets = [0, 384], sizes = [16, 128], strides = [1, 1]} : vector<16x512xf32> to vector<16x128xf32>
    %392 = math.tanh %391 : vector<16x128xf32>
    %393 = arith.mulf %389, %374 : vector<16x128xf32>
    %394 = arith.mulf %388, %392 : vector<16x128xf32>
    %395 = arith.addf %393, %394 : vector<16x128xf32>
    %396 = math.tanh %395 : vector<16x128xf32>
    %397 = arith.mulf %390, %396 : vector<16x128xf32>
    %398 = arith.addi %0, %c4_i32_95 : i32
    %399 = arith.cmpi slt, %398, %1 : i32
    %400 = arith.select %399, %397, %373 : vector<16x128xf32>
    %401 = arith.select %399, %395, %374 : vector<16x128xf32>
    %c5_i32_100 = arith.constant 5 : i32
    %c16_i32_101 = arith.constant 16 : i32
    %402 = arith.muli %c5_i32_100, %c16_i32_101 : i32
    %403 = tpu.assume_multiple %402, 16 : i32
    %404 = arith.index_cast %403 : i32 to index
    %c0_102 = arith.constant 0 : index
    %405 = vector.load %arg14[%404, %c0_102] : memref<128x512xf32, #tpu.memory_space<vmem>>, vector<16x512xf32>
    %406 = arith.truncf %400 : vector<16x128xf32> to vector<16x128xbf16>
    %cst_103 = arith.constant dense<0.000000e+00> : vector<16x512xf32>
    %407 = tpu.matmul %406, %264, %cst_103 {dimension_numbers = #tpu.dot_dimension_numbers<[1], [0], [0], [1], [0, 0, 1, 1], [], []>} : vector<16x128xbf16>, vector<128x512xbf16>, vector<16x512xf32> -> vector<16x512xf32>
    %408 = arith.addf %405, %407 : vector<16x512xf32>
    %409 = vector.extract_strided_slice %408 {offsets = [0, 0], sizes = [16, 384], strides = [1, 1]} : vector<16x512xf32> to vector<16x384xf32>
    %410 = arith.negf %409 : vector<16x384xf32>
    %411 = math.exp %410 : vector<16x384xf32>
    %cst_104 = arith.constant 1.000000e+00 : f32
    %412 = vector.broadcast %cst_104 : f32 to vector<16x384xf32>
    %413 = arith.addf %412, %411 : vector<16x384xf32>
    %414 = arith.divf %412, %413 : vector<16x384xf32>
    %415 = vector.extract_strided_slice %414 {offsets = [0, 0], sizes = [16, 128], strides = [1, 1]} : vector<16x384xf32> to vector<16x128xf32>
    %416 = vector.extract_strided_slice %414 {offsets = [0, 128], sizes = [16, 128], strides = [1, 1]} : vector<16x384xf32> to vector<16x128xf32>
    %417 = vector.extract_strided_slice %414 {offsets = [0, 256], sizes = [16, 128], strides = [1, 1]} : vector<16x384xf32> to vector<16x128xf32>
    %418 = vector.extract_strided_slice %408 {offsets = [0, 384], sizes = [16, 128], strides = [1, 1]} : vector<16x512xf32> to vector<16x128xf32>
    %419 = math.tanh %418 : vector<16x128xf32>
    %420 = arith.mulf %416, %401 : vector<16x128xf32>
    %421 = arith.mulf %415, %419 : vector<16x128xf32>
    %422 = arith.addf %420, %421 : vector<16x128xf32>
    %423 = math.tanh %422 : vector<16x128xf32>
    %424 = arith.mulf %417, %423 : vector<16x128xf32>
    %425 = arith.addi %0, %c5_i32_100 : i32
    %426 = arith.cmpi slt, %425, %1 : i32
    %427 = arith.select %426, %424, %400 : vector<16x128xf32>
    %428 = arith.select %426, %422, %401 : vector<16x128xf32>
    %c6_i32_105 = arith.constant 6 : i32
    %c16_i32_106 = arith.constant 16 : i32
    %429 = arith.muli %c6_i32_105, %c16_i32_106 : i32
    %430 = tpu.assume_multiple %429, 16 : i32
    %431 = arith.index_cast %430 : i32 to index
    %c0_107 = arith.constant 0 : index
    %432 = vector.load %arg14[%431, %c0_107] : memref<128x512xf32, #tpu.memory_space<vmem>>, vector<16x512xf32>
    %433 = arith.truncf %427 : vector<16x128xf32> to vector<16x128xbf16>
    %cst_108 = arith.constant dense<0.000000e+00> : vector<16x512xf32>
    %434 = tpu.matmul %433, %264, %cst_108 {dimension_numbers = #tpu.dot_dimension_numbers<[1], [0], [0], [1], [0, 0, 1, 1], [], []>} : vector<16x128xbf16>, vector<128x512xbf16>, vector<16x512xf32> -> vector<16x512xf32>
    %435 = arith.addf %432, %434 : vector<16x512xf32>
    %436 = vector.extract_strided_slice %435 {offsets = [0, 0], sizes = [16, 384], strides = [1, 1]} : vector<16x512xf32> to vector<16x384xf32>
    %437 = arith.negf %436 : vector<16x384xf32>
    %438 = math.exp %437 : vector<16x384xf32>
    %cst_109 = arith.constant 1.000000e+00 : f32
    %439 = vector.broadcast %cst_109 : f32 to vector<16x384xf32>
    %440 = arith.addf %439, %438 : vector<16x384xf32>
    %441 = arith.divf %439, %440 : vector<16x384xf32>
    %442 = vector.extract_strided_slice %441 {offsets = [0, 0], sizes = [16, 128], strides = [1, 1]} : vector<16x384xf32> to vector<16x128xf32>
    %443 = vector.extract_strided_slice %441 {offsets = [0, 128], sizes = [16, 128], strides = [1, 1]} : vector<16x384xf32> to vector<16x128xf32>
    %444 = vector.extract_strided_slice %441 {offsets = [0, 256], sizes = [16, 128], strides = [1, 1]} : vector<16x384xf32> to vector<16x128xf32>
    %445 = vector.extract_strided_slice %435 {offsets = [0, 384], sizes = [16, 128], strides = [1, 1]} : vector<16x512xf32> to vector<16x128xf32>
    %446 = math.tanh %445 : vector<16x128xf32>
    %447 = arith.mulf %443, %428 : vector<16x128xf32>
    %448 = arith.mulf %442, %446 : vector<16x128xf32>
    %449 = arith.addf %447, %448 : vector<16x128xf32>
    %450 = math.tanh %449 : vector<16x128xf32>
    %451 = arith.mulf %444, %450 : vector<16x128xf32>
    %452 = arith.addi %0, %c6_i32_105 : i32
    %453 = arith.cmpi slt, %452, %1 : i32
    %454 = arith.select %453, %451, %427 : vector<16x128xf32>
    %455 = arith.select %453, %449, %428 : vector<16x128xf32>
    %c7_i32_110 = arith.constant 7 : i32
    %c16_i32_111 = arith.constant 16 : i32
    %456 = arith.muli %c7_i32_110, %c16_i32_111 : i32
    %457 = tpu.assume_multiple %456, 16 : i32
    %458 = arith.index_cast %457 : i32 to index
    %c0_112 = arith.constant 0 : index
    %459 = vector.load %arg14[%458, %c0_112] : memref<128x512xf32, #tpu.memory_space<vmem>>, vector<16x512xf32>
    %460 = arith.truncf %454 : vector<16x128xf32> to vector<16x128xbf16>
    %cst_113 = arith.constant dense<0.000000e+00> : vector<16x512xf32>
    %461 = tpu.matmul %460, %264, %cst_113 {dimension_numbers = #tpu.dot_dimension_numbers<[1], [0], [0], [1], [0, 0, 1, 1], [], []>} : vector<16x128xbf16>, vector<128x512xbf16>, vector<16x512xf32> -> vector<16x512xf32>
    %462 = arith.addf %459, %461 : vector<16x512xf32>
    %463 = vector.extract_strided_slice %462 {offsets = [0, 0], sizes = [16, 384], strides = [1, 1]} : vector<16x512xf32> to vector<16x384xf32>
    %464 = arith.negf %463 : vector<16x384xf32>
    %465 = math.exp %464 : vector<16x384xf32>
    %cst_114 = arith.constant 1.000000e+00 : f32
    %466 = vector.broadcast %cst_114 : f32 to vector<16x384xf32>
    %467 = arith.addf %466, %465 : vector<16x384xf32>
    %468 = arith.divf %466, %467 : vector<16x384xf32>
    %469 = vector.extract_strided_slice %468 {offsets = [0, 0], sizes = [16, 128], strides = [1, 1]} : vector<16x384xf32> to vector<16x128xf32>
    %470 = vector.extract_strided_slice %468 {offsets = [0, 128], sizes = [16, 128], strides = [1, 1]} : vector<16x384xf32> to vector<16x128xf32>
    %471 = vector.extract_strided_slice %468 {offsets = [0, 256], sizes = [16, 128], strides = [1, 1]} : vector<16x384xf32> to vector<16x128xf32>
    %472 = vector.extract_strided_slice %462 {offsets = [0, 384], sizes = [16, 128], strides = [1, 1]} : vector<16x512xf32> to vector<16x128xf32>
    %473 = math.tanh %472 : vector<16x128xf32>
    %474 = arith.mulf %470, %455 : vector<16x128xf32>
    %475 = arith.mulf %469, %473 : vector<16x128xf32>
    %476 = arith.addf %474, %475 : vector<16x128xf32>
    %477 = math.tanh %476 : vector<16x128xf32>
    %478 = arith.mulf %471, %477 : vector<16x128xf32>
    %479 = arith.addi %0, %c7_i32_110 : i32
    %480 = arith.cmpi slt, %479, %1 : i32
    %481 = arith.select %480, %478, %454 : vector<16x128xf32>
    %482 = arith.select %480, %476, %455 : vector<16x128xf32>
    %c8_i32_115 = arith.constant 8 : i32
    %c0_116 = arith.constant 0 : index
    %c0_117 = arith.constant 0 : index
    %483 = vector.load %arg17[%c0_116, %c0_117] : memref<16x128xf32, #tpu.memory_space<vmem>>, vector<16x128xf32>
    tpu.vector_store %arg17[%c0_116, %c0_117], %481 {strides = array<i32>} : memref<16x128xf32, #tpu.memory_space<vmem>>, vector<16x128xf32>,
    %c0_118 = arith.constant 0 : index
    %c0_119 = arith.constant 0 : index
    %484 = vector.load %arg18[%c0_118, %c0_119] : memref<16x128xf32, #tpu.memory_space<vmem>>, vector<16x128xf32>
    tpu.vector_store %arg18[%c0_118, %c0_119], %482 {strides = array<i32>} : memref<16x128xf32, #tpu.memory_space<vmem>>, vector<16x128xf32>,
    %c0_i32_120 = arith.constant 0 : i32
    %485 = arith.cmpi eq, %arg0, %c0_i32_120 : i32
    %486 = arith.extui %485 : i1 to i32
    %c0_i32_121 = arith.constant 0 : i32
    %487 = arith.cmpi ne, %486, %c0_i32_121 : i32
    scf.if %487 {
      %488 = arith.truncf %481 : vector<16x128xf32> to vector<16x128xbf16>
      %c0_122 = arith.constant 0 : index
      %c0_123 = arith.constant 0 : index
      %489 = vector.load %arg9[%c0_122, %c0_123] : memref<128x5xbf16, #tpu.memory_space<vmem>>, vector<128x5xbf16>
      %cst_124 = arith.constant dense<0.000000e+00> : vector<16x5xf32>
      %490 = tpu.matmul %488, %489, %cst_124 {dimension_numbers = #tpu.dot_dimension_numbers<[1], [0], [0], [1], [0, 0, 1, 1], [], []>} : vector<16x128xbf16>, vector<128x5xbf16>, vector<16x5xf32> -> vector<16x5xf32>
      %c0_125 = arith.constant 0 : index
      %c0_126 = arith.constant 0 : index
      %491 = vector.load %arg10[%c0_125, %c0_126] : memref<1x5xf32, #tpu.memory_space<vmem>>, vector<1x5xf32>
      %492 = vector.broadcast %491 : vector<1x5xf32> to vector<16x5xf32>
      %493 = arith.addf %490, %492 : vector<16x5xf32>
      %cst_127 = arith.constant dense<0xFF800000> : vector<16xf32>
      %494 = vector.multi_reduction <maximumf>, %493, %cst_127 [1] : vector<16x5xf32> to vector<16xf32>
      %495 = vector.shape_cast %494 : vector<16xf32> to vector<16x1xf32>
      %496 = vector.broadcast %495 : vector<16x1xf32> to vector<16x5xf32>
      %497 = arith.subf %493, %496 : vector<16x5xf32>
      %498 = math.exp %497 : vector<16x5xf32>
      %cst_128 = arith.constant dense<0.000000e+00> : vector<16xf32>
      %499 = vector.multi_reduction <add>, %498, %cst_128 [1] : vector<16x5xf32> to vector<16xf32>
      %500 = vector.shape_cast %499 : vector<16xf32> to vector<16x1xf32>
      %501 = vector.broadcast %500 : vector<16x1xf32> to vector<16x5xf32>
      %502 = arith.divf %498, %501 : vector<16x5xf32>
      %c0_129 = arith.constant 0 : index
      %c0_130 = arith.constant 0 : index
      %503 = vector.load %arg11[%c0_129, %c0_130] : memref<16x5xf32, #tpu.memory_space<vmem>>, vector<16x5xf32>
      tpu.vector_store %arg11[%c0_129, %c0_130], %502 {strides = array<i32>} : memref<16x5xf32, #tpu.memory_space<vmem>>, vector<16x5xf32>,
    } else {
    }
    return
  }
  func.func @transform_0(%arg0: i32, %arg1: memref<1xi32, #tpu.memory_space<smem>>) -> (i32, i32) {
    %c0_i32 = arith.constant 0 : i32
    %c0_i32_0 = arith.constant 0 : i32
    return %arg0, %c0_i32 : i32, i32
  }
  func.func @transform_1(%arg0: i32, %arg1: memref<1xi32, #tpu.memory_space<smem>>) -> (i32, i32) {
    %c0_i32 = arith.constant 0 : i32
    %c0_i32_0 = arith.constant 0 : i32
    %c0_i32_1 = arith.constant 0 : i32
    return %c0_i32, %c0_i32_0 : i32, i32
  }
  func.func @transform_2(%arg0: i32, %arg1: memref<1xi32, #tpu.memory_space<smem>>) -> (i32, i32) {
    %c0_i32 = arith.constant 0 : i32
    %c0_i32_0 = arith.constant 0 : i32
    %c0_i32_1 = arith.constant 0 : i32
    return %c0_i32, %c0_i32_0 : i32, i32
  }
  func.func @transform_3(%arg0: i32, %arg1: memref<1xi32, #tpu.memory_space<smem>>) -> (i32, i32) {
    %c0_i32 = arith.constant 0 : i32
    %c0_i32_0 = arith.constant 0 : i32
    %c0_i32_1 = arith.constant 0 : i32
    return %c0_i32, %c0_i32_0 : i32, i32
  }
  func.func @transform_4(%arg0: i32, %arg1: memref<1xi32, #tpu.memory_space<smem>>) -> (i32, i32) {
    %c0_i32 = arith.constant 0 : i32
    %c0_i32_0 = arith.constant 0 : i32
    %c0_i32_1 = arith.constant 0 : i32
    return %c0_i32, %c0_i32_0 : i32, i32
  }
  func.func @transform_5(%arg0: i32, %arg1: memref<1xi32, #tpu.memory_space<smem>>) -> (i32, i32) {
    %c0_i32 = arith.constant 0 : i32
    %c0_i32_0 = arith.constant 0 : i32
    %c0_i32_1 = arith.constant 0 : i32
    return %c0_i32, %c0_i32_0 : i32, i32
  }
  func.func @transform_6(%arg0: i32, %arg1: memref<1xi32, #tpu.memory_space<smem>>) -> (i32, i32) {
    %c0_i32 = arith.constant 0 : i32
    %c0_i32_0 = arith.constant 0 : i32
    %c0_i32_1 = arith.constant 0 : i32
    return %c0_i32, %c0_i32_0 : i32, i32
  }
  func.func @transform_7(%arg0: i32, %arg1: memref<1xi32, #tpu.memory_space<smem>>) -> (i32, i32) {
    %c0_i32 = arith.constant 0 : i32
    %c0_i32_0 = arith.constant 0 : i32
    %c0_i32_1 = arith.constant 0 : i32
    return %c0_i32, %c0_i32_0 : i32, i32
  }
  func.func @transform_8(%arg0: i32, %arg1: memref<1xi32, #tpu.memory_space<smem>>) -> (i32, i32) {
    %c0_i32 = arith.constant 0 : i32
    %c0_i32_0 = arith.constant 0 : i32
    %c0_i32_1 = arith.constant 0 : i32
    return %c0_i32, %c0_i32_0 : i32, i32
  }
  func.func @transform_9(%arg0: i32, %arg1: memref<1xi32, #tpu.memory_space<smem>>) -> (i32, i32) {
    %c0_i32 = arith.constant 0 : i32
    %c0_i32_0 = arith.constant 0 : i32
    %c0_i32_1 = arith.constant 0 : i32
    return %c0_i32, %c0_i32_0 : i32, i32
  }
}

</mosaic_0001>

<llo_original>
// kernel: genre_classifier_forward.1
$region0: #{genre_classifier_forward.1}
  #allocation0 [shape = 'u32[]', space=smem, size = 0x4, offset = 0x4, fixed_abs, tag = 'smem constant byte address 0x4 - core index']
  #allocation1 [shape = 'u32[144,128]{1,0:T(1,128)}', space=vmem, size = 0x12000, scoped, tag = 'internal scratch']
  #allocation2 [shape = 'f32[128,512]{1,0:T(8,128)}', space=vmem, size = 0x40000, scoped, tag = 'scratch operand']
  #allocation3 [shape = 'bf16[128,128]{1,0:T(16,128)(2,1)}', space=vmem, size = 0x8000, scoped, tag = 'scratch operand']
  #allocation4 [shape = 'f32[128,512]{1,0:T(8,128)}', space=vmem, size = 0x40000, scoped, tag = 'scratch operand']
  #allocation5 [shape = 'f32[16,128]{1,0:T(8,128)}', space=vmem, size = 0x2000, scoped, tag = 'scratch operand']
  #allocation6 [shape = 'f32[16,128]{1,0:T(8,128)}', space=vmem, size = 0x2000, scoped, tag = 'scratch operand']
  #allocation7 [shape = 'f32[16,128]{1,0:T(8,128)}', space=vmem, size = 0x2000, scoped, tag = 'scratch operand']
  #allocation8 [shape = 'f32[16,128]{1,0:T(8,128)}', space=vmem, size = 0x2000, scoped, tag = 'scratch operand']
  #allocation9 [shape = 's32[1]{0}', space=sflag, size = 0x4, scoped, tag = 'scoped memory for genre_classifier_forward.1']
  #allocation10 [shape = 's32[1]{0:T(128)S(6)}', space=smem, size = 0x200, scoped, tag = 'prefetched SMEM operand 0']
  %s0 = inlined_call_operand.<no memory space> [shape: s32[1], index: 0, kind: input, shape index: {}]
  %s1 = inlined_call_operand.vmem [shape: bf16[128,64], index: 1, kind: input, shape index: {}]
  %s2 = inlined_call_operand.vmem [shape: bf16[64,512], index: 2, kind: input, shape index: {}]
  %s3 = inlined_call_operand.vmem [shape: bf16[128,512], index: 3, kind: input, shape index: {}]
  %s4 = inlined_call_operand.vmem [shape: f32[1,512], index: 4, kind: input, shape index: {}]
  %s5 = inlined_call_operand.vmem [shape: bf16[128,512], index: 5, kind: input, shape index: {}]
  %s6 = inlined_call_operand.vmem [shape: bf16[128,512], index: 6, kind: input, shape index: {}]
  %s7 = inlined_call_operand.vmem [shape: f32[1,512], index: 7, kind: input, shape index: {}]
  %s8 = inlined_call_operand.vmem [shape: bf16[128,5], index: 8, kind: input, shape index: {}]
  %s9 = inlined_call_operand.vmem [shape: f32[1,5], index: 9, kind: input, shape index: {}]
  %s10 = inlined_call_operand.vmem [shape: f32[16,5], index: 10, kind: output, shape index: {}]
  %s11 = sld [smem:[#allocation0]]
  $region54: #{genre_classifier_forward.1} parent=0
    _
  %s13 = ssub.s32 1, %s11
  %s14 = scalar_select 0, %s13, %s11
  %15 = sst [smem:[#allocation10]] %s0
  // Predicated region
  $region2: #{genre_classifier_forward.1} parent=0 // pred_check
    _
  $region3: #{genre_classifier_forward.1} parent=0 // pred_check_branch
    %17 = sbr.rel (0) target = $region5
  $region4: #{genre_classifier_forward.1} parent=0 // pred_region
    _
  $region5: #{genre_classifier_forward.1} parent=0 // pred_fallthru
    _
  // Predicated region
  $region6: #{genre_classifier_forward.1} parent=0 // pred_check
    _
  $region7: #{genre_classifier_forward.1} parent=0 // pred_check_branch
    %19 = sbr.rel (0) target = $region9
  $region8: #{genre_classifier_forward.1} parent=0 // pred_region
    _
  $region9: #{genre_classifier_forward.1} parent=0 // pred_fallthru
    _
  // Predicated region
  $region10: #{genre_classifier_forward.1} parent=0 // pred_check
    _
  $region11: #{genre_classifier_forward.1} parent=0 // pred_check_branch
    %21 = sbr.rel (0) target = $region13
  $region12: #{genre_classifier_forward.1} parent=0 // pred_region
    _
  $region13: #{genre_classifier_forward.1} parent=0 // pred_fallthru
    _
  // Predicated region
  $region14: #{genre_classifier_forward.1} parent=0 // pred_check
    _
  $region15: #{genre_classifier_forward.1} parent=0 // pred_check_branch
    %23 = sbr.rel (0) target = $region17
  $region16: #{genre_classifier_forward.1} parent=0 // pred_region
    _
  $region17: #{genre_classifier_forward.1} parent=0 // pred_fallthru
    _
  // Predicated region
  $region18: #{genre_classifier_forward.1} parent=0 // pred_check
    _
  $region19: #{genre_classifier_forward.1} parent=0 // pred_check_branch
    %25 = sbr.rel (0) target = $region21
  $region20: #{genre_classifier_forward.1} parent=0 // pred_region
    _
  $region21: #{genre_classifier_forward.1} parent=0 // pred_fallthru
    _
  // Predicated region
  $region22: #{genre_classifier_forward.1} parent=0 // pred_check
    _
  $region23: #{genre_classifier_forward.1} parent=0 // pred_check_branch
    %27 = sbr.rel (0) target = $region25
  $region24: #{genre_classifier_forward.1} parent=0 // pred_region
    _
  $region25: #{genre_classifier_forward.1} parent=0 // pred_fallthru
    _
  // Predicated region
  $region26: #{genre_classifier_forward.1} parent=0 // pred_check
    _
  $region27: #{genre_classifier_forward.1} parent=0 // pred_check_branch
    %29 = sbr.rel (0) target = $region29
  $region28: #{genre_classifier_forward.1} parent=0 // pred_region
    _
  $region29: #{genre_classifier_forward.1} parent=0 // pred_fallthru
    _
  // Predicated region
  $region30: #{genre_classifier_forward.1} parent=0 // pred_check
    _
  $region31: #{genre_classifier_forward.1} parent=0 // pred_check_branch
    %31 = sbr.rel (0) target = $region33
  $region32: #{genre_classifier_forward.1} parent=0 // pred_region
    _
  $region33: #{genre_classifier_forward.1} parent=0 // pred_fallthru
    _
  // Predicated region
  $region34: #{genre_classifier_forward.1} parent=0 // pred_check
    _
  $region35: #{genre_classifier_forward.1} parent=0 // pred_check_branch
    %33 = sbr.rel (0) target = $region37
  $region36: #{genre_classifier_forward.1} parent=0 // pred_region
    _
  $region37: #{genre_classifier_forward.1} parent=0 // pred_fallthru
    _
  %s35 = smul.u32 0, 8
  %s36 = sld [smem:[#allocation10]]
  %p37 = scmp.eq.s32.totalorder 0, 0
  // Predicated region
  $region38: #{genre_classifier_forward.1} parent=0 // pred_check
    %p38 = pneg %p37
  $region39: #{genre_classifier_forward.1} parent=0 // pred_check_branch
    %40 = sbr.rel (%p38) target = $region41
  $region40: #{genre_classifier_forward.1} parent=0 // pred_region
    %41 = vst [vmem:[#allocation5] sm:$0xff] 0.0
    %42 = vst [vmem:[#allocation5 + $0x8] sm:$0xff] 0.0
    %43 = vst [vmem:[#allocation6] sm:$0xff] 0.0
    %44 = vst [vmem:[#allocation6 + $0x8] sm:$0xff] 0.0
    %45 = vst [vmem:[#allocation7] sm:$0xff] 0.0
    %46 = vst [vmem:[#allocation7 + $0x8] sm:$0xff] 0.0
    %47 = vst [vmem:[#allocation8] sm:$0xff] 0.0
    %48 = vst [vmem:[#allocation8 + $0x8] sm:$0xff] 0.0
  $region41: #{genre_classifier_forward.1} parent=0 // pred_fallthru
    _
  %v49 = vld [vmem:[%s1] sm:$0xf]
  %v50 = vld [vmem:[%s1 + $0x4] sm:$0xf]
  %v51 = vld [vmem:[%s1 + $0x8] sm:$0xf]
  %v52 = vld [vmem:[%s1 + $0xc] sm:$0xf]
  %v53 = vld [vmem:[%s1 + $0x10] sm:$0xf]
  %v54 = vld [vmem:[%s1 + $0x14] sm:$0xf]
  %v55 = vld [vmem:[%s1 + $0x18] sm:$0xf]
  %v56 = vld [vmem:[%s1 + $0x1c] sm:$0xf]
  %v57 = vld [vmem:[%s1 + $0x20] sm:$0xf]
  %v58 = vld [vmem:[%s1 + $0x24] sm:$0xf]
  %v59 = vld [vmem:[%s1 + $0x28] sm:$0xf]
  %v60 = vld [vmem:[%s1 + $0x2c] sm:$0xf]
  %v61 = vld [vmem:[%s1 + $0x30] sm:$0xf]
  %v62 = vld [vmem:[%s1 + $0x34] sm:$0xf]
  %v63 = vld [vmem:[%s1 + $0x38] sm:$0xf]
  %v64 = vld [vmem:[%s1 + $0x3c] sm:$0xf]
  %v65 = vld [vmem:[%s2] sm:$0xff]
  %v66 = vld [vmem:[%s2 + $0x8] sm:$0xff]
  %v67 = vld [vmem:[%s2 + $0x10] sm:$0xff]
  %v68 = vld [vmem:[%s2 + $0x18] sm:$0xff]
  %v69 = vld [vmem:[%s2 + $0x20] sm:$0xff]
  %v70 = vld [vmem:[%s2 + $0x28] sm:$0xff]
  %v71 = vld [vmem:[%s2 + $0x30] sm:$0xff]
  %v72 = vld [vmem:[%s2 + $0x38] sm:$0xff]
  %v73 = vld [vmem:[%s2 + $0x40] sm:$0xff]
  %v74 = vld [vmem:[%s2 + $0x48] sm:$0xff]
  %v75 = vld [vmem:[%s2 + $0x50] sm:$0xff]
  %v76 = vld [vmem:[%s2 + $0x58] sm:$0xff]
  %v77 = vld [vmem:[%s2 + $0x60] sm:$0xff]
  %v78 = vld [vmem:[%s2 + $0x68] sm:$0xff]
  %v79 = vld [vmem:[%s2 + $0x70] sm:$0xff]
  %v80 = vld [vmem:[%s2 + $0x78] sm:$0xff]
  %v81 = vld [vmem:[%s4] sm:$0xf]
  %v83 = vlaneseq
  %v84 = vshrl.u32 %v83, 7
  %v85 = vsub.s32 0, %v84
  %v86 = vrot.slane %v81, %v85
  %v87 = vlaneseq
  %v88 = vshrl.u32 %v87, 7
  %v89 = vsub.s32 1, %v88
  %v90 = vrot.slane %v81, %v89
  %v91 = vlaneseq
  %v92 = vshrl.u32 %v91, 7
  %v93 = vsub.s32 2, %v92
  %v94 = vrot.slane %v81, %v93
  %v95 = vlaneseq
  %v96 = vshrl.u32 %v95, 7
  %v97 = vsub.s32 3, %v96
  %v98 = vrot.slane %v81, %v97
  %v119 = vunpack.c.l.b16 %v49
  %v120 = vunpack.c.l.b16 %v50
  %v121 = vunpack.c.l.b16 %v51
  %v122 = vunpack.c.l.b16 %v52
  %v123 = vunpack.c.l.b16 %v53
  %v124 = vunpack.c.l.b16 %v54
  %v125 = vunpack.c.l.b16 %v55
  %v126 = vunpack.c.l.b16 %v56
  %v127 = vunpack.c.l.b16 %v57
  %v128 = vunpack.c.l.b16 %v58
  %v129 = vunpack.c.l.b16 %v59
  %v130 = vunpack.c.l.b16 %v60
  %v131 = vunpack.c.l.b16 %v61
  %v132 = vunpack.c.l.b16 %v62
  %v133 = vunpack.c.l.b16 %v63
  %v134 = vunpack.c.l.b16 %v64
  %v135 = vpack.c.b16 %v120, %v119
  %v136 = vpack.c.b16 %v122, %v121
  %v137 = vpack.c.b16 %v124, %v123
  %v138 = vpack.c.b16 %v126, %v125
  %v139 = vpack.c.b16 %v128, %v127
  %v140 = vpack.c.b16 %v130, %v129
  %v141 = vpack.c.b16 %v132, %v131
  %v142 = vpack.c.b16 %v134, %v133
  %v159 = vunpack.c.l.b16 %v65
  %v160 = vunpack.c.h.b16 %v65
  %v161 = vunpack.c.l.b16 %v66
  %v162 = vunpack.c.h.b16 %v66
  %v163 = vunpack.c.l.b16 %v67
  %v164 = vunpack.c.h.b16 %v67
  %v165 = vunpack.c.l.b16 %v68
  %v166 = vunpack.c.h.b16 %v68
  %v167 = vunpack.c.l.b16 %v69
  %v168 = vunpack.c.h.b16 %v69
  %v169 = vunpack.c.l.b16 %v70
  %v170 = vunpack.c.h.b16 %v70
  %v171 = vunpack.c.l.b16 %v71
  %v172 = vunpack.c.h.b16 %v71
  %v173 = vunpack.c.l.b16 %v72
  %v174 = vunpack.c.h.b16 %v72
  %v175 = vunpack.c.l.b16 %v73
  %v176 = vunpack.c.h.b16 %v73
  %v177 = vunpack.c.l.b16 %v74
  %v178 = vunpack.c.h.b16 %v74
  %v179 = vunpack.c.l.b16 %v75
  %v180 = vunpack.c.h.b16 %v75
  %v181 = vunpack.c.l.b16 %v76
  %v182 = vunpack.c.h.b16 %v76
  %v183 = vunpack.c.l.b16 %v77
  %v184 = vunpack.c.h.b16 %v77
  %v185 = vunpack.c.l.b16 %v78
  %v186 = vunpack.c.h.b16 %v78
  %v187 = vunpack.c.l.b16 %v79
  %v188 = vunpack.c.h.b16 %v79
  %v189 = vunpack.c.l.b16 %v80
  %v190 = vunpack.c.h.b16 %v80
  %v191 = vpack.c.b16 %v163, %v159
  %v192 = vpack.c.b16 %v164, %v160
  %v193 = vpack.c.b16 %v165, %v161
  %v194 = vpack.c.b16 %v166, %v162
  %v195 = vpack.c.b16 %v171, %v167
  %v196 = vpack.c.b16 %v172, %v168
  %v197 = vpack.c.b16 %v173, %v169
  %v198 = vpack.c.b16 %v174, %v170
  %v199 = vpack.c.b16 %v179, %v175
  %v200 = vpack.c.b16 %v180, %v176
  %v201 = vpack.c.b16 %v181, %v177
  %v202 = vpack.c.b16 %v182, %v178
  %v203 = vpack.c.b16 %v187, %v183
  %v204 = vpack.c.b16 %v188, %v184
  %v205 = vpack.c.b16 %v189, %v185
  %v206 = vpack.c.b16 %v190, %v186
  %vm223 = vcmask 523264
  %v225 = vsel %vm223, %v135, 0
  %v228 = vsel %vm223, %v136, 0
  %v231 = vsel %vm223, %v137, 0
  %v234 = vsel %vm223, %v138, 0
  %v237 = vsel %vm223, %v139, 0
  %v240 = vsel %vm223, %v140, 0
  %v243 = vsel %vm223, %v141, 0
  %v246 = vsel %vm223, %v142, 0
  %248 = vmatprep.subr.bf16.mxu0 %v192
  %249 = vmatpush1.bf16.msra.mxu0 %v191
  %250 = vmatprep.subr.bf16.mxu0 %v196
  %251 = vmatpush1.bf16.msra.mxu0 %v195
  %252 = vmatprep.subr.bf16.mxu0 %v200
  %253 = vmatpush1.bf16.msra.mxu0 %v199
  %254 = vmatprep.subr.bf16.mxu0 %v204
  %255 = vmatpush1.bf16.msra.mxu0 %v203
  %256 = vmatprep.subr.bf16.mxu0 0
  %257 = vmatpush1.bf16.msra.mxu0 0
  %258 = vmatprep.subr.bf16.mxu0 0
  %259 = vmatpush1.bf16.msra.mxu0 0
  %260 = vmatprep.subr.bf16.mxu0 0
  %261 = vmatpush1.bf16.msra.mxu0 0
  %262 = vmatprep.subr.bf16.mxu0 0
  %263 = vmatpush1.bf16.msra.mxu0 0
  %264 = vmatprep.subr.bf16.mxu0 0
  %265 = vmatpush1.bf16.msra.mxu0 0
  %266 = vmatprep.subr.bf16.mxu0 0
  %267 = vmatpush1.bf16.msra.mxu0 0
  %268 = vmatprep.subr.bf16.mxu0 0
  %269 = vmatpush1.bf16.msra.mxu0 0
  %270 = vmatprep.subr.bf16.mxu0 0
  %271 = vmatpush1.bf16.msra.mxu0 0
  %272 = vmatprep.subr.bf16.mxu0 0
  %273 = vmatpush1.bf16.msra.mxu0 0
  %274 = vmatprep.subr.bf16.mxu0 0
  %275 = vmatpush1.bf16.msra.mxu0 0
  %276 = vmatprep.subr.bf16.mxu0 0
  %277 = vmatpush1.bf16.msra.mxu0 0
  %278 = vmatprep.subr.bf16.mxu0 0
  %279 = vmatpush1.bf16.msra.mxu0 0
  %280 = vmatprep.mubr.bf16.mxu0 0
  %281 = vmatmul.mubr.bf16.gmra.mrb[0].mxu0 %v225
  %v282 = vpop.f32.mrb[0].mxu0
  %v283 = vadd.f32 %v86, %v282
  %v284 = vpop.f32.mrb[0].mxu0
  %v285 = vadd.f32 %v90, %v284
  %v286 = vpop.f32.mrb[0].mxu0
  %v287 = vadd.f32 %v86, %v286
  %v288 = vpop.f32.mrb[0].mxu0
  %v289 = vadd.f32 %v90, %v288
  %290 = vmatprep.mubr.bf16.mxu0 0
  %291 = vmatmul.mubr.bf16.gmra.mrb[0].mxu0 %v228
  %v292 = vpop.f32.mrb[0].mxu0
  %v293 = vadd.f32 %v86, %v292
  %v294 = vpop.f32.mrb[0].mxu0
  %v295 = vadd.f32 %v90, %v294
  %v296 = vpop.f32.mrb[0].mxu0
  %v297 = vadd.f32 %v86, %v296
  %v298 = vpop.f32.mrb[0].mxu0
  %v299 = vadd.f32 %v90, %v298
  %300 = vmatprep.mubr.bf16.mxu0 0
  %301 = vmatmul.mubr.bf16.gmra.mrb[0].mxu0 %v231
  %v302 = vpop.f32.mrb[0].mxu0
  %v303 = vadd.f32 %v86, %v302
  %v304 = vpop.f32.mrb[0].mxu0
  %v305 = vadd.f32 %v90, %v304
  %v306 = vpop.f32.mrb[0].mxu0
  %v307 = vadd.f32 %v86, %v306
  %v308 = vpop.f32.mrb[0].mxu0
  %v309 = vadd.f32 %v90, %v308
  %310 = vmatprep.mubr.bf16.mxu0 0
  %311 = vmatmul.mubr.bf16.gmra.mrb[0].mxu0 %v234
  %v312 = vpop.f32.mrb[0].mxu0
  %v313 = vadd.f32 %v86, %v312
  %v314 = vpop.f32.mrb[0].mxu0
  %v315 = vadd.f32 %v90, %v314
  %v316 = vpop.f32.mrb[0].mxu0
  %v317 = vadd.f32 %v86, %v316
  %v318 = vpop.f32.mrb[0].mxu0
  %v319 = vadd.f32 %v90, %v318
  %320 = vmatprep.mubr.bf16.mxu0 0
  %321 = vmatmul.mubr.bf16.gmra.mrb[0].mxu0 %v237
  %v322 = vpop.f32.mrb[0].mxu0
  %v323 = vadd.f32 %v86, %v322
  %v324 = vpop.f32.mrb[0].mxu0
  %v325 = vadd.f32 %v90, %v324
  %v326 = vpop.f32.mrb[0].mxu0
  %v327 = vadd.f32 %v86, %v326
  %v328 = vpop.f32.mrb[0].mxu0
  %v329 = vadd.f32 %v90, %v328
  %330 = vmatprep.mubr.bf16.mxu0 0
  %331 = vmatmul.mubr.bf16.gmra.mrb[0].mxu0 %v240
  %v332 = vpop.f32.mrb[0].mxu0
  %v333 = vadd.f32 %v86, %v332
  %v334 = vpop.f32.mrb[0].mxu0
  %v335 = vadd.f32 %v90, %v334
  %v336 = vpop.f32.mrb[0].mxu0
  %v337 = vadd.f32 %v86, %v336
  %v338 = vpop.f32.mrb[0].mxu0
  %v339 = vadd.f32 %v90, %v338
  %340 = vmatprep.mubr.bf16.mxu0 0
  %341 = vmatmul.mubr.bf16.gmra.mrb[0].mxu0 %v243
  %v342 = vpop.f32.mrb[0].mxu0
  %v343 = vadd.f32 %v86, %v342
  %v344 = vpop.f32.mrb[0].mxu0
  %v345 = vadd.f32 %v90, %v344
  %v346 = vpop.f32.mrb[0].mxu0
  %v347 = vadd.f32 %v86, %v346
  %v348 = vpop.f32.mrb[0].mxu0
  %v349 = vadd.f32 %v90, %v348
  %350 = vmatprep.mubr.bf16.mxu0 0
  %351 = vmatmul.mubr.bf16.gmra.mrb[0].mxu0 %v246
  %v352 = vpop.f32.mrb[0].mxu0
  %v353 = vadd.f32 %v86, %v352
  %v354 = vpop.f32.mrb[0].mxu0
  %v355 = vadd.f32 %v90, %v354
  %v356 = vpop.f32.mrb[0].mxu0
  %v357 = vadd.f32 %v86, %v356
  %v358 = vpop.f32.mrb[0].mxu0
  %v359 = vadd.f32 %v90, %v358
  %360 = vdwg.mxu0
  %361 = vmatprep.subr.bf16.mxu0 %v194
  %362 = vmatpush1.bf16.msra.mxu0 %v193
  %363 = vmatprep.subr.bf16.mxu0 %v198
  %364 = vmatpush1.bf16.msra.mxu0 %v197
  %365 = vmatprep.subr.bf16.mxu0 %v202
  %366 = vmatpush1.bf16.msra.mxu0 %v201
  %367 = vmatprep.subr.bf16.mxu0 %v206
  %368 = vmatpush1.bf16.msra.mxu0 %v205
  %369 = vmatprep.subr.bf16.mxu0 0
  %370 = vmatpush1.bf16.msra.mxu0 0
  %371 = vmatprep.subr.bf16.mxu0 0
  %372 = vmatpush1.bf16.msra.mxu0 0
  %373 = vmatprep.subr.bf16.mxu0 0
  %374 = vmatpush1.bf16.msra.mxu0 0
  %375 = vmatprep.subr.bf16.mxu0 0
  %376 = vmatpush1.bf16.msra.mxu0 0
  %377 = vmatprep.subr.bf16.mxu0 0
  %378 = vmatpush1.bf16.msra.mxu0 0
  %379 = vmatprep.subr.bf16.mxu0 0
  %380 = vmatpush1.bf16.msra.mxu0 0
  %381 = vmatprep.subr.bf16.mxu0 0
  %382 = vmatpush1.bf16.msra.mxu0 0
  %383 = vmatprep.subr.bf16.mxu0 0
  %384 = vmatpush1.bf16.msra.mxu0 0
  %385 = vmatprep.subr.bf16.mxu0 0
  %386 = vmatpush1.bf16.msra.mxu0 0
  %387 = vmatprep.subr.bf16.mxu0 0
  %388 = vmatpush1.bf16.msra.mxu0 0
  %389 = vmatprep.subr.bf16.mxu0 0
  %390 = vmatpush1.bf16.msra.mxu0 0
  %391 = vmatprep.subr.bf16.mxu0 0
  %392 = vmatpush1.bf16.msra.mxu0 0
  %393 = vmatprep.mubr.bf16.mxu0 0
  %394 = vmatmul.mubr.bf16.gmra.mrb[0].mxu0 %v225
  %v395 = vpop.f32.mrb[0].mxu0
  %v396 = vadd.f32 %v94, %v395
  %v397 = vpop.f32.mrb[0].mxu0
  %v398 = vadd.f32 %v98, %v397
  %v399 = vpop.f32.mrb[0].mxu0
  %v400 = vadd.f32 %v94, %v399
  %v401 = vpop.f32.mrb[0].mxu0
  %v402 = vadd.f32 %v98, %v401
  %403 = vmatprep.mubr.bf16.mxu0 0
  %404 = vmatmul.mubr.bf16.gmra.mrb[0].mxu0 %v228
  %v405 = vpop.f32.mrb[0].mxu0
  %v406 = vadd.f32 %v94, %v405
  %v407 = vpop.f32.mrb[0].mxu0
  %v408 = vadd.f32 %v98, %v407
  %v409 = vpop.f32.mrb[0].mxu0
  %v410 = vadd.f32 %v94, %v409
  %v411 = vpop.f32.mrb[0].mxu0
  %v412 = vadd.f32 %v98, %v411
  %413 = vmatprep.mubr.bf16.mxu0 0
  %414 = vmatmul.mubr.bf16.gmra.mrb[0].mxu0 %v231
  %v415 = vpop.f32.mrb[0].mxu0
  %v416 = vadd.f32 %v94, %v415
  %v417 = vpop.f32.mrb[0].mxu0
  %v418 = vadd.f32 %v98, %v417
  %v419 = vpop.f32.mrb[0].mxu0
  %v420 = vadd.f32 %v94, %v419
  %v421 = vpop.f32.mrb[0].mxu0
  %v422 = vadd.f32 %v98, %v421
  %423 = vmatprep.mubr.bf16.mxu0 0
  %424 = vmatmul.mubr.bf16.gmra.mrb[0].mxu0 %v234
  %v425 = vpop.f32.mrb[0].mxu0
  %v426 = vadd.f32 %v94, %v425
  %v427 = vpop.f32.mrb[0].mxu0
  %v428 = vadd.f32 %v98, %v427
  %v429 = vpop.f32.mrb[0].mxu0
  %v430 = vadd.f32 %v94, %v429
  %v431 = vpop.f32.mrb[0].mxu0
  %v432 = vadd.f32 %v98, %v431
  %433 = vmatprep.mubr.bf16.mxu0 0
  %434 = vmatmul.mubr.bf16.gmra.mrb[0].mxu0 %v237
  %v435 = vpop.f32.mrb[0].mxu0
  %v436 = vadd.f32 %v94, %v435
  %v437 = vpop.f32.mrb[0].mxu0
  %v438 = vadd.f32 %v98, %v437
  %v439 = vpop.f32.mrb[0].mxu0
  %v440 = vadd.f32 %v94, %v439
  %v441 = vpop.f32.mrb[0].mxu0
  %v442 = vadd.f32 %v98, %v441
  %443 = vmatprep.mubr.bf16.mxu0 0
  %444 = vmatmul.mubr.bf16.gmra.mrb[0].mxu0 %v240
  %v445 = vpop.f32.mrb[0].mxu0
  %v446 = vadd.f32 %v94, %v445
  %v447 = vpop.f32.mrb[0].mxu0
  %v448 = vadd.f32 %v98, %v447
  %v449 = vpop.f32.mrb[0].mxu0
  %v450 = vadd.f32 %v94, %v449
  %v451 = vpop.f32.mrb[0].mxu0
  %v452 = vadd.f32 %v98, %v451
  %453 = vmatprep.mubr.bf16.mxu0 0
  %454 = vmatmul.mubr.bf16.gmra.mrb[0].mxu0 %v243
  %v455 = vpop.f32.mrb[0].mxu0
  %v456 = vadd.f32 %v94, %v455
  %v457 = vpop.f32.mrb[0].mxu0
  %v458 = vadd.f32 %v98, %v457
  %v459 = vpop.f32.mrb[0].mxu0
  %v460 = vadd.f32 %v94, %v459
  %v461 = vpop.f32.mrb[0].mxu0
  %v462 = vadd.f32 %v98, %v461
  %463 = vmatprep.mubr.bf16.mxu0 0
  %464 = vmatmul.mubr.bf16.gmra.mrb[0].mxu0 %v246
  %v465 = vpop.f32.mrb[0].mxu0
  %v466 = vadd.f32 %v94, %v465
  %v467 = vpop.f32.mrb[0].mxu0
  %v468 = vadd.f32 %v98, %v467
  %v469 = vpop.f32.mrb[0].mxu0
  %v470 = vadd.f32 %v94, %v469
  %v471 = vpop.f32.mrb[0].mxu0
  %v472 = vadd.f32 %v98, %v471
  %473 = vdwg.mxu0
  %474 = vst [vmem:[#allocation2] sm:$0xff] %v283
  %475 = vst [vmem:[#allocation2 + $0x8] sm:$0xff] %v285
  %476 = vst [vmem:[#allocation2 + $0x10] sm:$0xff] %v396
  %477 = vst [vmem:[#allocation2 + $0x18] sm:$0xff] %v398
  %478 = vst [vmem:[#allocation2 + $0x20] sm:$0xff] %v287
  %479 = vst [vmem:[#allocation2 + $0x28] sm:$0xff] %v289
  %480 = vst [vmem:[#allocation2 + $0x30] sm:$0xff] %v400
  %481 = vst [vmem:[#allocation2 + $0x38] sm:$0xff] %v402
  %482 = vst [vmem:[#allocation2 + $0x40] sm:$0xff] %v293
  %483 = vst [vmem:[#allocation2 + $0x48] sm:$0xff] %v295
  %484 = vst [vmem:[#allocation2 + $0x50] sm:$0xff] %v406
  %485 = vst [vmem:[#allocation2 + $0x58] sm:$0xff] %v408
  %486 = vst [vmem:[#allocation2 + $0x60] sm:$0xff] %v297
  %487 = vst [vmem:[#allocation2 + $0x68] sm:$0xff] %v299
  %488 = vst [vmem:[#allocation2 + $0x70] sm:$0xff] %v410
  %489 = vst [vmem:[#allocation2 + $0x78] sm:$0xff] %v412
  %490 = vst [vmem:[#allocation2 + $0x80] sm:$0xff] %v303
  %491 = vst [vmem:[#allocation2 + $0x88] sm:$0xff] %v305
  %492 = vst [vmem:[#allocation2 + $0x90] sm:$0xff] %v416
  %493 = vst [vmem:[#allocation2 + $0x98] sm:$0xff] %v418
  %494 = vst [vmem:[#allocation2 + $0xa0] sm:$0xff] %v307
  %495 = vst [vmem:[#allocation2 + $0xa8] sm:$0xff] %v309
  %496 = vst [vmem:[#allocation2 + $0xb0] sm:$0xff] %v420
  %497 = vst [vmem:[#allocation2 + $0xb8] sm:$0xff] %v422
  %498 = vst [vmem:[#allocation2 + $0xc0] sm:$0xff] %v313
  %499 = vst [vmem:[#allocation2 + $0xc8] sm:$0xff] %v315
  %500 = vst [vmem:[#allocation2 + $0xd0] sm:$0xff] %v426
  %501 = vst [vmem:[#allocation2 + $0xd8] sm:$0xff] %v428
  %502 = vst [vmem:[#allocation2 + $0xe0] sm:$0xff] %v317
  %503 = vst [vmem:[#allocation2 + $0xe8] sm:$0xff] %v319
  %504 = vst [vmem:[#allocation2 + $0xf0] sm:$0xff] %v430
  %505 = vst [vmem:[#allocation2 + $0xf8] sm:$0xff] %v432
  %506 = vst [vmem:[#allocation2 + $0x100] sm:$0xff] %v323
  %507 = vst [vmem:[#allocation2 + $0x108] sm:$0xff] %v325
  %508 = vst [vmem:[#allocation2 + $0x110] sm:$0xff] %v436
  %509 = vst [vmem:[#allocation2 + $0x118] sm:$0xff] %v438
  %510 = vst [vmem:[#allocation2 + $0x120] sm:$0xff] %v327
  %511 = vst [vmem:[#allocation2 + $0x128] sm:$0xff] %v329
  %512 = vst [vmem:[#allocation2 + $0x130] sm:$0xff] %v440
  %513 = vst [vmem:[#allocation2 + $0x138] sm:$0xff] %v442
  %514 = vst [vmem:[#allocation2 + $0x140] sm:$0xff] %v333
  %515 = vst [vmem:[#allocation2 + $0x148] sm:$0xff] %v335
  %516 = vst [vmem:[#allocation2 + $0x150] sm:$0xff] %v446
  %517 = vst [vmem:[#allocation2 + $0x158] sm:$0xff] %v448
  %518 = vst [vmem:[#allocation2 + $0x160] sm:$0xff] %v337
  %519 = vst [vmem:[#allocation2 + $0x168] sm:$0xff] %v339
  %520 = vst [vmem:[#allocation2 + $0x170] sm:$0xff] %v450
  %521 = vst [vmem:[#allocation2 + $0x178] sm:$0xff] %v452
  %522 = vst [vmem:[#allocation2 + $0x180] sm:$0xff] %v343
  %523 = vst [vmem:[#allocation2 + $0x188] sm:$0xff] %v345
  %524 = vst [vmem:[#allocation2 + $0x190] sm:$0xff] %v456
  %525 = vst [vmem:[#allocation2 + $0x198] sm:$0xff] %v458
  %526 = vst [vmem:[#allocation2 + $0x1a0] sm:$0xff] %v347
  %527 = vst [vmem:[#allocation2 + $0x1a8] sm:$0xff] %v349
  %528 = vst [vmem:[#allocation2 + $0x1b0] sm:$0xff] %v460
  %529 = vst [vmem:[#allocation2 + $0x1b8] sm:$0xff] %v462
  %530 = vst [vmem:[#allocation2 + $0x1c0] sm:$0xff] %v353
  %531 = vst [vmem:[#allocation2 + $0x1c8] sm:$0xff] %v355
  %532 = vst [vmem:[#allocation2 + $0x1d0] sm:$0xff] %v466
  %533 = vst [vmem:[#allocation2 + $0x1d8] sm:$0xff] %v468
  %534 = vst [vmem:[#allocation2 + $0x1e0] sm:$0xff] %v357
  %535 = vst [vmem:[#allocation2 + $0x1e8] sm:$0xff] %v359
  %536 = vst [vmem:[#allocation2 + $0x1f0] sm:$0xff] %v470
  %537 = vst [vmem:[#allocation2 + $0x1f8] sm:$0xff] %v472
  %v538 = vld [vmem:[%s3] sm:$0xff]
  %v539 = vld [vmem:[%s3 + $0x8] sm:$0xff]
  %v540 = vld [vmem:[%s3 + $0x10] sm:$0xff]
  %v541 = vld [vmem:[%s3 + $0x18] sm:$0xff]
  %v542 = vld [vmem:[%s3 + $0x20] sm:$0xff]
  %v543 = vld [vmem:[%s3 + $0x28] sm:$0xff]
  %v544 = vld [vmem:[%s3 + $0x30] sm:$0xff]
  %v545 = vld [vmem:[%s3 + $0x38] sm:$0xff]
  %v546 = vld [vmem:[%s3 + $0x40] sm:$0xff]
  %v547 = vld [vmem:[%s3 + $0x48] sm:$0xff]
  %v548 = vld [vmem:[%s3 + $0x50] sm:$0xff]
  %v549 = vld [vmem:[%s3 + $0x58] sm:$0xff]
  %v550 = vld [vmem:[%s3 + $0x60] sm:$0xff]
  %v551 = vld [vmem:[%s3 + $0x68] sm:$0xff]
  %v552 = vld [vmem:[%s3 + $0x70] sm:$0xff]
  %v553 = vld [vmem:[%s3 + $0x78] sm:$0xff]
  %v554 = vld [vmem:[%s3 + $0x80] sm:$0xff]
  %v555 = vld [vmem:[%s3 + $0x88] sm:$0xff]
  %v556 = vld [vmem:[%s3 + $0x90] sm:$0xff]
  %v557 = vld [vmem:[%s3 + $0x98] sm:$0xff]
  %v558 = vld [vmem:[%s3 + $0xa0] sm:$0xff]
  %v559 = vld [vmem:[%s3 + $0xa8] sm:$0xff]
  %v560 = vld [vmem:[%s3 + $0xb0] sm:$0xff]
  %v561 = vld [vmem:[%s3 + $0xb8] sm:$0xff]
  %v562 = vld [vmem:[%s3 + $0xc0] sm:$0xff]
  %v563 = vld [vmem:[%s3 + $0xc8] sm:$0xff]
  %v564 = vld [vmem:[%s3 + $0xd0] sm:$0xff]
  %v565 = vld [vmem:[%s3 + $0xd8] sm:$0xff]
  %v566 = vld [vmem:[%s3 + $0xe0] sm:$0xff]
  %v567 = vld [vmem:[%s3 + $0xe8] sm:$0xff]
  %v568 = vld [vmem:[%s3 + $0xf0] sm:$0xff]
  %v569 = vld [vmem:[%s3 + $0xf8] sm:$0xff]
  %v570 = vld [vmem:[#allocation5] sm:$0xff]
  %v571 = vld [vmem:[#allocation5 + $0x8] sm:$0xff]
  %v572 = vld [vmem:[#allocation6] sm:$0xff]
  %v573 = vld [vmem:[#allocation6 + $0x8] sm:$0xff]
  %s574 = smul.u32 0, 4
  %s575 = smul.addr %s574, 8
  %s576 = scalar_lea.vmem [#allocation2], %s575
  %v577 = vld [vmem:[%s576] sm:$0xff]
  %v578 = vld [vmem:[%s576 + $0x8] sm:$0xff]
  %v579 = vld [vmem:[%s576 + $0x10] sm:$0xff]
  %v580 = vld [vmem:[%s576 + $0x18] sm:$0xff]
  %v581 = vld [vmem:[%s576 + $0x20] sm:$0xff]
  %v582 = vld [vmem:[%s576 + $0x28] sm:$0xff]
  %v583 = vld [vmem:[%s576 + $0x30] sm:$0xff]
  %v584 = vld [vmem:[%s576 + $0x38] sm:$0xff]
  %v585 = vpack.c.bf16 %v571, %v570
  %v618 = vunpack.c.l.b16 %v538
  %v619 = vunpack.c.h.b16 %v538
  %v620 = vunpack.c.l.b16 %v539
  %v621 = vunpack.c.h.b16 %v539
  %v622 = vunpack.c.l.b16 %v540
  %v623 = vunpack.c.h.b16 %v540
  %v624 = vunpack.c.l.b16 %v541
  %v625 = vunpack.c.h.b16 %v541
  %v626 = vunpack.c.l.b16 %v542
  %v627 = vunpack.c.h.b16 %v542
  %v628 = vunpack.c.l.b16 %v543
  %v629 = vunpack.c.h.b16 %v543
  %v630 = vunpack.c.l.b16 %v544
  %v631 = vunpack.c.h.b16 %v544
  %v632 = vunpack.c.l.b16 %v545
  %v633 = vunpack.c.h.b16 %v545
  %v634 = vunpack.c.l.b16 %v546
  %v635 = vunpack.c.h.b16 %v546
  %v636 = vunpack.c.l.b16 %v547
  %v637 = vunpack.c.h.b16 %v547
  %v638 = vunpack.c.l.b16 %v548
  %v639 = vunpack.c.h.b16 %v548
  %v640 = vunpack.c.l.b16 %v549
  %v641 = vunpack.c.h.b16 %v549
  %v642 = vunpack.c.l.b16 %v550
  %v643 = vunpack.c.h.b16 %v550
  %v644 = vunpack.c.l.b16 %v551
  %v645 = vunpack.c.h.b16 %v551
  %v646 = vunpack.c.l.b16 %v552
  %v647 = vunpack.c.h.b16 %v552
  %v648 = vunpack.c.l.b16 %v553
  %v649 = vunpack.c.h.b16 %v553
  %v650 = vunpack.c.l.b16 %v554
  %v651 = vunpack.c.h.b16 %v554
  %v652 = vunpack.c.l.b16 %v555
  %v653 = vunpack.c.h.b16 %v555
  %v654 = vunpack.c.l.b16 %v556
  %v655 = vunpack.c.h.b16 %v556
  %v656 = vunpack.c.l.b16 %v557
  %v657 = vunpack.c.h.b16 %v557
  %v658 = vunpack.c.l.b16 %v558
  %v659 = vunpack.c.h.b16 %v558
  %v660 = vunpack.c.l.b16 %v559
  %v661 = vunpack.c.h.b16 %v559
  %v662 = vunpack.c.l.b16 %v560
  %v663 = vunpack.c.h.b16 %v560
  %v664 = vunpack.c.l.b16 %v561
  %v665 = vunpack.c.h.b16 %v561
  %v666 = vunpack.c.l.b16 %v562
  %v667 = vunpack.c.h.b16 %v562
  %v668 = vunpack.c.l.b16 %v563
  %v669 = vunpack.c.h.b16 %v563
  %v670 = vunpack.c.l.b16 %v564
  %v671 = vunpack.c.h.b16 %v564
  %v672 = vunpack.c.l.b16 %v565
  %v673 = vunpack.c.h.b16 %v565
  %v674 = vunpack.c.l.b16 %v566
  %v675 = vunpack.c.h.b16 %v566
  %v676 = vunpack.c.l.b16 %v567
  %v677 = vunpack.c.h.b16 %v567
  %v678 = vunpack.c.l.b16 %v568
  %v679 = vunpack.c.h.b16 %v568
  %v680 = vunpack.c.l.b16 %v569
  %v681 = vunpack.c.h.b16 %v569
  %v682 = vpack.c.b16 %v622, %v618
  %v683 = vpack.c.b16 %v623, %v619
  %v684 = vpack.c.b16 %v624, %v620
  %v685 = vpack.c.b16 %v625, %v621
  %v686 = vpack.c.b16 %v630, %v626
  %v687 = vpack.c.b16 %v631, %v627
  %v688 = vpack.c.b16 %v632, %v628
  %v689 = vpack.c.b16 %v633, %v629
  %v690 = vpack.c.b16 %v638, %v634
  %v691 = vpack.c.b16 %v639, %v635
  %v692 = vpack.c.b16 %v640, %v636
  %v693 = vpack.c.b16 %v641, %v637
  %v694 = vpack.c.b16 %v646, %v642
  %v695 = vpack.c.b16 %v647, %v643
  %v696 = vpack.c.b16 %v648, %v644
  %v697 = vpack.c.b16 %v649, %v645
  %v698 = vpack.c.b16 %v654, %v650
  %v699 = vpack.c.b16 %v655, %v651
  %v700 = vpack.c.b16 %v656, %v652
  %v701 = vpack.c.b16 %v657, %v653
  %v702 = vpack.c.b16 %v662, %v658
  %v703 = vpack.c.b16 %v663, %v659
  %v704 = vpack.c.b16 %v664, %v660
  %v705 = vpack.c.b16 %v665, %v661
  %v706 = vpack.c.b16 %v670, %v666
  %v707 = vpack.c.b16 %v671, %v667
  %v708 = vpack.c.b16 %v672, %v668
  %v709 = vpack.c.b16 %v673, %v669
  %v710 = vpack.c.b16 %v678, %v674
  %v711 = vpack.c.b16 %v679, %v675
  %v712 = vpack.c.b16 %v680, %v676
  %v713 = vpack.c.b16 %v681, %v677
  %746 = vmatprep.subr.bf16.mxu0 %v683
  %747 = vmatpush1.bf16.msra.mxu0 %v682
  %748 = vmatprep.subr.bf16.mxu0 %v687
  %749 = vmatpush1.bf16.msra.mxu0 %v686
  %750 = vmatprep.subr.bf16.mxu0 %v691
  %751 = vmatpush1.bf16.msra.mxu0 %v690
  %752 = vmatprep.subr.bf16.mxu0 %v695
  %753 = vmatpush1.bf16.msra.mxu0 %v694
  %754 = vmatprep.subr.bf16.mxu0 %v699
  %755 = vmatpush1.bf16.msra.mxu0 %v698
  %756 = vmatprep.subr.bf16.mxu0 %v703
  %757 = vmatpush1.bf16.msra.mxu0 %v702
  %758 = vmatprep.subr.bf16.mxu0 %v707
  %759 = vmatpush1.bf16.msra.mxu0 %v706
  %760 = vmatprep.subr.bf16.mxu0 %v711
  %761 = vmatpush1.bf16.msra.mxu0 %v710
  %762 = vmatprep.subr.bf16.mxu0 0
  %763 = vmatpush1.bf16.msra.mxu0 0
  %764 = vmatprep.subr.bf16.mxu0 0
  %765 = vmatpush1.bf16.msra.mxu0 0
  %766 = vmatprep.subr.bf16.mxu0 0
  %767 = vmatpush1.bf16.msra.mxu0 0
  %768 = vmatprep.subr.bf16.mxu0 0
  %769 = vmatpush1.bf16.msra.mxu0 0
  %770 = vmatprep.subr.bf16.mxu0 0
  %771 = vmatpush1.bf16.msra.mxu0 0
  %772 = vmatprep.subr.bf16.mxu0 0
  %773 = vmatpush1.bf16.msra.mxu0 0
  %774 = vmatprep.subr.bf16.mxu0 0
  %775 = vmatpush1.bf16.msra.mxu0 0
  %776 = vmatprep.subr.bf16.mxu0 0
  %777 = vmatpush1.bf16.msra.mxu0 0
  %778 = vmatprep.mubr.bf16.mxu0 0
  %779 = vmatmul.mubr.bf16.gmra.mrb[0].mxu0 %v585
  %v780 = vpop.f32.mrb[0].mxu0
  %v781 = vadd.f32 0.0, %v780
  %v782 = vpop.f32.mrb[0].mxu0
  %v783 = vadd.f32 0.0, %v782
  %v784 = vpop.f32.mrb[0].mxu0
  %v785 = vadd.f32 0.0, %v784
  %v786 = vpop.f32.mrb[0].mxu0
  %v787 = vadd.f32 0.0, %v786
  %788 = vdwg.mxu0
  %789 = vmatprep.subr.bf16.mxu0 %v685
  %790 = vmatpush1.bf16.msra.mxu0 %v684
  %791 = vmatprep.subr.bf16.mxu0 %v689
  %792 = vmatpush1.bf16.msra.mxu0 %v688
  %793 = vmatprep.subr.bf16.mxu0 %v693
  %794 = vmatpush1.bf16.msra.mxu0 %v692
  %795 = vmatprep.subr.bf16.mxu0 %v697
  %796 = vmatpush1.bf16.msra.mxu0 %v696
  %797 = vmatprep.subr.bf16.mxu0 %v701
  %798 = vmatpush1.bf16.msra.mxu0 %v700
  %799 = vmatprep.subr.bf16.mxu0 %v705
  %800 = vmatpush1.bf16.msra.mxu0 %v704
  %801 = vmatprep.subr.bf16.mxu0 %v709
  %802 = vmatpush1.bf16.msra.mxu0 %v708
  %803 = vmatprep.subr.bf16.mxu0 %v713
  %804 = vmatpush1.bf16.msra.mxu0 %v712
  %805 = vmatprep.subr.bf16.mxu0 0
  %806 = vmatpush1.bf16.msra.mxu0 0
  %807 = vmatprep.subr.bf16.mxu0 0
  %808 = vmatpush1.bf16.msra.mxu0 0
  %809 = vmatprep.subr.bf16.mxu0 0
  %810 = vmatpush1.bf16.msra.mxu0 0
  %811 = vmatprep.subr.bf16.mxu0 0
  %812 = vmatpush1.bf16.msra.mxu0 0
  %813 = vmatprep.subr.bf16.mxu0 0
  %814 = vmatpush1.bf16.msra.mxu0 0
  %815 = vmatprep.subr.bf16.mxu0 0
  %816 = vmatpush1.bf16.msra.mxu0 0
  %817 = vmatprep.subr.bf16.mxu0 0
  %818 = vmatpush1.bf16.msra.mxu0 0
  %819 = vmatprep.subr.bf16.mxu0 0
  %820 = vmatpush1.bf16.msra.mxu0 0
  %821 = vmatprep.mubr.bf16.mxu0 0
  %822 = vmatmul.mubr.bf16.gmra.mrb[0].mxu0 %v585
  %v823 = vpop.f32.mrb[0].mxu0
  %v824 = vadd.f32 0.0, %v823
  %v825 = vpop.f32.mrb[0].mxu0
  %v826 = vadd.f32 0.0, %v825
  %v827 = vpop.f32.mrb[0].mxu0
  %v828 = vadd.f32 0.0, %v827
  %v829 = vpop.f32.mrb[0].mxu0
  %v830 = vadd.f32 0.0, %v829
  %831 = vdwg.mxu0
  %v832 = vadd.f32 %v577, %v781
  %v833 = vadd.f32 %v578, %v783
  %v834 = vadd.f32 %v579, %v824
  %v835 = vadd.f32 %v580, %v826
  %v836 = vadd.f32 %v581, %v785
  %v837 = vadd.f32 %v582, %v787
  %v838 = vadd.f32 %v583, %v828
  %v839 = vadd.f32 %v584, %v830
  %v840 = vxor.u32 %v832, 2147483648
  %v841 = vxor.u32 %v833, 2147483648
  %v842 = vxor.u32 %v834, 2147483648
  %v843 = vxor.u32 %v836, 2147483648
  %v844 = vxor.u32 %v837, 2147483648
  %v845 = vxor.u32 %v838, 2147483648
  %v846 = vmul.f32 %v840, 1.442695
  %v847 = vpow.pop %v846
  %v848 = vmul.f32 %v841, 1.442695
  %v849 = vpow.pop %v848
  %v850 = vmul.f32 %v842, 1.442695
  %v851 = vpow.pop %v850
  %v852 = vmul.f32 %v843, 1.442695
  %v853 = vpow.pop %v852
  %v854 = vmul.f32 %v844, 1.442695
  %v855 = vpow.pop %v854
  %v856 = vmul.f32 %v845, 1.442695
  %v857 = vpow.pop %v856
  %v858 = vadd.f32 %v847, 1.0
  %v859 = vadd.f32 %v849, 1.0
  %v860 = vadd.f32 %v851, 1.0
  %v861 = vadd.f32 %v853, 1.0
  %v862 = vadd.f32 %v855, 1.0
  %v863 = vadd.f32 %v857, 1.0
  %v864 = vrcp.pop %v858
  %v865 = vmul.f32 1.0, %v864
  %v866 = vrcp.pop %v859
  %v867 = vmul.f32 1.0, %v866
  %v868 = vrcp.pop %v860
  %v869 = vmul.f32 1.0, %v868
  %v870 = vrcp.pop %v861
  %v871 = vmul.f32 1.0, %v870
  %v872 = vrcp.pop %v862
  %v873 = vmul.f32 1.0, %v872
  %v874 = vrcp.pop %v863
  %v875 = vmul.f32 1.0, %v874
  %v876 = vtanh.pop %v835
  %v877 = vtanh.pop %v839
  %v878 = vmul.f32 %v867, %v572
  %v879 = vmul.f32 %v873, %v573
  %v880 = vmul.f32 %v865, %v876
  %v881 = vmul.f32 %v871, %v877
  %v882 = vadd.f32 %v878, %v880
  %v883 = vadd.f32 %v879, %v881
  %v884 = vtanh.pop %v882
  %v885 = vtanh.pop %v883
  %v886 = vmul.f32 %v869, %v884
  %v887 = vmul.f32 %v875, %v885
  %p888 = scmp.lt.s32.totalorder %s35, %s36
  %s889 = scalar_select %p888, 1, 0
  %v890 = vstv %s889
  %vm891 = vcmp.eq.s32.totalorder %v890, 1
  %v892 = vsel %vm891, %v886, %v570
  %v893 = vsel %vm891, %v887, %v571
  %v894 = vsel %vm891, %v882, %v572
  %v895 = vsel %vm891, %v883, %v573
  %v896 = vpack.c.bf16 %v893, %v892
  %897 = vst [vmem:[#allocation3] sm:$0xff] %v896
  %s898 = smul.u32 2, 4
  %s899 = smul.addr %s898, 8
  %s900 = scalar_lea.vmem [#allocation2], %s899
  %v901 = vld [vmem:[%s900] sm:$0xff]
  %v902 = vld [vmem:[%s900 + $0x8] sm:$0xff]
  %v903 = vld [vmem:[%s900 + $0x10] sm:$0xff]
  %v904 = vld [vmem:[%s900 + $0x18] sm:$0xff]
  %v905 = vld [vmem:[%s900 + $0x20] sm:$0xff]
  %v906 = vld [vmem:[%s900 + $0x28] sm:$0xff]
  %v907 = vld [vmem:[%s900 + $0x30] sm:$0xff]
  %v908 = vld [vmem:[%s900 + $0x38] sm:$0xff]
  %909 = vmatprep.subr.bf16.mxu0 %v683
  %910 = vmatpush1.bf16.msra.mxu0 %v682
  %911 = vmatprep.subr.bf16.mxu0 %v687
  %912 = vmatpush1.bf16.msra.mxu0 %v686
  %913 = vmatprep.subr.bf16.mxu0 %v691
  %914 = vmatpush1.bf16.msra.mxu0 %v690
  %915 = vmatprep.subr.bf16.mxu0 %v695
  %916 = vmatpush1.bf16.msra.mxu0 %v694
  %917 = vmatprep.subr.bf16.mxu0 %v699
  %918 = vmatpush1.bf16.msra.mxu0 %v698
  %919 = vmatprep.subr.bf16.mxu0 %v703
  %920 = vmatpush1.bf16.msra.mxu0 %v702
  %921 = vmatprep.subr.bf16.mxu0 %v707
  %922 = vmatpush1.bf16.msra.mxu0 %v706
  %923 = vmatprep.subr.bf16.mxu0 %v711
  %924 = vmatpush1.bf16.msra.mxu0 %v710
  %925 = vmatprep.subr.bf16.mxu0 0
  %926 = vmatpush1.bf16.msra.mxu0 0
  %927 = vmatprep.subr.bf16.mxu0 0
  %928 = vmatpush1.bf16.msra.mxu0 0
  %929 = vmatprep.subr.bf16.mxu0 0
  %930 = vmatpush1.bf16.msra.mxu0 0
  %931 = vmatprep.subr.bf16.mxu0 0
  %932 = vmatpush1.bf16.msra.mxu0 0
  %933 = vmatprep.subr.bf16.mxu0 0
  %934 = vmatpush1.bf16.msra.mxu0 0
  %935 = vmatprep.subr.bf16.mxu0 0
  %936 = vmatpush1.bf16.msra.mxu0 0
  %937 = vmatprep.subr.bf16.mxu0 0
  %938 = vmatpush1.bf16.msra.mxu0 0
  %939 = vmatprep.subr.bf16.mxu0 0
  %940 = vmatpush1.bf16.msra.mxu0 0
  %941 = vmatprep.mubr.bf16.mxu0 0
  %942 = vmatmul.mubr.bf16.gmra.mrb[0].mxu0 %v896
  %v943 = vpop.f32.mrb[0].mxu0
  %v944 = vadd.f32 0.0, %v943
  %v945 = vpop.f32.mrb[0].mxu0
  %v946 = vadd.f32 0.0, %v945
  %v947 = vpop.f32.mrb[0].mxu0
  %v948 = vadd.f32 0.0, %v947
  %v949 = vpop.f32.mrb[0].mxu0
  %v950 = vadd.f32 0.0, %v949
  %951 = vdwg.mxu0
  %952 = vmatprep.subr.bf16.mxu0 %v685
  %953 = vmatpush1.bf16.msra.mxu0 %v684
  %954 = vmatprep.subr.bf16.mxu0 %v689
  %955 = vmatpush1.bf16.msra.mxu0 %v688
  %956 = vmatprep.subr.bf16.mxu0 %v693
  %957 = vmatpush1.bf16.msra.mxu0 %v692
  %958 = vmatprep.subr.bf16.mxu0 %v697
  %959 = vmatpush1.bf16.msra.mxu0 %v696
  %960 = vmatprep.subr.bf16.mxu0 %v701
  %961 = vmatpush1.bf16.msra.mxu0 %v700
  %962 = vmatprep.subr.bf16.mxu0 %v705
  %963 = vmatpush1.bf16.msra.mxu0 %v704
  %964 = vmatprep.subr.bf16.mxu0 %v709
  %965 = vmatpush1.bf16.msra.mxu0 %v708
  %966 = vmatprep.subr.bf16.mxu0 %v713
  %967 = vmatpush1.bf16.msra.mxu0 %v712
  %968 = vmatprep.subr.bf16.mxu0 0
  %969 = vmatpush1.bf16.msra.mxu0 0
  %970 = vmatprep.subr.bf16.mxu0 0
  %971 = vmatpush1.bf16.msra.mxu0 0
  %972 = vmatprep.subr.bf16.mxu0 0
  %973 = vmatpush1.bf16.msra.mxu0 0
  %974 = vmatprep.subr.bf16.mxu0 0
  %975 = vmatpush1.bf16.msra.mxu0 0
  %976 = vmatprep.subr.bf16.mxu0 0
  %977 = vmatpush1.bf16.msra.mxu0 0
  %978 = vmatprep.subr.bf16.mxu0 0
  %979 = vmatpush1.bf16.msra.mxu0 0
  %980 = vmatprep.subr.bf16.mxu0 0
  %981 = vmatpush1.bf16.msra.mxu0 0
  %982 = vmatprep.subr.bf16.mxu0 0
  %983 = vmatpush1.bf16.msra.mxu0 0
  %984 = vmatprep.mubr.bf16.mxu0 0
  %985 = vmatmul.mubr.bf16.gmra.mrb[0].mxu0 %v896
  %v986 = vpop.f32.mrb[0].mxu0
  %v987 = vadd.f32 0.0, %v986
  %v988 = vpop.f32.mrb[0].mxu0
  %v989 = vadd.f32 0.0, %v988
  %v990 = vpop.f32.mrb[0].mxu0
  %v991 = vadd.f32 0.0, %v990
  %v992 = vpop.f32.mrb[0].mxu0
  %v993 = vadd.f32 0.0, %v992
  %994 = vdwg.mxu0
  %v995 = vadd.f32 %v901, %v944
  %v996 = vadd.f32 %v902, %v946
  %v997 = vadd.f32 %v903, %v987
  %v998 = vadd.f32 %v904, %v989
  %v999 = vadd.f32 %v905, %v948
  %v1000 = vadd.f32 %v906, %v950
  %v1001 = vadd.f32 %v907, %v991
  %v1002 = vadd.f32 %v908, %v993
  %v1003 = vxor.u32 %v995, 2147483648
  %v1004 = vxor.u32 %v996, 2147483648
  %v1005 = vxor.u32 %v997, 2147483648
  %v1006 = vxor.u32 %v999, 2147483648
  %v1007 = vxor.u32 %v1000, 2147483648
  %v1008 = vxor.u32 %v1001, 2147483648
  %v1009 = vmul.f32 %v1003, 1.442695
  %v1010 = vpow.pop %v1009
  %v1011 = vmul.f32 %v1004, 1.442695
  %v1012 = vpow.pop %v1011
  %v1013 = vmul.f32 %v1005, 1.442695
  %v1014 = vpow.pop %v1013
  %v1015 = vmul.f32 %v1006, 1.442695
  %v1016 = vpow.pop %v1015
  %v1017 = vmul.f32 %v1007, 1.442695
  %v1018 = vpow.pop %v1017
  %v1019 = vmul.f32 %v1008, 1.442695
  %v1020 = vpow.pop %v1019
  %v1021 = vadd.f32 %v1010, 1.0
  %v1022 = vadd.f32 %v1012, 1.0
  %v1023 = vadd.f32 %v1014, 1.0
  %v1024 = vadd.f32 %v1016, 1.0
  %v1025 = vadd.f32 %v1018, 1.0
  %v1026 = vadd.f32 %v1020, 1.0
  %v1027 = vrcp.pop %v1021
  %v1028 = vmul.f32 1.0, %v1027
  %v1029 = vrcp.pop %v1022
  %v1030 = vmul.f32 1.0, %v1029
  %v1031 = vrcp.pop %v1023
  %v1032 = vmul.f32 1.0, %v1031
  %v1033 = vrcp.pop %v1024
  %v1034 = vmul.f32 1.0, %v1033
  %v1035 = vrcp.pop %v1025
  %v1036 = vmul.f32 1.0, %v1035
  %v1037 = vrcp.pop %v1026
  %v1038 = vmul.f32 1.0, %v1037
  %v1039 = vtanh.pop %v998
  %v1040 = vtanh.pop %v1002
  %v1041 = vmul.f32 %v1030, %v894
  %v1042 = vmul.f32 %v1036, %v895
  %v1043 = vmul.f32 %v1028, %v1039
  %v1044 = vmul.f32 %v1034, %v1040
  %v1045 = vadd.f32 %v1041, %v1043
  %v1046 = vadd.f32 %v1042, %v1044
  %v1047 = vtanh.pop %v1045
  %v1048 = vtanh.pop %v1046
  %v1049 = vmul.f32 %v1032, %v1047
  %v1050 = vmul.f32 %v1038, %v1048
  %s1051 = sadd.s32 %s35, 1
  %p1052 = scmp.lt.s32.totalorder %s1051, %s36
  %s1053 = scalar_select %p1052, 1, 0
  %v1054 = vstv %s1053
  %vm1055 = vcmp.eq.s32.totalorder %v1054, 1
  %v1056 = vsel %vm1055, %v1049, %v892
  %v1057 = vsel %vm1055, %v1050, %v893
  %v1058 = vsel %vm1055, %v1045, %v894
  %v1059 = vsel %vm1055, %v1046, %v895
  %v1060 = vpack.c.bf16 %v1057, %v1056
  %s1061 = scalar_lea.vmem [#allocation3], 8
  %1062 = vst [vmem:[%s1061] sm:$0xff] %v1060
  %s1063 = smul.u32 4, 4
  %s1064 = smul.addr %s1063, 8
  %s1065 = scalar_lea.vmem [#allocation2], %s1064
  %v1066 = vld [vmem:[%s1065] sm:$0xff]
  %v1067 = vld [vmem:[%s1065 + $0x8] sm:$0xff]
  %v1068 = vld [vmem:[%s1065 + $0x10] sm:$0xff]
  %v1069 = vld [vmem:[%s1065 + $0x18] sm:$0xff]
  %v1070 = vld [vmem:[%s1065 + $0x20] sm:$0xff]
  %v1071 = vld [vmem:[%s1065 + $0x28] sm:$0xff]
  %v1072 = vld [vmem:[%s1065 + $0x30] sm:$0xff]
  %v1073 = vld [vmem:[%s1065 + $0x38] sm:$0xff]
  %1074 = vmatprep.subr.bf16.mxu0 %v683
  %1075 = vmatpush1.bf16.msra.mxu0 %v682
  %1076 = vmatprep.subr.bf16.mxu0 %v687
  %1077 = vmatpush1.bf16.msra.mxu0 %v686
  %1078 = vmatprep.subr.bf16.mxu0 %v691
  %1079 = vmatpush1.bf16.msra.mxu0 %v690
  %1080 = vmatprep.subr.bf16.mxu0 %v695
  %1081 = vmatpush1.bf16.msra.mxu0 %v694
  %1082 = vmatprep.subr.bf16.mxu0 %v699
  %1083 = vmatpush1.bf16.msra.mxu0 %v698
  %1084 = vmatprep.subr.bf16.mxu0 %v703
  %1085 = vmatpush1.bf16.msra.mxu0 %v702
  %1086 = vmatprep.subr.bf16.mxu0 %v707
  %1087 = vmatpush1.bf16.msra.mxu0 %v706
  %1088 = vmatprep.subr.bf16.mxu0 %v711
  %1089 = vmatpush1.bf16.msra.mxu0 %v710
  %1090 = vmatprep.subr.bf16.mxu0 0
  %1091 = vmatpush1.bf16.msra.mxu0 0
  %1092 = vmatprep.subr.bf16.mxu0 0
  %1093 = vmatpush1.bf16.msra.mxu0 0
  %1094 = vmatprep.subr.bf16.mxu0 0
  %1095 = vmatpush1.bf16.msra.mxu0 0
  %1096 = vmatprep.subr.bf16.mxu0 0
  %1097 = vmatpush1.bf16.msra.mxu0 0
  %1098 = vmatprep.subr.bf16.mxu0 0
  %1099 = vmatpush1.bf16.msra.mxu0 0
  %1100 = vmatprep.subr.bf16.mxu0 0
  %1101 = vmatpush1.bf16.msra.mxu0 0
  %1102 = vmatprep.subr.bf16.mxu0 0
  %1103 = vmatpush1.bf16.msra.mxu0 0
  %1104 = vmatprep.subr.bf16.mxu0 0
  %1105 = vmatpush1.bf16.msra.mxu0 0
  %1106 = vmatprep.mubr.bf16.mxu0 0
  %1107 = vmatmul.mubr.bf16.gmra.mrb[0].mxu0 %v1060
  %v1108 = vpop.f32.mrb[0].mxu0
  %v1109 = vadd.f32 0.0, %v1108
  %v1110 = vpop.f32.mrb[0].mxu0
  %v1111 = vadd.f32 0.0, %v1110
  %v1112 = vpop.f32.mrb[0].mxu0
  %v1113 = vadd.f32 0.0, %v1112
  %v1114 = vpop.f32.mrb[0].mxu0
  %v1115 = vadd.f32 0.0, %v1114
  %1116 = vdwg.mxu0
  %1117 = vmatprep.subr.bf16.mxu0 %v685
  %1118 = vmatpush1.bf16.msra.mxu0 %v684
  %1119 = vmatprep.subr.bf16.mxu0 %v689
  %1120 = vmatpush1.bf16.msra.mxu0 %v688
  %1121 = vmatprep.subr.bf16.mxu0 %v693
  %1122 = vmatpush1.bf16.msra.mxu0 %v692
  %1123 = vmatprep.subr.bf16.mxu0 %v697
  %1124 = vmatpush1.bf16.msra.mxu0 %v696
  %1125 = vmatprep.subr.bf16.mxu0 %v701
  %1126 = vmatpush1.bf16.msra.mxu0 %v700
  %1127 = vmatprep.subr.bf16.mxu0 %v705
  %1128 = vmatpush1.bf16.msra.mxu0 %v704
  %1129 = vmatprep.subr.bf16.mxu0 %v709
  %1130 = vmatpush1.bf16.msra.mxu0 %v708
  %1131 = vmatprep.subr.bf16.mxu0 %v713
  %1132 = vmatpush1.bf16.msra.mxu0 %v712
  %1133 = vmatprep.subr.bf16.mxu0 0
  %1134 = vmatpush1.bf16.msra.mxu0 0
  %1135 = vmatprep.subr.bf16.mxu0 0
  %1136 = vmatpush1.bf16.msra.mxu0 0
  %1137 = vmatprep.subr.bf16.mxu0 0
  %1138 = vmatpush1.bf16.msra.mxu0 0
  %1139 = vmatprep.subr.bf16.mxu0 0
  %1140 = vmatpush1.bf16.msra.mxu0 0
  %1141 = vmatprep.subr.bf16.mxu0 0
  %1142 = vmatpush1.bf16.msra.mxu0 0
  %1143 = vmatprep.subr.bf16.mxu0 0
  %1144 = vmatpush1.bf16.msra.mxu0 0
  %1145 = vmatprep.subr.bf16.mxu0 0
  %1146 = vmatpush1.bf16.msra.mxu0 0
  %1147 = vmatprep.subr.bf16.mxu0 0
  %1148 = vmatpush1.bf16.msra.mxu0 0
  %1149 = vmatprep.mubr.bf16.mxu0 0
  %1150 = vmatmul.mubr.bf16.gmra.mrb[0].mxu0 %v1060
  %v1151 = vpop.f32.mrb[0].mxu0
  %v1152 = vadd.f32 0.0, %v1151
  %v1153 = vpop.f32.mrb[0].mxu0
  %v1154 = vadd.f32 0.0, %v1153
  %v1155 = vpop.f32.mrb[0].mxu0
  %v1156 = vadd.f32 0.0, %v1155
  %v1157 = vpop.f32.mrb[0].mxu0
  %v1158 = vadd.f32 0.0, %v1157
  %1159 = vdwg.mxu0
  %v1160 = vadd.f32 %v1066, %v1109
  %v1161 = vadd.f32 %v1067, %v1111
  %v1162 = vadd.f32 %v1068, %v1152
  %v1163 = vadd.f32 %v1069, %v1154
  %v1164 = vadd.f32 %v1070, %v1113
  %v1165 = vadd.f32 %v1071, %v1115
  %v1166 = vadd.f32 %v1072, %v1156
  %v1167 = vadd.f32 %v1073, %v1158
  %v1168 = vxor.u32 %v1160, 2147483648
  %v1169 = vxor.u32 %v1161, 2147483648
  %v1170 = vxor.u32 %v1162, 2147483648
  %v1171 = vxor.u32 %v1164, 2147483648
  %v1172 = vxor.u32 %v1165, 2147483648
  %v1173 = vxor.u32 %v1166, 2147483648
  %v1174 = vmul.f32 %v1168, 1.442695
  %v1175 = vpow.pop %v1174
  %v1176 = vmul.f32 %v1169, 1.442695
  %v1177 = vpow.pop %v1176
  %v1178 = vmul.f32 %v1170, 1.442695
  %v1179 = vpow.pop %v1178
  %v1180 = vmul.f32 %v1171, 1.442695
  %v1181 = vpow.pop %v1180
  %v1182 = vmul.f32 %v1172, 1.442695
  %v1183 = vpow.pop %v1182
  %v1184 = vmul.f32 %v1173, 1.442695
  %v1185 = vpow.pop %v1184
  %v1186 = vadd.f32 %v1175, 1.0
  %v1187 = vadd.f32 %v1177, 1.0
  %v1188 = vadd.f32 %v1179, 1.0
  %v1189 = vadd.f32 %v1181, 1.0
  %v1190 = vadd.f32 %v1183, 1.0
  %v1191 = vadd.f32 %v1185, 1.0
  %v1192 = vrcp.pop %v1186
  %v1193 = vmul.f32 1.0, %v1192
  %v1194 = vrcp.pop %v1187
  %v1195 = vmul.f32 1.0, %v1194
  %v1196 = vrcp.pop %v1188
  %v1197 = vmul.f32 1.0, %v1196
  %v1198 = vrcp.pop %v1189
  %v1199 = vmul.f32 1.0, %v1198
  %v1200 = vrcp.pop %v1190
  %v1201 = vmul.f32 1.0, %v1200
  %v1202 = vrcp.pop %v1191
  %v1203 = vmul.f32 1.0, %v1202
  %v1204 = vtanh.pop %v1163
  %v1205 = vtanh.pop %v1167
  %v1206 = vmul.f32 %v1195, %v1058
  %v1207 = vmul.f32 %v1201, %v1059
  %v1208 = vmul.f32 %v1193, %v1204
  %v1209 = vmul.f32 %v1199, %v1205
  %v1210 = vadd.f32 %v1206, %v1208
  %v1211 = vadd.f32 %v1207, %v1209
  %v1212 = vtanh.pop %v1210
  %v1213 = vtanh.pop %v1211
  %v1214 = vmul.f32 %v1197, %v1212
  %v1215 = vmul.f32 %v1203, %v1213
  %s1216 = sadd.s32 %s35, 2
  %p1217 = scmp.lt.s32.totalorder %s1216, %s36
  %s1218 = scalar_select %p1217, 1, 0
  %v1219 = vstv %s1218
  %vm1220 = vcmp.eq.s32.totalorder %v1219, 1
  %v1221 = vsel %vm1220, %v1214, %v1056
  %v1222 = vsel %vm1220, %v1215, %v1057
  %v1223 = vsel %vm1220, %v1210, %v1058
  %v1224 = vsel %vm1220, %v1211, %v1059
  %v1225 = vpack.c.bf16 %v1222, %v1221
  %s1226 = scalar_lea.vmem [#allocation3], 16
  %1227 = vst [vmem:[%s1226] sm:$0xff] %v1225
  %s1228 = smul.u32 6, 4
  %s1229 = smul.addr %s1228, 8
  %s1230 = scalar_lea.vmem [#allocation2], %s1229
  %v1231 = vld [vmem:[%s1230] sm:$0xff]
  %v1232 = vld [vmem:[%s1230 + $0x8] sm:$0xff]
  %v1233 = vld [vmem:[%s1230 + $0x10] sm:$0xff]
  %v1234 = vld [vmem:[%s1230 + $0x18] sm:$0xff]
  %v1235 = vld [vmem:[%s1230 + $0x20] sm:$0xff]
  %v1236 = vld [vmem:[%s1230 + $0x28] sm:$0xff]
  %v1237 = vld [vmem:[%s1230 + $0x30] sm:$0xff]
  %v1238 = vld [vmem:[%s1230 + $0x38] sm:$0xff]
  %1239 = vmatprep.subr.bf16.mxu0 %v683
  %1240 = vmatpush1.bf16.msra.mxu0 %v682
  %1241 = vmatprep.subr.bf16.mxu0 %v687
  %1242 = vmatpush1.bf16.msra.mxu0 %v686
  %1243 = vmatprep.subr.bf16.mxu0 %v691
  %1244 = vmatpush1.bf16.msra.mxu0 %v690
  %1245 = vmatprep.subr.bf16.mxu0 %v695
  %1246 = vmatpush1.bf16.msra.mxu0 %v694
  %1247 = vmatprep.subr.bf16.mxu0 %v699
  %1248 = vmatpush1.bf16.msra.mxu0 %v698
  %1249 = vmatprep.subr.bf16.mxu0 %v703
  %1250 = vmatpush1.bf16.msra.mxu0 %v702
  %1251 = vmatprep.subr.bf16.mxu0 %v707
  %1252 = vmatpush1.bf16.msra.mxu0 %v706
  %1253 = vmatprep.subr.bf16.mxu0 %v711
  %1254 = vmatpush1.bf16.msra.mxu0 %v710
  %1255 = vmatprep.subr.bf16.mxu0 0
  %1256 = vmatpush1.bf16.msra.mxu0 0
  %1257 = vmatprep.subr.bf16.mxu0 0
  %1258 = vmatpush1.bf16.msra.mxu0 0
  %1259 = vmatprep.subr.bf16.mxu0 0
  %1260 = vmatpush1.bf16.msra.mxu0 0
  %1261 = vmatprep.subr.bf16.mxu0 0
  %1262 = vmatpush1.bf16.msra.mxu0 0
  %1263 = vmatprep.subr.bf16.mxu0 0
  %1264 = vmatpush1.bf16.msra.mxu0 0
  %1265 = vmatprep.subr.bf16.mxu0 0
  %1266 = vmatpush1.bf16.msra.mxu0 0
  %1267 = vmatprep.subr.bf16.mxu0 0
  %1268 = vmatpush1.bf16.msra.mxu0 0
  %1269 = vmatprep.subr.bf16.mxu0 0
  %1270 = vmatpush1.bf16.msra.mxu0 0
  %1271 = vmatprep.mubr.bf16.mxu0 0
  %1272 = vmatmul.mubr.bf16.gmra.mrb[0].mxu0 %v1225
  %v1273 = vpop.f32.mrb[0].mxu0
  %v1274 = vadd.f32 0.0, %v1273
  %v1275 = vpop.f32.mrb[0].mxu0
  %v1276 = vadd.f32 0.0, %v1275
  %v1277 = vpop.f32.mrb[0].mxu0
  %v1278 = vadd.f32 0.0, %v1277
  %v1279 = vpop.f32.mrb[0].mxu0
  %v1280 = vadd.f32 0.0, %v1279
  %1281 = vdwg.mxu0
  %1282 = vmatprep.subr.bf16.mxu0 %v685
  %1283 = vmatpush1.bf16.msra.mxu0 %v684
  %1284 = vmatprep.subr.bf16.mxu0 %v689
  %1285 = vmatpush1.bf16.msra.mxu0 %v688
  %1286 = vmatprep.subr.bf16.mxu0 %v693
  %1287 = vmatpush1.bf16.msra.mxu0 %v692
  %1288 = vmatprep.subr.bf16.mxu0 %v697
  %1289 = vmatpush1.bf16.msra.mxu0 %v696
  %1290 = vmatprep.subr.bf16.mxu0 %v701
  %1291 = vmatpush1.bf16.msra.mxu0 %v700
  %1292 = vmatprep.subr.bf16.mxu0 %v705
  %1293 = vmatpush1.bf16.msra.mxu0 %v704
  %1294 = vmatprep.subr.bf16.mxu0 %v709
  %1295 = vmatpush1.bf16.msra.mxu0 %v708
  %1296 = vmatprep.subr.bf16.mxu0 %v713
  %1297 = vmatpush1.bf16.msra.mxu0 %v712
  %1298 = vmatprep.subr.bf16.mxu0 0
  %1299 = vmatpush1.bf16.msra.mxu0 0
  %1300 = vmatprep.subr.bf16.mxu0 0
  %1301 = vmatpush1.bf16.msra.mxu0 0
  %1302 = vmatprep.subr.bf16.mxu0 0
  %1303 = vmatpush1.bf16.msra.mxu0 0
  %1304 = vmatprep.subr.bf16.mxu0 0
  %1305 = vmatpush1.bf16.msra.mxu0 0
  %1306 = vmatprep.subr.bf16.mxu0 0
  %1307 = vmatpush1.bf16.msra.mxu0 0
  %1308 = vmatprep.subr.bf16.mxu0 0
  %1309 = vmatpush1.bf16.msra.mxu0 0
  %1310 = vmatprep.subr.bf16.mxu0 0
  %1311 = vmatpush1.bf16.msra.mxu0 0
  %1312 = vmatprep.subr.bf16.mxu0 0
  %1313 = vmatpush1.bf16.msra.mxu0 0
  %1314 = vmatprep.mubr.bf16.mxu0 0
  %1315 = vmatmul.mubr.bf16.gmra.mrb[0].mxu0 %v1225
  %v1316 = vpop.f32.mrb[0].mxu0
  %v1317 = vadd.f32 0.0, %v1316
  %v1318 = vpop.f32.mrb[0].mxu0
  %v1319 = vadd.f32 0.0, %v1318
  %v1320 = vpop.f32.mrb[0].mxu0
  %v1321 = vadd.f32 0.0, %v1320
  %v1322 = vpop.f32.mrb[0].mxu0
  %v1323 = vadd.f32 0.0, %v1322
  %1324 = vdwg.mxu0
  %v1325 = vadd.f32 %v1231, %v1274
  %v1326 = vadd.f32 %v1232, %v1276
  %v1327 = vadd.f32 %v1233, %v1317
  %v1328 = vadd.f32 %v1234, %v1319
  %v1329 = vadd.f32 %v1235, %v1278
  %v1330 = vadd.f32 %v1236, %v1280
  %v1331 = vadd.f32 %v1237, %v1321
  %v1332 = vadd.f32 %v1238, %v1323
  %v1333 = vxor.u32 %v1325, 2147483648
  %v1334 = vxor.u32 %v1326, 2147483648
  %v1335 = vxor.u32 %v1327, 2147483648
  %v1336 = vxor.u32 %v1329, 2147483648
  %v1337 = vxor.u32 %v1330, 2147483648
  %v1338 = vxor.u32 %v1331, 2147483648
  %v1339 = vmul.f32 %v1333, 1.442695
  %v1340 = vpow.pop %v1339
  %v1341 = vmul.f32 %v1334, 1.442695
  %v1342 = vpow.pop %v1341
  %v1343 = vmul.f32 %v1335, 1.442695
  %v1344 = vpow.pop %v1343
  %v1345 = vmul.f32 %v1336, 1.442695
  %v1346 = vpow.pop %v1345
  %v1347 = vmul.f32 %v1337, 1.442695
  %v1348 = vpow.pop %v1347
  %v1349 = vmul.f32 %v1338, 1.442695
  %v1350 = vpow.pop %v1349
  %v1351 = vadd.f32 %v1340, 1.0
  %v1352 = vadd.f32 %v1342, 1.0
  %v1353 = vadd.f32 %v1344, 1.0
  %v1354 = vadd.f32 %v1346, 1.0
  %v1355 = vadd.f32 %v1348, 1.0
  %v1356 = vadd.f32 %v1350, 1.0
  %v1357 = vrcp.pop %v1351
  %v1358 = vmul.f32 1.0, %v1357
  %v1359 = vrcp.pop %v1352
  %v1360 = vmul.f32 1.0, %v1359
  %v1361 = vrcp.pop %v1353
  %v1362 = vmul.f32 1.0, %v1361
  %v1363 = vrcp.pop %v1354
  %v1364 = vmul.f32 1.0, %v1363
  %v1365 = vrcp.pop %v1355
  %v1366 = vmul.f32 1.0, %v1365
  %v1367 = vrcp.pop %v1356
  %v1368 = vmul.f32 1.0, %v1367
  %v1369 = vtanh.pop %v1328
  %v1370 = vtanh.pop %v1332
  %v1371 = vmul.f32 %v1360, %v1223
  %v1372 = vmul.f32 %v1366, %v1224
  %v1373 = vmul.f32 %v1358, %v1369
  %v1374 = vmul.f32 %v1364, %v1370
  %v1375 = vadd.f32 %v1371, %v1373
  %v1376 = vadd.f32 %v1372, %v1374
  %v1377 = vtanh.pop %v1375
  %v1378 = vtanh.pop %v1376
  %v1379 = vmul.f32 %v1362, %v1377
  %v1380 = vmul.f32 %v1368, %v1378
  %s1381 = sadd.s32 %s35, 3
  %p1382 = scmp.lt.s32.totalorder %s1381, %s36
  %s1383 = scalar_select %p1382, 1, 0
  %v1384 = vstv %s1383
  %vm1385 = vcmp.eq.s32.totalorder %v1384, 1
  %v1386 = vsel %vm1385, %v1379, %v1221
  %v1387 = vsel %vm1385, %v1380, %v1222
  %v1388 = vsel %vm1385, %v1375, %v1223
  %v1389 = vsel %vm1385, %v1376, %v1224
  %v1390 = vpack.c.bf16 %v1387, %v1386
  %s1391 = scalar_lea.vmem [#allocation3], 24
  %1392 = vst [vmem:[%s1391] sm:$0xff] %v1390
  %s1393 = smul.u32 8, 4
  %s1394 = smul.addr %s1393, 8
  %s1395 = scalar_lea.vmem [#allocation2], %s1394
  %v1396 = vld [vmem:[%s1395] sm:$0xff]
  %v1397 = vld [vmem:[%s1395 + $0x8] sm:$0xff]
  %v1398 = vld [vmem:[%s1395 + $0x10] sm:$0xff]
  %v1399 = vld [vmem:[%s1395 + $0x18] sm:$0xff]
  %v1400 = vld [vmem:[%s1395 + $0x20] sm:$0xff]
  %v1401 = vld [vmem:[%s1395 + $0x28] sm:$0xff]
  %v1402 = vld [vmem:[%s1395 + $0x30] sm:$0xff]
  %v1403 = vld [vmem:[%s1395 + $0x38] sm:$0xff]
  %1404 = vmatprep.subr.bf16.mxu0 %v683
  %1405 = vmatpush1.bf16.msra.mxu0 %v682
  %1406 = vmatprep.subr.bf16.mxu0 %v687
  %1407 = vmatpush1.bf16.msra.mxu0 %v686
  %1408 = vmatprep.subr.bf16.mxu0 %v691
  %1409 = vmatpush1.bf16.msra.mxu0 %v690
  %1410 = vmatprep.subr.bf16.mxu0 %v695
  %1411 = vmatpush1.bf16.msra.mxu0 %v694
  %1412 = vmatprep.subr.bf16.mxu0 %v699
  %1413 = vmatpush1.bf16.msra.mxu0 %v698
  %1414 = vmatprep.subr.bf16.mxu0 %v703
  %1415 = vmatpush1.bf16.msra.mxu0 %v702
  %1416 = vmatprep.subr.bf16.mxu0 %v707
  %1417 = vmatpush1.bf16.msra.mxu0 %v706
  %1418 = vmatprep.subr.bf16.mxu0 %v711
  %1419 = vmatpush1.bf16.msra.mxu0 %v710
  %1420 = vmatprep.subr.bf16.mxu0 0
  %1421 = vmatpush1.bf16.msra.mxu0 0
  %1422 = vmatprep.subr.bf16.mxu0 0
  %1423 = vmatpush1.bf16.msra.mxu0 0
  %1424 = vmatprep.subr.bf16.mxu0 0
  %1425 = vmatpush1.bf16.msra.mxu0 0
  %1426 = vmatprep.subr.bf16.mxu0 0
  %1427 = vmatpush1.bf16.msra.mxu0 0
  %1428 = vmatprep.subr.bf16.mxu0 0
  %1429 = vmatpush1.bf16.msra.mxu0 0
  %1430 = vmatprep.subr.bf16.mxu0 0
  %1431 = vmatpush1.bf16.msra.mxu0 0
  %1432 = vmatprep.subr.bf16.mxu0 0
  %1433 = vmatpush1.bf16.msra.mxu0 0
  %1434 = vmatprep.subr.bf16.mxu0 0
  %1435 = vmatpush1.bf16.msra.mxu0 0
  %1436 = vmatprep.mubr.bf16.mxu0 0
  %1437 = vmatmul.mubr.bf16.gmra.mrb[0].mxu0 %v1390
  %v1438 = vpop.f32.mrb[0].mxu0
  %v1439 = vadd.f32 0.0, %v1438
  %v1440 = vpop.f32.mrb[0].mxu0
  %v1441 = vadd.f32 0.0, %v1440
  %v1442 = vpop.f32.mrb[0].mxu0
  %v1443 = vadd.f32 0.0, %v1442
  %v1444 = vpop.f32.mrb[0].mxu0
  %v1445 = vadd.f32 0.0, %v1444
  %1446 = vdwg.mxu0
  %1447 = vmatprep.subr.bf16.mxu0 %v685
  %1448 = vmatpush1.bf16.msra.mxu0 %v684
  %1449 = vmatprep.subr.bf16.mxu0 %v689
  %1450 = vmatpush1.bf16.msra.mxu0 %v688
  %1451 = vmatprep.subr.bf16.mxu0 %v693
  %1452 = vmatpush1.bf16.msra.mxu0 %v692
  %1453 = vmatprep.subr.bf16.mxu0 %v697
  %1454 = vmatpush1.bf16.msra.mxu0 %v696
  %1455 = vmatprep.subr.bf16.mxu0 %v701
  %1456 = vmatpush1.bf16.msra.mxu0 %v700
  %1457 = vmatprep.subr.bf16.mxu0 %v705
  %1458 = vmatpush1.bf16.msra.mxu0 %v704
  %1459 = vmatprep.subr.bf16.mxu0 %v709
  %1460 = vmatpush1.bf16.msra.mxu0 %v708
  %1461 = vmatprep.subr.bf16.mxu0 %v713
  %1462 = vmatpush1.bf16.msra.mxu0 %v712
  %1463 = vmatprep.subr.bf16.mxu0 0
  %1464 = vmatpush1.bf16.msra.mxu0 0
  %1465 = vmatprep.subr.bf16.mxu0 0
  %1466 = vmatpush1.bf16.msra.mxu0 0
  %1467 = vmatprep.subr.bf16.mxu0 0
  %1468 = vmatpush1.bf16.msra.mxu0 0
  %1469 = vmatprep.subr.bf16.mxu0 0
  %1470 = vmatpush1.bf16.msra.mxu0 0
  %1471 = vmatprep.subr.bf16.mxu0 0
  %1472 = vmatpush1.bf16.msra.mxu0 0
  %1473 = vmatprep.subr.bf16.mxu0 0
  %1474 = vmatpush1.bf16.msra.mxu0 0
  %1475 = vmatprep.subr.bf16.mxu0 0
  %1476 = vmatpush1.bf16.msra.mxu0 0
  %1477 = vmatprep.subr.bf16.mxu0 0
  %1478 = vmatpush1.bf16.msra.mxu0 0
  %1479 = vmatprep.mubr.bf16.mxu0 0
  %1480 = vmatmul.mubr.bf16.gmra.mrb[0].mxu0 %v1390
  %v1481 = vpop.f32.mrb[0].mxu0
  %v1482 = vadd.f32 0.0, %v1481
  %v1483 = vpop.f32.mrb[0].mxu0
  %v1484 = vadd.f32 0.0, %v1483
  %v1485 = vpop.f32.mrb[0].mxu0
  %v1486 = vadd.f32 0.0, %v1485
  %v1487 = vpop.f32.mrb[0].mxu0
  %v1488 = vadd.f32 0.0, %v1487
  %1489 = vdwg.mxu0
  %v1490 = vadd.f32 %v1396, %v1439
  %v1491 = vadd.f32 %v1397, %v1441
  %v1492 = vadd.f32 %v1398, %v1482
  %v1493 = vadd.f32 %v1399, %v1484
  %v1494 = vadd.f32 %v1400, %v1443
  %v1495 = vadd.f32 %v1401, %v1445
  %v1496 = vadd.f32 %v1402, %v1486
  %v1497 = vadd.f32 %v1403, %v1488
  %v1498 = vxor.u32 %v1490, 2147483648
  %v1499 = vxor.u32 %v1491, 2147483648
  %v1500 = vxor.u32 %v1492, 2147483648
  %v1501 = vxor.u32 %v1494, 2147483648
  %v1502 = vxor.u32 %v1495, 2147483648
  %v1503 = vxor.u32 %v1496, 2147483648
  %v1504 = vmul.f32 %v1498, 1.442695
  %v1505 = vpow.pop %v1504
  %v1506 = vmul.f32 %v1499, 1.442695
  %v1507 = vpow.pop %v1506
  %v1508 = vmul.f32 %v1500, 1.442695
  %v1509 = vpow.pop %v1508
  %v1510 = vmul.f32 %v1501, 1.442695
  %v1511 = vpow.pop %v1510
  %v1512 = vmul.f32 %v1502, 1.442695
  %v1513 = vpow.pop %v1512
  %v1514 = vmul.f32 %v1503, 1.442695
  %v1515 = vpow.pop %v1514
  %v1516 = vadd.f32 %v1505, 1.0
  %v1517 = vadd.f32 %v1507, 1.0
  %v1518 = vadd.f32 %v1509, 1.0
  %v1519 = vadd.f32 %v1511, 1.0
  %v1520 = vadd.f32 %v1513, 1.0
  %v1521 = vadd.f32 %v1515, 1.0
  %v1522 = vrcp.pop %v1516
  %v1523 = vmul.f32 1.0, %v1522
  %v1524 = vrcp.pop %v1517
  %v1525 = vmul.f32 1.0, %v1524
  %v1526 = vrcp.pop %v1518
  %v1527 = vmul.f32 1.0, %v1526
  %v1528 = vrcp.pop %v1519
  %v1529 = vmul.f32 1.0, %v1528
  %v1530 = vrcp.pop %v1520
  %v1531 = vmul.f32 1.0, %v1530
  %v1532 = vrcp.pop %v1521
  %v1533 = vmul.f32 1.0, %v1532
  %v1534 = vtanh.pop %v1493
  %v1535 = vtanh.pop %v1497
  %v1536 = vmul.f32 %v1525, %v1388
  %v1537 = vmul.f32 %v1531, %v1389
  %v1538 = vmul.f32 %v1523, %v1534
  %v1539 = vmul.f32 %v1529, %v1535
  %v1540 = vadd.f32 %v1536, %v1538
  %v1541 = vadd.f32 %v1537, %v1539
  %v1542 = vtanh.pop %v1540
  %v1543 = vtanh.pop %v1541
  %v1544 = vmul.f32 %v1527, %v1542
  %v1545 = vmul.f32 %v1533, %v1543
  %s1546 = sadd.s32 %s35, 4
  %p1547 = scmp.lt.s32.totalorder %s1546, %s36
  %s1548 = scalar_select %p1547, 1, 0
  %v1549 = vstv %s1548
  %vm1550 = vcmp.eq.s32.totalorder %v1549, 1
  %v1551 = vsel %vm1550, %v1544, %v1386
  %v1552 = vsel %vm1550, %v1545, %v1387
  %v1553 = vsel %vm1550, %v1540, %v1388
  %v1554 = vsel %vm1550, %v1541, %v1389
  %v1555 = vpack.c.bf16 %v1552, %v1551
  %s1556 = scalar_lea.vmem [#allocation3], 32
  %1557 = vst [vmem:[%s1556] sm:$0xff] %v1555
  %s1558 = smul.u32 10, 4
  %s1559 = smul.addr %s1558, 8
  %s1560 = scalar_lea.vmem [#allocation2], %s1559
  %v1561 = vld [vmem:[%s1560] sm:$0xff]
  %v1562 = vld [vmem:[%s1560 + $0x8] sm:$0xff]
  %v1563 = vld [vmem:[%s1560 + $0x10] sm:$0xff]
  %v1564 = vld [vmem:[%s1560 + $0x18] sm:$0xff]
  %v1565 = vld [vmem:[%s1560 + $0x20] sm:$0xff]
  %v1566 = vld [vmem:[%s1560 + $0x28] sm:$0xff]
  %v1567 = vld [vmem:[%s1560 + $0x30] sm:$0xff]
  %v1568 = vld [vmem:[%s1560 + $0x38] sm:$0xff]
  %1569 = vmatprep.subr.bf16.mxu0 %v683
  %1570 = vmatpush1.bf16.msra.mxu0 %v682
  %1571 = vmatprep.subr.bf16.mxu0 %v687
  %1572 = vmatpush1.bf16.msra.mxu0 %v686
  %1573 = vmatprep.subr.bf16.mxu0 %v691
  %1574 = vmatpush1.bf16.msra.mxu0 %v690
  %1575 = vmatprep.subr.bf16.mxu0 %v695
  %1576 = vmatpush1.bf16.msra.mxu0 %v694
  %1577 = vmatprep.subr.bf16.mxu0 %v699
  %1578 = vmatpush1.bf16.msra.mxu0 %v698
  %1579 = vmatprep.subr.bf16.mxu0 %v703
  %1580 = vmatpush1.bf16.msra.mxu0 %v702
  %1581 = vmatprep.subr.bf16.mxu0 %v707
  %1582 = vmatpush1.bf16.msra.mxu0 %v706
  %1583 = vmatprep.subr.bf16.mxu0 %v711
  %1584 = vmatpush1.bf16.msra.mxu0 %v710
  %1585 = vmatprep.subr.bf16.mxu0 0
  %1586 = vmatpush1.bf16.msra.mxu0 0
  %1587 = vmatprep.subr.bf16.mxu0 0
  %1588 = vmatpush1.bf16.msra.mxu0 0
  %1589 = vmatprep.subr.bf16.mxu0 0
  %1590 = vmatpush1.bf16.msra.mxu0 0
  %1591 = vmatprep.subr.bf16.mxu0 0
  %1592 = vmatpush1.bf16.msra.mxu0 0
  %1593 = vmatprep.subr.bf16.mxu0 0
  %1594 = vmatpush1.bf16.msra.mxu0 0
  %1595 = vmatprep.subr.bf16.mxu0 0
  %1596 = vmatpush1.bf16.msra.mxu0 0
  %1597 = vmatprep.subr.bf16.mxu0 0
  %1598 = vmatpush1.bf16.msra.mxu0 0
  %1599 = vmatprep.subr.bf16.mxu0 0
  %1600 = vmatpush1.bf16.msra.mxu0 0
  %1601 = vmatprep.mubr.bf16.mxu0 0
  %1602 = vmatmul.mubr.bf16.gmra.mrb[0].mxu0 %v1555
  %v1603 = vpop.f32.mrb[0].mxu0
  %v1604 = vadd.f32 0.0, %v1603
  %v1605 = vpop.f32.mrb[0].mxu0
  %v1606 = vadd.f32 0.0, %v1605
  %v1607 = vpop.f32.mrb[0].mxu0
  %v1608 = vadd.f32 0.0, %v1607
  %v1609 = vpop.f32.mrb[0].mxu0
  %v1610 = vadd.f32 0.0, %v1609
  %1611 = vdwg.mxu0
  %1612 = vmatprep.subr.bf16.mxu0 %v685
  %1613 = vmatpush1.bf16.msra.mxu0 %v684
  %1614 = vmatprep.subr.bf16.mxu0 %v689
  %1615 = vmatpush1.bf16.msra.mxu0 %v688
  %1616 = vmatprep.subr.bf16.mxu0 %v693
  %1617 = vmatpush1.bf16.msra.mxu0 %v692
  %1618 = vmatprep.subr.bf16.mxu0 %v697
  %1619 = vmatpush1.bf16.msra.mxu0 %v696
  %1620 = vmatprep.subr.bf16.mxu0 %v701
  %1621 = vmatpush1.bf16.msra.mxu0 %v700
  %1622 = vmatprep.subr.bf16.mxu0 %v705
  %1623 = vmatpush1.bf16.msra.mxu0 %v704
  %1624 = vmatprep.subr.bf16.mxu0 %v709
  %1625 = vmatpush1.bf16.msra.mxu0 %v708
  %1626 = vmatprep.subr.bf16.mxu0 %v713
  %1627 = vmatpush1.bf16.msra.mxu0 %v712
  %1628 = vmatprep.subr.bf16.mxu0 0
  %1629 = vmatpush1.bf16.msra.mxu0 0
  %1630 = vmatprep.subr.bf16.mxu0 0
  %1631 = vmatpush1.bf16.msra.mxu0 0
  %1632 = vmatprep.subr.bf16.mxu0 0
  %1633 = vmatpush1.bf16.msra.mxu0 0
  %1634 = vmatprep.subr.bf16.mxu0 0
  %1635 = vmatpush1.bf16.msra.mxu0 0
  %1636 = vmatprep.subr.bf16.mxu0 0
  %1637 = vmatpush1.bf16.msra.mxu0 0
  %1638 = vmatprep.subr.bf16.mxu0 0
  %1639 = vmatpush1.bf16.msra.mxu0 0
  %1640 = vmatprep.subr.bf16.mxu0 0
  %1641 = vmatpush1.bf16.msra.mxu0 0
  %1642 = vmatprep.subr.bf16.mxu0 0
  %1643 = vmatpush1.bf16.msra.mxu0 0
  %1644 = vmatprep.mubr.bf16.mxu0 0
  %1645 = vmatmul.mubr.bf16.gmra.mrb[0].mxu0 %v1555
  %v1646 = vpop.f32.mrb[0].mxu0
  %v1647 = vadd.f32 0.0, %v1646
  %v1648 = vpop.f32.mrb[0].mxu0
  %v1649 = vadd.f32 0.0, %v1648
  %v1650 = vpop.f32.mrb[0].mxu0
  %v1651 = vadd.f32 0.0, %v1650
  %v1652 = vpop.f32.mrb[0].mxu0
  %v1653 = vadd.f32 0.0, %v1652
  %1654 = vdwg.mxu0
  %v1655 = vadd.f32 %v1561, %v1604
  %v1656 = vadd.f32 %v1562, %v1606
  %v1657 = vadd.f32 %v1563, %v1647
  %v1658 = vadd.f32 %v1564, %v1649
  %v1659 = vadd.f32 %v1565, %v1608
  %v1660 = vadd.f32 %v1566, %v1610
  %v1661 = vadd.f32 %v1567, %v1651
  %v1662 = vadd.f32 %v1568, %v1653
  %v1663 = vxor.u32 %v1655, 2147483648
  %v1664 = vxor.u32 %v1656, 2147483648
  %v1665 = vxor.u32 %v1657, 2147483648
  %v1666 = vxor.u32 %v1659, 2147483648
  %v1667 = vxor.u32 %v1660, 2147483648
  %v1668 = vxor.u32 %v1661, 2147483648
  %v1669 = vmul.f32 %v1663, 1.442695
  %v1670 = vpow.pop %v1669
  %v1671 = vmul.f32 %v1664, 1.442695
  %v1672 = vpow.pop %v1671
  %v1673 = vmul.f32 %v1665, 1.442695
  %v1674 = vpow.pop %v1673
  %v1675 = vmul.f32 %v1666, 1.442695
  %v1676 = vpow.pop %v1675
  %v1677 = vmul.f32 %v1667, 1.442695
  %v1678 = vpow.pop %v1677
  %v1679 = vmul.f32 %v1668, 1.442695
  %v1680 = vpow.pop %v1679
  %v1681 = vadd.f32 %v1670, 1.0
  %v1682 = vadd.f32 %v1672, 1.0
  %v1683 = vadd.f32 %v1674, 1.0
  %v1684 = vadd.f32 %v1676, 1.0
  %v1685 = vadd.f32 %v1678, 1.0
  %v1686 = vadd.f32 %v1680, 1.0
  %v1687 = vrcp.pop %v1681
  %v1688 = vmul.f32 1.0, %v1687
  %v1689 = vrcp.pop %v1682
  %v1690 = vmul.f32 1.0, %v1689
  %v1691 = vrcp.pop %v1683
  %v1692 = vmul.f32 1.0, %v1691
  %v1693 = vrcp.pop %v1684
  %v1694 = vmul.f32 1.0, %v1693
  %v1695 = vrcp.pop %v1685
  %v1696 = vmul.f32 1.0, %v1695
  %v1697 = vrcp.pop %v1686
  %v1698 = vmul.f32 1.0, %v1697
  %v1699 = vtanh.pop %v1658
  %v1700 = vtanh.pop %v1662
  %v1701 = vmul.f32 %v1690, %v1553
  %v1702 = vmul.f32 %v1696, %v1554
  %v1703 = vmul.f32 %v1688, %v1699
  %v1704 = vmul.f32 %v1694, %v1700
  %v1705 = vadd.f32 %v1701, %v1703
  %v1706 = vadd.f32 %v1702, %v1704
  %v1707 = vtanh.pop %v1705
  %v1708 = vtanh.pop %v1706
  %v1709 = vmul.f32 %v1692, %v1707
  %v1710 = vmul.f32 %v1698, %v1708
  %s1711 = sadd.s32 %s35, 5
  %p1712 = scmp.lt.s32.totalorder %s1711, %s36
  %s1713 = scalar_select %p1712, 1, 0
  %v1714 = vstv %s1713
  %vm1715 = vcmp.eq.s32.totalorder %v1714, 1
  %v1716 = vsel %vm1715, %v1709, %v1551
  %v1717 = vsel %vm1715, %v1710, %v1552
  %v1718 = vsel %vm1715, %v1705, %v1553
  %v1719 = vsel %vm1715, %v1706, %v1554
  %v1720 = vpack.c.bf16 %v1717, %v1716
  %s1721 = scalar_lea.vmem [#allocation3], 40
  %1722 = vst [vmem:[%s1721] sm:$0xff] %v1720
  %s1723 = smul.u32 12, 4
  %s1724 = smul.addr %s1723, 8
  %s1725 = scalar_lea.vmem [#allocation2], %s1724
  %v1726 = vld [vmem:[%s1725] sm:$0xff]
  %v1727 = vld [vmem:[%s1725 + $0x8] sm:$0xff]
  %v1728 = vld [vmem:[%s1725 + $0x10] sm:$0xff]
  %v1729 = vld [vmem:[%s1725 + $0x18] sm:$0xff]
  %v1730 = vld [vmem:[%s1725 + $0x20] sm:$0xff]
  %v1731 = vld [vmem:[%s1725 + $0x28] sm:$0xff]
  %v1732 = vld [vmem:[%s1725 + $0x30] sm:$0xff]
  %v1733 = vld [vmem:[%s1725 + $0x38] sm:$0xff]
  %1734 = vmatprep.subr.bf16.mxu0 %v683
  %1735 = vmatpush1.bf16.msra.mxu0 %v682
  %1736 = vmatprep.subr.bf16.mxu0 %v687
  %1737 = vmatpush1.bf16.msra.mxu0 %v686
  %1738 = vmatprep.subr.bf16.mxu0 %v691
  %1739 = vmatpush1.bf16.msra.mxu0 %v690
  %1740 = vmatprep.subr.bf16.mxu0 %v695
  %1741 = vmatpush1.bf16.msra.mxu0 %v694
  %1742 = vmatprep.subr.bf16.mxu0 %v699
  %1743 = vmatpush1.bf16.msra.mxu0 %v698
  %1744 = vmatprep.subr.bf16.mxu0 %v703
  %1745 = vmatpush1.bf16.msra.mxu0 %v702
  %1746 = vmatprep.subr.bf16.mxu0 %v707
  %1747 = vmatpush1.bf16.msra.mxu0 %v706
  %1748 = vmatprep.subr.bf16.mxu0 %v711
  %1749 = vmatpush1.bf16.msra.mxu0 %v710
  %1750 = vmatprep.subr.bf16.mxu0 0
  %1751 = vmatpush1.bf16.msra.mxu0 0
  %1752 = vmatprep.subr.bf16.mxu0 0
  %1753 = vmatpush1.bf16.msra.mxu0 0
  %1754 = vmatprep.subr.bf16.mxu0 0
  %1755 = vmatpush1.bf16.msra.mxu0 0
  %1756 = vmatprep.subr.bf16.mxu0 0
  %1757 = vmatpush1.bf16.msra.mxu0 0
  %1758 = vmatprep.subr.bf16.mxu0 0
  %1759 = vmatpush1.bf16.msra.mxu0 0
  %1760 = vmatprep.subr.bf16.mxu0 0
  %1761 = vmatpush1.bf16.msra.mxu0 0
  %1762 = vmatprep.subr.bf16.mxu0 0
  %1763 = vmatpush1.bf16.msra.mxu0 0
  %1764 = vmatprep.subr.bf16.mxu0 0
  %1765 = vmatpush1.bf16.msra.mxu0 0
  %1766 = vmatprep.mubr.bf16.mxu0 0
  %1767 = vmatmul.mubr.bf16.gmra.mrb[0].mxu0 %v1720
  %v1768 = vpop.f32.mrb[0].mxu0
  %v1769 = vadd.f32 0.0, %v1768
  %v1770 = vpop.f32.mrb[0].mxu0
  %v1771 = vadd.f32 0.0, %v1770
  %v1772 = vpop.f32.mrb[0].mxu0
  %v1773 = vadd.f32 0.0, %v1772
  %v1774 = vpop.f32.mrb[0].mxu0
  %v1775 = vadd.f32 0.0, %v1774
  %1776 = vdwg.mxu0
  %1777 = vmatprep.subr.bf16.mxu0 %v685
  %1778 = vmatpush1.bf16.msra.mxu0 %v684
  %1779 = vmatprep.subr.bf16.mxu0 %v689
  %1780 = vmatpush1.bf16.msra.mxu0 %v688
  %1781 = vmatprep.subr.bf16.mxu0 %v693
  %1782 = vmatpush1.bf16.msra.mxu0 %v692
  %1783 = vmatprep.subr.bf16.mxu0 %v697
  %1784 = vmatpush1.bf16.msra.mxu0 %v696
  %1785 = vmatprep.subr.bf16.mxu0 %v701
  %1786 = vmatpush1.bf16.msra.mxu0 %v700
  %1787 = vmatprep.subr.bf16.mxu0 %v705
  %1788 = vmatpush1.bf16.msra.mxu0 %v704
  %1789 = vmatprep.subr.bf16.mxu0 %v709
  %1790 = vmatpush1.bf16.msra.mxu0 %v708
  %1791 = vmatprep.subr.bf16.mxu0 %v713
  %1792 = vmatpush1.bf16.msra.mxu0 %v712
  %1793 = vmatprep.subr.bf16.mxu0 0
  %1794 = vmatpush1.bf16.msra.mxu0 0
  %1795 = vmatprep.subr.bf16.mxu0 0
  %1796 = vmatpush1.bf16.msra.mxu0 0
  %1797 = vmatprep.subr.bf16.mxu0 0
  %1798 = vmatpush1.bf16.msra.mxu0 0
  %1799 = vmatprep.subr.bf16.mxu0 0
  %1800 = vmatpush1.bf16.msra.mxu0 0
  %1801 = vmatprep.subr.bf16.mxu0 0
  %1802 = vmatpush1.bf16.msra.mxu0 0
  %1803 = vmatprep.subr.bf16.mxu0 0
  %1804 = vmatpush1.bf16.msra.mxu0 0
  %1805 = vmatprep.subr.bf16.mxu0 0
  %1806 = vmatpush1.bf16.msra.mxu0 0
  %1807 = vmatprep.subr.bf16.mxu0 0
  %1808 = vmatpush1.bf16.msra.mxu0 0
  %1809 = vmatprep.mubr.bf16.mxu0 0
  %1810 = vmatmul.mubr.bf16.gmra.mrb[0].mxu0 %v1720
  %v1811 = vpop.f32.mrb[0].mxu0
  %v1812 = vadd.f32 0.0, %v1811
  %v1813 = vpop.f32.mrb[0].mxu0
  %v1814 = vadd.f32 0.0, %v1813
  %v1815 = vpop.f32.mrb[0].mxu0
  %v1816 = vadd.f32 0.0, %v1815
  %v1817 = vpop.f32.mrb[0].mxu0
  %v1818 = vadd.f32 0.0, %v1817
  %1819 = vdwg.mxu0
  %v1820 = vadd.f32 %v1726, %v1769
  %v1821 = vadd.f32 %v1727, %v1771
  %v1822 = vadd.f32 %v1728, %v1812
  %v1823 = vadd.f32 %v1729, %v1814
  %v1824 = vadd.f32 %v1730, %v1773
  %v1825 = vadd.f32 %v1731, %v1775
  %v1826 = vadd.f32 %v1732, %v1816
  %v1827 = vadd.f32 %v1733, %v1818
  %v1828 = vxor.u32 %v1820, 2147483648
  %v1829 = vxor.u32 %v1821, 2147483648
  %v1830 = vxor.u32 %v1822, 2147483648
  %v1831 = vxor.u32 %v1824, 2147483648
  %v1832 = vxor.u32 %v1825, 2147483648
  %v1833 = vxor.u32 %v1826, 2147483648
  %v1834 = vmul.f32 %v1828, 1.442695
  %v1835 = vpow.pop %v1834
  %v1836 = vmul.f32 %v1829, 1.442695
  %v1837 = vpow.pop %v1836
  %v1838 = vmul.f32 %v1830, 1.442695
  %v1839 = vpow.pop %v1838
  %v1840 = vmul.f32 %v1831, 1.442695
  %v1841 = vpow.pop %v1840
  %v1842 = vmul.f32 %v1832, 1.442695
  %v1843 = vpow.pop %v1842
  %v1844 = vmul.f32 %v1833, 1.442695
  %v1845 = vpow.pop %v1844
  %v1846 = vadd.f32 %v1835, 1.0
  %v1847 = vadd.f32 %v1837, 1.0
  %v1848 = vadd.f32 %v1839, 1.0
  %v1849 = vadd.f32 %v1841, 1.0
  %v1850 = vadd.f32 %v1843, 1.0
  %v1851 = vadd.f32 %v1845, 1.0
  %v1852 = vrcp.pop %v1846
  %v1853 = vmul.f32 1.0, %v1852
  %v1854 = vrcp.pop %v1847
  %v1855 = vmul.f32 1.0, %v1854
  %v1856 = vrcp.pop %v1848
  %v1857 = vmul.f32 1.0, %v1856
  %v1858 = vrcp.pop %v1849
  %v1859 = vmul.f32 1.0, %v1858
  %v1860 = vrcp.pop %v1850
  %v1861 = vmul.f32 1.0, %v1860
  %v1862 = vrcp.pop %v1851
  %v1863 = vmul.f32 1.0, %v1862
  %v1864 = vtanh.pop %v1823
  %v1865 = vtanh.pop %v1827
  %v1866 = vmul.f32 %v1855, %v1718
  %v1867 = vmul.f32 %v1861, %v1719
  %v1868 = vmul.f32 %v1853, %v1864
  %v1869 = vmul.f32 %v1859, %v1865
  %v1870 = vadd.f32 %v1866, %v1868
  %v1871 = vadd.f32 %v1867, %v1869
  %v1872 = vtanh.pop %v1870
  %v1873 = vtanh.pop %v1871
  %v1874 = vmul.f32 %v1857, %v1872
  %v1875 = vmul.f32 %v1863, %v1873
  %s1876 = sadd.s32 %s35, 6
  %p1877 = scmp.lt.s32.totalorder %s1876, %s36
  %s1878 = scalar_select %p1877, 1, 0
  %v1879 = vstv %s1878
  %vm1880 = vcmp.eq.s32.totalorder %v1879, 1
  %v1881 = vsel %vm1880, %v1874, %v1716
  %v1882 = vsel %vm1880, %v1875, %v1717
  %v1883 = vsel %vm1880, %v1870, %v1718
  %v1884 = vsel %vm1880, %v1871, %v1719
  %v1885 = vpack.c.bf16 %v1882, %v1881
  %s1886 = scalar_lea.vmem [#allocation3], 48
  %1887 = vst [vmem:[%s1886] sm:$0xff] %v1885
  %s1888 = smul.u32 14, 4
  %s1889 = smul.addr %s1888, 8
  %s1890 = scalar_lea.vmem [#allocation2], %s1889
  %v1891 = vld [vmem:[%s1890] sm:$0xff]
  %v1892 = vld [vmem:[%s1890 + $0x8] sm:$0xff]
  %v1893 = vld [vmem:[%s1890 + $0x10] sm:$0xff]
  %v1894 = vld [vmem:[%s1890 + $0x18] sm:$0xff]
  %v1895 = vld [vmem:[%s1890 + $0x20] sm:$0xff]
  %v1896 = vld [vmem:[%s1890 + $0x28] sm:$0xff]
  %v1897 = vld [vmem:[%s1890 + $0x30] sm:$0xff]
  %v1898 = vld [vmem:[%s1890 + $0x38] sm:$0xff]
  %1899 = vmatprep.subr.bf16.mxu0 %v683
  %1900 = vmatpush1.bf16.msra.mxu0 %v682
  %1901 = vmatprep.subr.bf16.mxu0 %v687
  %1902 = vmatpush1.bf16.msra.mxu0 %v686
  %1903 = vmatprep.subr.bf16.mxu0 %v691
  %1904 = vmatpush1.bf16.msra.mxu0 %v690
  %1905 = vmatprep.subr.bf16.mxu0 %v695
  %1906 = vmatpush1.bf16.msra.mxu0 %v694
  %1907 = vmatprep.subr.bf16.mxu0 %v699
  %1908 = vmatpush1.bf16.msra.mxu0 %v698
  %1909 = vmatprep.subr.bf16.mxu0 %v703
  %1910 = vmatpush1.bf16.msra.mxu0 %v702
  %1911 = vmatprep.subr.bf16.mxu0 %v707
  %1912 = vmatpush1.bf16.msra.mxu0 %v706
  %1913 = vmatprep.subr.bf16.mxu0 %v711
  %1914 = vmatpush1.bf16.msra.mxu0 %v710
  %1915 = vmatprep.subr.bf16.mxu0 0
  %1916 = vmatpush1.bf16.msra.mxu0 0
  %1917 = vmatprep.subr.bf16.mxu0 0
  %1918 = vmatpush1.bf16.msra.mxu0 0
  %1919 = vmatprep.subr.bf16.mxu0 0
  %1920 = vmatpush1.bf16.msra.mxu0 0
  %1921 = vmatprep.subr.bf16.mxu0 0
  %1922 = vmatpush1.bf16.msra.mxu0 0
  %1923 = vmatprep.subr.bf16.mxu0 0
  %1924 = vmatpush1.bf16.msra.mxu0 0
  %1925 = vmatprep.subr.bf16.mxu0 0
  %1926 = vmatpush1.bf16.msra.mxu0 0
  %1927 = vmatprep.subr.bf16.mxu0 0
  %1928 = vmatpush1.bf16.msra.mxu0 0
  %1929 = vmatprep.subr.bf16.mxu0 0
  %1930 = vmatpush1.bf16.msra.mxu0 0
  %1931 = vmatprep.mubr.bf16.mxu0 0
  %1932 = vmatmul.mubr.bf16.gmra.mrb[0].mxu0 %v1885
  %v1933 = vpop.f32.mrb[0].mxu0
  %v1934 = vadd.f32 0.0, %v1933
  %v1935 = vpop.f32.mrb[0].mxu0
  %v1936 = vadd.f32 0.0, %v1935
  %v1937 = vpop.f32.mrb[0].mxu0
  %v1938 = vadd.f32 0.0, %v1937
  %v1939 = vpop.f32.mrb[0].mxu0
  %v1940 = vadd.f32 0.0, %v1939
  %1941 = vdwg.mxu0
  %1942 = vmatprep.subr.bf16.mxu0 %v685
  %1943 = vmatpush1.bf16.msra.mxu0 %v684
  %1944 = vmatprep.subr.bf16.mxu0 %v689
  %1945 = vmatpush1.bf16.msra.mxu0 %v688
  %1946 = vmatprep.subr.bf16.mxu0 %v693
  %1947 = vmatpush1.bf16.msra.mxu0 %v692
  %1948 = vmatprep.subr.bf16.mxu0 %v697
  %1949 = vmatpush1.bf16.msra.mxu0 %v696
  %1950 = vmatprep.subr.bf16.mxu0 %v701
  %1951 = vmatpush1.bf16.msra.mxu0 %v700
  %1952 = vmatprep.subr.bf16.mxu0 %v705
  %1953 = vmatpush1.bf16.msra.mxu0 %v704
  %1954 = vmatprep.subr.bf16.mxu0 %v709
  %1955 = vmatpush1.bf16.msra.mxu0 %v708
  %1956 = vmatprep.subr.bf16.mxu0 %v713
  %1957 = vmatpush1.bf16.msra.mxu0 %v712
  %1958 = vmatprep.subr.bf16.mxu0 0
  %1959 = vmatpush1.bf16.msra.mxu0 0
  %1960 = vmatprep.subr.bf16.mxu0 0
  %1961 = vmatpush1.bf16.msra.mxu0 0
  %1962 = vmatprep.subr.bf16.mxu0 0
  %1963 = vmatpush1.bf16.msra.mxu0 0
  %1964 = vmatprep.subr.bf16.mxu0 0
  %1965 = vmatpush1.bf16.msra.mxu0 0
  %1966 = vmatprep.subr.bf16.mxu0 0
  %1967 = vmatpush1.bf16.msra.mxu0 0
  %1968 = vmatprep.subr.bf16.mxu0 0
  %1969 = vmatpush1.bf16.msra.mxu0 0
  %1970 = vmatprep.subr.bf16.mxu0 0
  %1971 = vmatpush1.bf16.msra.mxu0 0
  %1972 = vmatprep.subr.bf16.mxu0 0
  %1973 = vmatpush1.bf16.msra.mxu0 0
  %1974 = vmatprep.mubr.bf16.mxu0 0
  %1975 = vmatmul.mubr.bf16.gmra.mrb[0].mxu0 %v1885
  %v1976 = vpop.f32.mrb[0].mxu0
  %v1977 = vadd.f32 0.0, %v1976
  %v1978 = vpop.f32.mrb[0].mxu0
  %v1979 = vadd.f32 0.0, %v1978
  %v1980 = vpop.f32.mrb[0].mxu0
  %v1981 = vadd.f32 0.0, %v1980
  %v1982 = vpop.f32.mrb[0].mxu0
  %v1983 = vadd.f32 0.0, %v1982
  %1984 = vdwg.mxu0
  %v1985 = vadd.f32 %v1891, %v1934
  %v1986 = vadd.f32 %v1892, %v1936
  %v1987 = vadd.f32 %v1893, %v1977
  %v1988 = vadd.f32 %v1894, %v1979
  %v1989 = vadd.f32 %v1895, %v1938
  %v1990 = vadd.f32 %v1896, %v1940
  %v1991 = vadd.f32 %v1897, %v1981
  %v1992 = vadd.f32 %v1898, %v1983
  %v1993 = vxor.u32 %v1985, 2147483648
  %v1994 = vxor.u32 %v1986, 2147483648
  %v1995 = vxor.u32 %v1987, 2147483648
  %v1996 = vxor.u32 %v1989, 2147483648
  %v1997 = vxor.u32 %v1990, 2147483648
  %v1998 = vxor.u32 %v1991, 2147483648
  %v1999 = vmul.f32 %v1993, 1.442695
  %v2000 = vpow.pop %v1999
  %v2001 = vmul.f32 %v1994, 1.442695
  %v2002 = vpow.pop %v2001
  %v2003 = vmul.f32 %v1995, 1.442695
  %v2004 = vpow.pop %v2003
  %v2005 = vmul.f32 %v1996, 1.442695
  %v2006 = vpow.pop %v2005
  %v2007 = vmul.f32 %v1997, 1.442695
  %v2008 = vpow.pop %v2007
  %v2009 = vmul.f32 %v1998, 1.442695
  %v2010 = vpow.pop %v2009
  %v2011 = vadd.f32 %v2000, 1.0
  %v2012 = vadd.f32 %v2002, 1.0
  %v2013 = vadd.f32 %v2004, 1.0
  %v2014 = vadd.f32 %v2006, 1.0
  %v2015 = vadd.f32 %v2008, 1.0
  %v2016 = vadd.f32 %v2010, 1.0
  %v2017 = vrcp.pop %v2011
  %v2018 = vmul.f32 1.0, %v2017
  %v2019 = vrcp.pop %v2012
  %v2020 = vmul.f32 1.0, %v2019
  %v2021 = vrcp.pop %v2013
  %v2022 = vmul.f32 1.0, %v2021
  %v2023 = vrcp.pop %v2014
  %v2024 = vmul.f32 1.0, %v2023
  %v2025 = vrcp.pop %v2015
  %v2026 = vmul.f32 1.0, %v2025
  %v2027 = vrcp.pop %v2016
  %v2028 = vmul.f32 1.0, %v2027
  %v2029 = vtanh.pop %v1988
  %v2030 = vtanh.pop %v1992
  %v2031 = vmul.f32 %v2020, %v1883
  %v2032 = vmul.f32 %v2026, %v1884
  %v2033 = vmul.f32 %v2018, %v2029
  %v2034 = vmul.f32 %v2024, %v2030
  %v2035 = vadd.f32 %v2031, %v2033
  %v2036 = vadd.f32 %v2032, %v2034
  %v2037 = vtanh.pop %v2035
  %v2038 = vtanh.pop %v2036
  %v2039 = vmul.f32 %v2022, %v2037
  %v2040 = vmul.f32 %v2028, %v2038
  %s2041 = sadd.s32 %s35, 7
  %p2042 = scmp.lt.s32.totalorder %s2041, %s36
  %s2043 = scalar_select %p2042, 1, 0
  %v2044 = vstv %s2043
  %vm2045 = vcmp.eq.s32.totalorder %v2044, 1
  %v2046 = vsel %vm2045, %v2039, %v1881
  %v2047 = vsel %vm2045, %v2040, %v1882
  %v2048 = vsel %vm2045, %v2035, %v1883
  %v2049 = vsel %vm2045, %v2036, %v1884
  %v2050 = vpack.c.bf16 %v2047, %v2046
  %s2051 = scalar_lea.vmem [#allocation3], 56
  %2052 = vst [vmem:[%s2051] sm:$0xff] %v2050
  %2053 = vst [vmem:[#allocation5] sm:$0xff] %v2046
  %2054 = vst [vmem:[#allocation5 + $0x8] sm:$0xff] %v2047
  %2055 = vst [vmem:[#allocation6] sm:$0xff] %v2048
  %2056 = vst [vmem:[#allocation6 + $0x8] sm:$0xff] %v2049
  %v2057 = vld [vmem:[#allocation3] sm:$0xff]
  %v2058 = vld [vmem:[#allocation3 + $0x8] sm:$0xff]
  %v2059 = vld [vmem:[#allocation3 + $0x10] sm:$0xff]
  %v2060 = vld [vmem:[#allocation3 + $0x18] sm:$0xff]
  %v2061 = vld [vmem:[#allocation3 + $0x20] sm:$0xff]
  %v2062 = vld [vmem:[#allocation3 + $0x28] sm:$0xff]
  %v2063 = vld [vmem:[#allocation3 + $0x30] sm:$0xff]
  %v2064 = vld [vmem:[#allocation3 + $0x38] sm:$0xff]
  %v2065 = vld [vmem:[%s5] sm:$0xff]
  %v2066 = vld [vmem:[%s5 + $0x8] sm:$0xff]
  %v2067 = vld [vmem:[%s5 + $0x10] sm:$0xff]
  %v2068 = vld [vmem:[%s5 + $0x18] sm:$0xff]
  %v2069 = vld [vmem:[%s5 + $0x20] sm:$0xff]
  %v2070 = vld [vmem:[%s5 + $0x28] sm:$0xff]
  %v2071 = vld [vmem:[%s5 + $0x30] sm:$0xff]
  %v2072 = vld [vmem:[%s5 + $0x38] sm:$0xff]
  %v2073 = vld [vmem:[%s5 + $0x40] sm:$0xff]
  %v2074 = vld [vmem:[%s5 + $0x48] sm:$0xff]
  %v2075 = vld [vmem:[%s5 + $0x50] sm:$0xff]
  %v2076 = vld [vmem:[%s5 + $0x58] sm:$0xff]
  %v2077 = vld [vmem:[%s5 + $0x60] sm:$0xff]
  %v2078 = vld [vmem:[%s5 + $0x68] sm:$0xff]
  %v2079 = vld [vmem:[%s5 + $0x70] sm:$0xff]
  %v2080 = vld [vmem:[%s5 + $0x78] sm:$0xff]
  %v2081 = vld [vmem:[%s5 + $0x80] sm:$0xff]
  %v2082 = vld [vmem:[%s5 + $0x88] sm:$0xff]
  %v2083 = vld [vmem:[%s5 + $0x90] sm:$0xff]
  %v2084 = vld [vmem:[%s5 + $0x98] sm:$0xff]
  %v2085 = vld [vmem:[%s5 + $0xa0] sm:$0xff]
  %v2086 = vld [vmem:[%s5 + $0xa8] sm:$0xff]
  %v2087 = vld [vmem:[%s5 + $0xb0] sm:$0xff]
  %v2088 = vld [vmem:[%s5 + $0xb8] sm:$0xff]
  %v2089 = vld [vmem:[%s5 + $0xc0] sm:$0xff]
  %v2090 = vld [vmem:[%s5 + $0xc8] sm:$0xff]
  %v2091 = vld [vmem:[%s5 + $0xd0] sm:$0xff]
  %v2092 = vld [vmem:[%s5 + $0xd8] sm:$0xff]
  %v2093 = vld [vmem:[%s5 + $0xe0] sm:$0xff]
  %v2094 = vld [vmem:[%s5 + $0xe8] sm:$0xff]
  %v2095 = vld [vmem:[%s5 + $0xf0] sm:$0xff]
  %v2096 = vld [vmem:[%s5 + $0xf8] sm:$0xff]
  %v2097 = vld [vmem:[%s7] sm:$0xf]
  %v2099 = vlaneseq
  %v2100 = vshrl.u32 %v2099, 7
  %v2101 = vsub.s32 0, %v2100
  %v2102 = vrot.slane %v2097, %v2101
  %v2103 = vlaneseq
  %v2104 = vshrl.u32 %v2103, 7
  %v2105 = vsub.s32 1, %v2104
  %v2106 = vrot.slane %v2097, %v2105
  %v2107 = vlaneseq
  %v2108 = vshrl.u32 %v2107, 7
  %v2109 = vsub.s32 2, %v2108
  %v2110 = vrot.slane %v2097, %v2109
  %v2111 = vlaneseq
  %v2112 = vshrl.u32 %v2111, 7
  %v2113 = vsub.s32 3, %v2112
  %v2114 = vrot.slane %v2097, %v2113
  %v2151 = vunpack.c.l.b16 %v2065
  %v2152 = vunpack.c.h.b16 %v2065
  %v2153 = vunpack.c.l.b16 %v2066
  %v2154 = vunpack.c.h.b16 %v2066
  %v2155 = vunpack.c.l.b16 %v2067
  %v2156 = vunpack.c.h.b16 %v2067
  %v2157 = vunpack.c.l.b16 %v2068
  %v2158 = vunpack.c.h.b16 %v2068
  %v2159 = vunpack.c.l.b16 %v2069
  %v2160 = vunpack.c.h.b16 %v2069
  %v2161 = vunpack.c.l.b16 %v2070
  %v2162 = vunpack.c.h.b16 %v2070
  %v2163 = vunpack.c.l.b16 %v2071
  %v2164 = vunpack.c.h.b16 %v2071
  %v2165 = vunpack.c.l.b16 %v2072
  %v2166 = vunpack.c.h.b16 %v2072
  %v2167 = vunpack.c.l.b16 %v2073
  %v2168 = vunpack.c.h.b16 %v2073
  %v2169 = vunpack.c.l.b16 %v2074
  %v2170 = vunpack.c.h.b16 %v2074
  %v2171 = vunpack.c.l.b16 %v2075
  %v2172 = vunpack.c.h.b16 %v2075
  %v2173 = vunpack.c.l.b16 %v2076
  %v2174 = vunpack.c.h.b16 %v2076
  %v2175 = vunpack.c.l.b16 %v2077
  %v2176 = vunpack.c.h.b16 %v2077
  %v2177 = vunpack.c.l.b16 %v2078
  %v2178 = vunpack.c.h.b16 %v2078
  %v2179 = vunpack.c.l.b16 %v2079
  %v2180 = vunpack.c.h.b16 %v2079
  %v2181 = vunpack.c.l.b16 %v2080
  %v2182 = vunpack.c.h.b16 %v2080
  %v2183 = vunpack.c.l.b16 %v2081
  %v2184 = vunpack.c.h.b16 %v2081
  %v2185 = vunpack.c.l.b16 %v2082
  %v2186 = vunpack.c.h.b16 %v2082
  %v2187 = vunpack.c.l.b16 %v2083
  %v2188 = vunpack.c.h.b16 %v2083
  %v2189 = vunpack.c.l.b16 %v2084
  %v2190 = vunpack.c.h.b16 %v2084
  %v2191 = vunpack.c.l.b16 %v2085
  %v2192 = vunpack.c.h.b16 %v2085
  %v2193 = vunpack.c.l.b16 %v2086
  %v2194 = vunpack.c.h.b16 %v2086
  %v2195 = vunpack.c.l.b16 %v2087
  %v2196 = vunpack.c.h.b16 %v2087
  %v2197 = vunpack.c.l.b16 %v2088
  %v2198 = vunpack.c.h.b16 %v2088
  %v2199 = vunpack.c.l.b16 %v2089
  %v2200 = vunpack.c.h.b16 %v2089
  %v2201 = vunpack.c.l.b16 %v2090
  %v2202 = vunpack.c.h.b16 %v2090
  %v2203 = vunpack.c.l.b16 %v2091
  %v2204 = vunpack.c.h.b16 %v2091
  %v2205 = vunpack.c.l.b16 %v2092
  %v2206 = vunpack.c.h.b16 %v2092
  %v2207 = vunpack.c.l.b16 %v2093
  %v2208 = vunpack.c.h.b16 %v2093
  %v2209 = vunpack.c.l.b16 %v2094
  %v2210 = vunpack.c.h.b16 %v2094
  %v2211 = vunpack.c.l.b16 %v2095
  %v2212 = vunpack.c.h.b16 %v2095
  %v2213 = vunpack.c.l.b16 %v2096
  %v2214 = vunpack.c.h.b16 %v2096
  %v2215 = vpack.c.b16 %v2155, %v2151
  %v2216 = vpack.c.b16 %v2156, %v2152
  %v2217 = vpack.c.b16 %v2157, %v2153
  %v2218 = vpack.c.b16 %v2158, %v2154
  %v2219 = vpack.c.b16 %v2163, %v2159
  %v2220 = vpack.c.b16 %v2164, %v2160
  %v2221 = vpack.c.b16 %v2165, %v2161
  %v2222 = vpack.c.b16 %v2166, %v2162
  %v2223 = vpack.c.b16 %v2171, %v2167
  %v2224 = vpack.c.b16 %v2172, %v2168
  %v2225 = vpack.c.b16 %v2173, %v2169
  %v2226 = vpack.c.b16 %v2174, %v2170
  %v2227 = vpack.c.b16 %v2179, %v2175
  %v2228 = vpack.c.b16 %v2180, %v2176
  %v2229 = vpack.c.b16 %v2181, %v2177
  %v2230 = vpack.c.b16 %v2182, %v2178
  %v2231 = vpack.c.b16 %v2187, %v2183
  %v2232 = vpack.c.b16 %v2188, %v2184
  %v2233 = vpack.c.b16 %v2189, %v2185
  %v2234 = vpack.c.b16 %v2190, %v2186
  %v2235 = vpack.c.b16 %v2195, %v2191
  %v2236 = vpack.c.b16 %v2196, %v2192
  %v2237 = vpack.c.b16 %v2197, %v2193
  %v2238 = vpack.c.b16 %v2198, %v2194
  %v2239 = vpack.c.b16 %v2203, %v2199
  %v2240 = vpack.c.b16 %v2204, %v2200
  %v2241 = vpack.c.b16 %v2205, %v2201
  %v2242 = vpack.c.b16 %v2206, %v2202
  %v2243 = vpack.c.b16 %v2211, %v2207
  %v2244 = vpack.c.b16 %v2212, %v2208
  %v2245 = vpack.c.b16 %v2213, %v2209
  %v2246 = vpack.c.b16 %v2214, %v2210
  %2279 = vmatprep.subr.bf16.mxu0 %v2216
  %2280 = vmatpush1.bf16.msra.mxu0 %v2215
  %2281 = vmatprep.subr.bf16.mxu0 %v2220
  %2282 = vmatpush1.bf16.msra.mxu0 %v2219
  %2283 = vmatprep.subr.bf16.mxu0 %v2224
  %2284 = vmatpush1.bf16.msra.mxu0 %v2223
  %2285 = vmatprep.subr.bf16.mxu0 %v2228
  %2286 = vmatpush1.bf16.msra.mxu0 %v2227
  %2287 = vmatprep.subr.bf16.mxu0 %v2232
  %2288 = vmatpush1.bf16.msra.mxu0 %v2231
  %2289 = vmatprep.subr.bf16.mxu0 %v2236
  %2290 = vmatpush1.bf16.msra.mxu0 %v2235
  %2291 = vmatprep.subr.bf16.mxu0 %v2240
  %2292 = vmatpush1.bf16.msra.mxu0 %v2239
  %2293 = vmatprep.subr.bf16.mxu0 %v2244
  %2294 = vmatpush1.bf16.msra.mxu0 %v2243
  %2295 = vmatprep.subr.bf16.mxu0 0
  %2296 = vmatpush1.bf16.msra.mxu0 0
  %2297 = vmatprep.subr.bf16.mxu0 0
  %2298 = vmatpush1.bf16.msra.mxu0 0
  %2299 = vmatprep.subr.bf16.mxu0 0
  %2300 = vmatpush1.bf16.msra.mxu0 0
  %2301 = vmatprep.subr.bf16.mxu0 0
  %2302 = vmatpush1.bf16.msra.mxu0 0
  %2303 = vmatprep.subr.bf16.mxu0 0
  %2304 = vmatpush1.bf16.msra.mxu0 0
  %2305 = vmatprep.subr.bf16.mxu0 0
  %2306 = vmatpush1.bf16.msra.mxu0 0
  %2307 = vmatprep.subr.bf16.mxu0 0
  %2308 = vmatpush1.bf16.msra.mxu0 0
  %2309 = vmatprep.subr.bf16.mxu0 0
  %2310 = vmatpush1.bf16.msra.mxu0 0
  %2311 = vmatprep.mubr.bf16.mxu0 0
  %2312 = vmatmul.mubr.bf16.gmra.mrb[0].mxu0 %v2057
  %v2313 = vpop.f32.mrb[0].mxu0
  %v2314 = vadd.f32 %v2102, %v2313
  %v2315 = vpop.f32.mrb[0].mxu0
  %v2316 = vadd.f32 %v2106, %v2315
  %v2317 = vpop.f32.mrb[0].mxu0
  %v2318 = vadd.f32 %v2102, %v2317
  %v2319 = vpop.f32.mrb[0].mxu0
  %v2320 = vadd.f32 %v2106, %v2319
  %2321 = vmatprep.mubr.bf16.mxu0 0
  %2322 = vmatmul.mubr.bf16.gmra.mrb[0].mxu0 %v2058
  %v2323 = vpop.f32.mrb[0].mxu0
  %v2324 = vadd.f32 %v2102, %v2323
  %v2325 = vpop.f32.mrb[0].mxu0
  %v2326 = vadd.f32 %v2106, %v2325
  %v2327 = vpop.f32.mrb[0].mxu0
  %v2328 = vadd.f32 %v2102, %v2327
  %v2329 = vpop.f32.mrb[0].mxu0
  %v2330 = vadd.f32 %v2106, %v2329
  %2331 = vmatprep.mubr.bf16.mxu0 0
  %2332 = vmatmul.mubr.bf16.gmra.mrb[0].mxu0 %v2059
  %v2333 = vpop.f32.mrb[0].mxu0
  %v2334 = vadd.f32 %v2102, %v2333
  %v2335 = vpop.f32.mrb[0].mxu0
  %v2336 = vadd.f32 %v2106, %v2335
  %v2337 = vpop.f32.mrb[0].mxu0
  %v2338 = vadd.f32 %v2102, %v2337
  %v2339 = vpop.f32.mrb[0].mxu0
  %v2340 = vadd.f32 %v2106, %v2339
  %2341 = vmatprep.mubr.bf16.mxu0 0
  %2342 = vmatmul.mubr.bf16.gmra.mrb[0].mxu0 %v2060
  %v2343 = vpop.f32.mrb[0].mxu0
  %v2344 = vadd.f32 %v2102, %v2343
  %v2345 = vpop.f32.mrb[0].mxu0
  %v2346 = vadd.f32 %v2106, %v2345
  %v2347 = vpop.f32.mrb[0].mxu0
  %v2348 = vadd.f32 %v2102, %v2347
  %v2349 = vpop.f32.mrb[0].mxu0
  %v2350 = vadd.f32 %v2106, %v2349
  %2351 = vmatprep.mubr.bf16.mxu0 0
  %2352 = vmatmul.mubr.bf16.gmra.mrb[0].mxu0 %v2061
  %v2353 = vpop.f32.mrb[0].mxu0
  %v2354 = vadd.f32 %v2102, %v2353
  %v2355 = vpop.f32.mrb[0].mxu0
  %v2356 = vadd.f32 %v2106, %v2355
  %v2357 = vpop.f32.mrb[0].mxu0
  %v2358 = vadd.f32 %v2102, %v2357
  %v2359 = vpop.f32.mrb[0].mxu0
  %v2360 = vadd.f32 %v2106, %v2359
  %2361 = vmatprep.mubr.bf16.mxu0 0
  %2362 = vmatmul.mubr.bf16.gmra.mrb[0].mxu0 %v2062
  %v2363 = vpop.f32.mrb[0].mxu0
  %v2364 = vadd.f32 %v2102, %v2363
  %v2365 = vpop.f32.mrb[0].mxu0
  %v2366 = vadd.f32 %v2106, %v2365
  %v2367 = vpop.f32.mrb[0].mxu0
  %v2368 = vadd.f32 %v2102, %v2367
  %v2369 = vpop.f32.mrb[0].mxu0
  %v2370 = vadd.f32 %v2106, %v2369
  %2371 = vmatprep.mubr.bf16.mxu0 0
  %2372 = vmatmul.mubr.bf16.gmra.mrb[0].mxu0 %v2063
  %v2373 = vpop.f32.mrb[0].mxu0
  %v2374 = vadd.f32 %v2102, %v2373
  %v2375 = vpop.f32.mrb[0].mxu0
  %v2376 = vadd.f32 %v2106, %v2375
  %v2377 = vpop.f32.mrb[0].mxu0
  %v2378 = vadd.f32 %v2102, %v2377
  %v2379 = vpop.f32.mrb[0].mxu0
  %v2380 = vadd.f32 %v2106, %v2379
  %2381 = vmatprep.mubr.bf16.mxu0 0
  %2382 = vmatmul.mubr.bf16.gmra.mrb[0].mxu0 %v2064
  %v2383 = vpop.f32.mrb[0].mxu0
  %v2384 = vadd.f32 %v2102, %v2383
  %v2385 = vpop.f32.mrb[0].mxu0
  %v2386 = vadd.f32 %v2106, %v2385
  %v2387 = vpop.f32.mrb[0].mxu0
  %v2388 = vadd.f32 %v2102, %v2387
  %v2389 = vpop.f32.mrb[0].mxu0
  %v2390 = vadd.f32 %v2106, %v2389
  %2391 = vdwg.mxu0
  %2392 = vmatprep.subr.bf16.mxu0 %v2218
  %2393 = vmatpush1.bf16.msra.mxu0 %v2217
  %2394 = vmatprep.subr.bf16.mxu0 %v2222
  %2395 = vmatpush1.bf16.msra.mxu0 %v2221
  %2396 = vmatprep.subr.bf16.mxu0 %v2226
  %2397 = vmatpush1.bf16.msra.mxu0 %v2225
  %2398 = vmatprep.subr.bf16.mxu0 %v2230
  %2399 = vmatpush1.bf16.msra.mxu0 %v2229
  %2400 = vmatprep.subr.bf16.mxu0 %v2234
  %2401 = vmatpush1.bf16.msra.mxu0 %v2233
  %2402 = vmatprep.subr.bf16.mxu0 %v2238
  %2403 = vmatpush1.bf16.msra.mxu0 %v2237
  %2404 = vmatprep.subr.bf16.mxu0 %v2242
  %2405 = vmatpush1.bf16.msra.mxu0 %v2241
  %2406 = vmatprep.subr.bf16.mxu0 %v2246
  %2407 = vmatpush1.bf16.msra.mxu0 %v2245
  %2408 = vmatprep.subr.bf16.mxu0 0
  %2409 = vmatpush1.bf16.msra.mxu0 0
  %2410 = vmatprep.subr.bf16.mxu0 0
  %2411 = vmatpush1.bf16.msra.mxu0 0
  %2412 = vmatprep.subr.bf16.mxu0 0
  %2413 = vmatpush1.bf16.msra.mxu0 0
  %2414 = vmatprep.subr.bf16.mxu0 0
  %2415 = vmatpush1.bf16.msra.mxu0 0
  %2416 = vmatprep.subr.bf16.mxu0 0
  %2417 = vmatpush1.bf16.msra.mxu0 0
  %2418 = vmatprep.subr.bf16.mxu0 0
  %2419 = vmatpush1.bf16.msra.mxu0 0
  %2420 = vmatprep.subr.bf16.mxu0 0
  %2421 = vmatpush1.bf16.msra.mxu0 0
  %2422 = vmatprep.subr.bf16.mxu0 0
  %2423 = vmatpush1.bf16.msra.mxu0 0
  %2424 = vmatprep.mubr.bf16.mxu0 0
  %2425 = vmatmul.mubr.bf16.gmra.mrb[0].mxu0 %v2057
  %v2426 = vpop.f32.mrb[0].mxu0
  %v2427 = vadd.f32 %v2110, %v2426
  %v2428 = vpop.f32.mrb[0].mxu0
  %v2429 = vadd.f32 %v2114, %v2428
  %v2430 = vpop.f32.mrb[0].mxu0
  %v2431 = vadd.f32 %v2110, %v2430
  %v2432 = vpop.f32.mrb[0].mxu0
  %v2433 = vadd.f32 %v2114, %v2432
  %2434 = vmatprep.mubr.bf16.mxu0 0
  %2435 = vmatmul.mubr.bf16.gmra.mrb[0].mxu0 %v2058
  %v2436 = vpop.f32.mrb[0].mxu0
  %v2437 = vadd.f32 %v2110, %v2436
  %v2438 = vpop.f32.mrb[0].mxu0
  %v2439 = vadd.f32 %v2114, %v2438
  %v2440 = vpop.f32.mrb[0].mxu0
  %v2441 = vadd.f32 %v2110, %v2440
  %v2442 = vpop.f32.mrb[0].mxu0
  %v2443 = vadd.f32 %v2114, %v2442
  %2444 = vmatprep.mubr.bf16.mxu0 0
  %2445 = vmatmul.mubr.bf16.gmra.mrb[0].mxu0 %v2059
  %v2446 = vpop.f32.mrb[0].mxu0
  %v2447 = vadd.f32 %v2110, %v2446
  %v2448 = vpop.f32.mrb[0].mxu0
  %v2449 = vadd.f32 %v2114, %v2448
  %v2450 = vpop.f32.mrb[0].mxu0
  %v2451 = vadd.f32 %v2110, %v2450
  %v2452 = vpop.f32.mrb[0].mxu0
  %v2453 = vadd.f32 %v2114, %v2452
  %2454 = vmatprep.mubr.bf16.mxu0 0
  %2455 = vmatmul.mubr.bf16.gmra.mrb[0].mxu0 %v2060
  %v2456 = vpop.f32.mrb[0].mxu0
  %v2457 = vadd.f32 %v2110, %v2456
  %v2458 = vpop.f32.mrb[0].mxu0
  %v2459 = vadd.f32 %v2114, %v2458
  %v2460 = vpop.f32.mrb[0].mxu0
  %v2461 = vadd.f32 %v2110, %v2460
  %v2462 = vpop.f32.mrb[0].mxu0
  %v2463 = vadd.f32 %v2114, %v2462
  %2464 = vmatprep.mubr.bf16.mxu0 0
  %2465 = vmatmul.mubr.bf16.gmra.mrb[0].mxu0 %v2061
  %v2466 = vpop.f32.mrb[0].mxu0
  %v2467 = vadd.f32 %v2110, %v2466
  %v2468 = vpop.f32.mrb[0].mxu0
  %v2469 = vadd.f32 %v2114, %v2468
  %v2470 = vpop.f32.mrb[0].mxu0
  %v2471 = vadd.f32 %v2110, %v2470
  %v2472 = vpop.f32.mrb[0].mxu0
  %v2473 = vadd.f32 %v2114, %v2472
  %2474 = vmatprep.mubr.bf16.mxu0 0
  %2475 = vmatmul.mubr.bf16.gmra.mrb[0].mxu0 %v2062
  %v2476 = vpop.f32.mrb[0].mxu0
  %v2477 = vadd.f32 %v2110, %v2476
  %v2478 = vpop.f32.mrb[0].mxu0
  %v2479 = vadd.f32 %v2114, %v2478
  %v2480 = vpop.f32.mrb[0].mxu0
  %v2481 = vadd.f32 %v2110, %v2480
  %v2482 = vpop.f32.mrb[0].mxu0
  %v2483 = vadd.f32 %v2114, %v2482
  %2484 = vmatprep.mubr.bf16.mxu0 0
  %2485 = vmatmul.mubr.bf16.gmra.mrb[0].mxu0 %v2063
  %v2486 = vpop.f32.mrb[0].mxu0
  %v2487 = vadd.f32 %v2110, %v2486
  %v2488 = vpop.f32.mrb[0].mxu0
  %v2489 = vadd.f32 %v2114, %v2488
  %v2490 = vpop.f32.mrb[0].mxu0
  %v2491 = vadd.f32 %v2110, %v2490
  %v2492 = vpop.f32.mrb[0].mxu0
  %v2493 = vadd.f32 %v2114, %v2492
  %2494 = vmatprep.mubr.bf16.mxu0 0
  %2495 = vmatmul.mubr.bf16.gmra.mrb[0].mxu0 %v2064
  %v2496 = vpop.f32.mrb[0].mxu0
  %v2497 = vadd.f32 %v2110, %v2496
  %v2498 = vpop.f32.mrb[0].mxu0
  %v2499 = vadd.f32 %v2114, %v2498
  %v2500 = vpop.f32.mrb[0].mxu0
  %v2501 = vadd.f32 %v2110, %v2500
  %v2502 = vpop.f32.mrb[0].mxu0
  %v2503 = vadd.f32 %v2114, %v2502
  %2504 = vdwg.mxu0
  %2505 = vst [vmem:[#allocation4] sm:$0xff] %v2314
  %2506 = vst [vmem:[#allocation4 + $0x8] sm:$0xff] %v2316
  %2507 = vst [vmem:[#allocation4 + $0x10] sm:$0xff] %v2427
  %2508 = vst [vmem:[#allocation4 + $0x18] sm:$0xff] %v2429
  %2509 = vst [vmem:[#allocation4 + $0x20] sm:$0xff] %v2318
  %2510 = vst [vmem:[#allocation4 + $0x28] sm:$0xff] %v2320
  %2511 = vst [vmem:[#allocation4 + $0x30] sm:$0xff] %v2431
  %2512 = vst [vmem:[#allocation4 + $0x38] sm:$0xff] %v2433
  %2513 = vst [vmem:[#allocation4 + $0x40] sm:$0xff] %v2324
  %2514 = vst [vmem:[#allocation4 + $0x48] sm:$0xff] %v2326
  %2515 = vst [vmem:[#allocation4 + $0x50] sm:$0xff] %v2437
  %2516 = vst [vmem:[#allocation4 + $0x58] sm:$0xff] %v2439
  %2517 = vst [vmem:[#allocation4 + $0x60] sm:$0xff] %v2328
  %2518 = vst [vmem:[#allocation4 + $0x68] sm:$0xff] %v2330
  %2519 = vst [vmem:[#allocation4 + $0x70] sm:$0xff] %v2441
  %2520 = vst [vmem:[#allocation4 + $0x78] sm:$0xff] %v2443
  %2521 = vst [vmem:[#allocation4 + $0x80] sm:$0xff] %v2334
  %2522 = vst [vmem:[#allocation4 + $0x88] sm:$0xff] %v2336
  %2523 = vst [vmem:[#allocation4 + $0x90] sm:$0xff] %v2447
  %2524 = vst [vmem:[#allocation4 + $0x98] sm:$0xff] %v2449
  %2525 = vst [vmem:[#allocation4 + $0xa0] sm:$0xff] %v2338
  %2526 = vst [vmem:[#allocation4 + $0xa8] sm:$0xff] %v2340
  %2527 = vst [vmem:[#allocation4 + $0xb0] sm:$0xff] %v2451
  %2528 = vst [vmem:[#allocation4 + $0xb8] sm:$0xff] %v2453
  %2529 = vst [vmem:[#allocation4 + $0xc0] sm:$0xff] %v2344
  %2530 = vst [vmem:[#allocation4 + $0xc8] sm:$0xff] %v2346
  %2531 = vst [vmem:[#allocation4 + $0xd0] sm:$0xff] %v2457
  %2532 = vst [vmem:[#allocation4 + $0xd8] sm:$0xff] %v2459
  %2533 = vst [vmem:[#allocation4 + $0xe0] sm:$0xff] %v2348
  %2534 = vst [vmem:[#allocation4 + $0xe8] sm:$0xff] %v2350
  %2535 = vst [vmem:[#allocation4 + $0xf0] sm:$0xff] %v2461
  %2536 = vst [vmem:[#allocation4 + $0xf8] sm:$0xff] %v2463
  %2537 = vst [vmem:[#allocation4 + $0x100] sm:$0xff] %v2354
  %2538 = vst [vmem:[#allocation4 + $0x108] sm:$0xff] %v2356
  %2539 = vst [vmem:[#allocation4 + $0x110] sm:$0xff] %v2467
  %2540 = vst [vmem:[#allocation4 + $0x118] sm:$0xff] %v2469
  %2541 = vst [vmem:[#allocation4 + $0x120] sm:$0xff] %v2358
  %2542 = vst [vmem:[#allocation4 + $0x128] sm:$0xff] %v2360
  %2543 = vst [vmem:[#allocation4 + $0x130] sm:$0xff] %v2471
  %2544 = vst [vmem:[#allocation4 + $0x138] sm:$0xff] %v2473
  %2545 = vst [vmem:[#allocation4 + $0x140] sm:$0xff] %v2364
  %2546 = vst [vmem:[#allocation4 + $0x148] sm:$0xff] %v2366
  %2547 = vst [vmem:[#allocation4 + $0x150] sm:$0xff] %v2477
  %2548 = vst [vmem:[#allocation4 + $0x158] sm:$0xff] %v2479
  %2549 = vst [vmem:[#allocation4 + $0x160] sm:$0xff] %v2368
  %2550 = vst [vmem:[#allocation4 + $0x168] sm:$0xff] %v2370
  %2551 = vst [vmem:[#allocation4 + $0x170] sm:$0xff] %v2481
  %2552 = vst [vmem:[#allocation4 + $0x178] sm:$0xff] %v2483
  %2553 = vst [vmem:[#allocation4 + $0x180] sm:$0xff] %v2374
  %2554 = vst [vmem:[#allocation4 + $0x188] sm:$0xff] %v2376
  %2555 = vst [vmem:[#allocation4 + $0x190] sm:$0xff] %v2487
  %2556 = vst [vmem:[#allocation4 + $0x198] sm:$0xff] %v2489
  %2557 = vst [vmem:[#allocation4 + $0x1a0] sm:$0xff] %v2378
  %2558 = vst [vmem:[#allocation4 + $0x1a8] sm:$0xff] %v2380
  %2559 = vst [vmem:[#allocation4 + $0x1b0] sm:$0xff] %v2491
  %2560 = vst [vmem:[#allocation4 + $0x1b8] sm:$0xff] %v2493
  %2561 = vst [vmem:[#allocation4 + $0x1c0] sm:$0xff] %v2384
  %2562 = vst [vmem:[#allocation4 + $0x1c8] sm:$0xff] %v2386
  %2563 = vst [vmem:[#allocation4 + $0x1d0] sm:$0xff] %v2497
  %2564 = vst [vmem:[#allocation4 + $0x1d8] sm:$0xff] %v2499
  %2565 = vst [vmem:[#allocation4 + $0x1e0] sm:$0xff] %v2388
  %2566 = vst [vmem:[#allocation4 + $0x1e8] sm:$0xff] %v2390
  %2567 = vst [vmem:[#allocation4 + $0x1f0] sm:$0xff] %v2501
  %2568 = vst [vmem:[#allocation4 + $0x1f8] sm:$0xff] %v2503
  %v2569 = vld [vmem:[%s6] sm:$0xff]
  %v2570 = vld [vmem:[%s6 + $0x8] sm:$0xff]
  %v2571 = vld [vmem:[%s6 + $0x10] sm:$0xff]
  %v2572 = vld [vmem:[%s6 + $0x18] sm:$0xff]
  %v2573 = vld [vmem:[%s6 + $0x20] sm:$0xff]
  %v2574 = vld [vmem:[%s6 + $0x28] sm:$0xff]
  %v2575 = vld [vmem:[%s6 + $0x30] sm:$0xff]
  %v2576 = vld [vmem:[%s6 + $0x38] sm:$0xff]
  %v2577 = vld [vmem:[%s6 + $0x40] sm:$0xff]
  %v2578 = vld [vmem:[%s6 + $0x48] sm:$0xff]
  %v2579 = vld [vmem:[%s6 + $0x50] sm:$0xff]
  %v2580 = vld [vmem:[%s6 + $0x58] sm:$0xff]
  %v2581 = vld [vmem:[%s6 + $0x60] sm:$0xff]
  %v2582 = vld [vmem:[%s6 + $0x68] sm:$0xff]
  %v2583 = vld [vmem:[%s6 + $0x70] sm:$0xff]
  %v2584 = vld [vmem:[%s6 + $0x78] sm:$0xff]
  %v2585 = vld [vmem:[%s6 + $0x80] sm:$0xff]
  %v2586 = vld [vmem:[%s6 + $0x88] sm:$0xff]
  %v2587 = vld [vmem:[%s6 + $0x90] sm:$0xff]
  %v2588 = vld [vmem:[%s6 + $0x98] sm:$0xff]
  %v2589 = vld [vmem:[%s6 + $0xa0] sm:$0xff]
  %v2590 = vld [vmem:[%s6 + $0xa8] sm:$0xff]
  %v2591 = vld [vmem:[%s6 + $0xb0] sm:$0xff]
  %v2592 = vld [vmem:[%s6 + $0xb8] sm:$0xff]
  %v2593 = vld [vmem:[%s6 + $0xc0] sm:$0xff]
  %v2594 = vld [vmem:[%s6 + $0xc8] sm:$0xff]
  %v2595 = vld [vmem:[%s6 + $0xd0] sm:$0xff]
  %v2596 = vld [vmem:[%s6 + $0xd8] sm:$0xff]
  %v2597 = vld [vmem:[%s6 + $0xe0] sm:$0xff]
  %v2598 = vld [vmem:[%s6 + $0xe8] sm:$0xff]
  %v2599 = vld [vmem:[%s6 + $0xf0] sm:$0xff]
  %v2600 = vld [vmem:[%s6 + $0xf8] sm:$0xff]
  %v2601 = vld [vmem:[#allocation7] sm:$0xff]
  %v2602 = vld [vmem:[#allocation7 + $0x8] sm:$0xff]
  %v2603 = vld [vmem:[#allocation8] sm:$0xff]
  %v2604 = vld [vmem:[#allocation8 + $0x8] sm:$0xff]
  %s2605 = smul.addr %s574, 8
  %s2606 = scalar_lea.vmem [#allocation4], %s2605
  %v2607 = vld [vmem:[%s2606] sm:$0xff]
  %v2608 = vld [vmem:[%s2606 + $0x8] sm:$0xff]
  %v2609 = vld [vmem:[%s2606 + $0x10] sm:$0xff]
  %v2610 = vld [vmem:[%s2606 + $0x18] sm:$0xff]
  %v2611 = vld [vmem:[%s2606 + $0x20] sm:$0xff]
  %v2612 = vld [vmem:[%s2606 + $0x28] sm:$0xff]
  %v2613 = vld [vmem:[%s2606 + $0x30] sm:$0xff]
  %v2614 = vld [vmem:[%s2606 + $0x38] sm:$0xff]
  %v2615 = vpack.c.bf16 %v2602, %v2601
  %v2648 = vunpack.c.l.b16 %v2569
  %v2649 = vunpack.c.h.b16 %v2569
  %v2650 = vunpack.c.l.b16 %v2570
  %v2651 = vunpack.c.h.b16 %v2570
  %v2652 = vunpack.c.l.b16 %v2571
  %v2653 = vunpack.c.h.b16 %v2571
  %v2654 = vunpack.c.l.b16 %v2572
  %v2655 = vunpack.c.h.b16 %v2572
  %v2656 = vunpack.c.l.b16 %v2573
  %v2657 = vunpack.c.h.b16 %v2573
  %v2658 = vunpack.c.l.b16 %v2574
  %v2659 = vunpack.c.h.b16 %v2574
  %v2660 = vunpack.c.l.b16 %v2575
  %v2661 = vunpack.c.h.b16 %v2575
  %v2662 = vunpack.c.l.b16 %v2576
  %v2663 = vunpack.c.h.b16 %v2576
  %v2664 = vunpack.c.l.b16 %v2577
  %v2665 = vunpack.c.h.b16 %v2577
  %v2666 = vunpack.c.l.b16 %v2578
  %v2667 = vunpack.c.h.b16 %v2578
  %v2668 = vunpack.c.l.b16 %v2579
  %v2669 = vunpack.c.h.b16 %v2579
  %v2670 = vunpack.c.l.b16 %v2580
  %v2671 = vunpack.c.h.b16 %v2580
  %v2672 = vunpack.c.l.b16 %v2581
  %v2673 = vunpack.c.h.b16 %v2581
  %v2674 = vunpack.c.l.b16 %v2582
  %v2675 = vunpack.c.h.b16 %v2582
  %v2676 = vunpack.c.l.b16 %v2583
  %v2677 = vunpack.c.h.b16 %v2583
  %v2678 = vunpack.c.l.b16 %v2584
  %v2679 = vunpack.c.h.b16 %v2584
  %v2680 = vunpack.c.l.b16 %v2585
  %v2681 = vunpack.c.h.b16 %v2585
  %v2682 = vunpack.c.l.b16 %v2586
  %v2683 = vunpack.c.h.b16 %v2586
  %v2684 = vunpack.c.l.b16 %v2587
  %v2685 = vunpack.c.h.b16 %v2587
  %v2686 = vunpack.c.l.b16 %v2588
  %v2687 = vunpack.c.h.b16 %v2588
  %v2688 = vunpack.c.l.b16 %v2589
  %v2689 = vunpack.c.h.b16 %v2589
  %v2690 = vunpack.c.l.b16 %v2590
  %v2691 = vunpack.c.h.b16 %v2590
  %v2692 = vunpack.c.l.b16 %v2591
  %v2693 = vunpack.c.h.b16 %v2591
  %v2694 = vunpack.c.l.b16 %v2592
  %v2695 = vunpack.c.h.b16 %v2592
  %v2696 = vunpack.c.l.b16 %v2593
  %v2697 = vunpack.c.h.b16 %v2593
  %v2698 = vunpack.c.l.b16 %v2594
  %v2699 = vunpack.c.h.b16 %v2594
  %v2700 = vunpack.c.l.b16 %v2595
  %v2701 = vunpack.c.h.b16 %v2595
  %v2702 = vunpack.c.l.b16 %v2596
  %v2703 = vunpack.c.h.b16 %v2596
  %v2704 = vunpack.c.l.b16 %v2597
  %v2705 = vunpack.c.h.b16 %v2597
  %v2706 = vunpack.c.l.b16 %v2598
  %v2707 = vunpack.c.h.b16 %v2598
  %v2708 = vunpack.c.l.b16 %v2599
  %v2709 = vunpack.c.h.b16 %v2599
  %v2710 = vunpack.c.l.b16 %v2600
  %v2711 = vunpack.c.h.b16 %v2600
  %v2712 = vpack.c.b16 %v2652, %v2648
  %v2713 = vpack.c.b16 %v2653, %v2649
  %v2714 = vpack.c.b16 %v2654, %v2650
  %v2715 = vpack.c.b16 %v2655, %v2651
  %v2716 = vpack.c.b16 %v2660, %v2656
  %v2717 = vpack.c.b16 %v2661, %v2657
  %v2718 = vpack.c.b16 %v2662, %v2658
  %v2719 = vpack.c.b16 %v2663, %v2659
  %v2720 = vpack.c.b16 %v2668, %v2664
  %v2721 = vpack.c.b16 %v2669, %v2665
  %v2722 = vpack.c.b16 %v2670, %v2666
  %v2723 = vpack.c.b16 %v2671, %v2667
  %v2724 = vpack.c.b16 %v2676, %v2672
  %v2725 = vpack.c.b16 %v2677, %v2673
  %v2726 = vpack.c.b16 %v2678, %v2674
  %v2727 = vpack.c.b16 %v2679, %v2675
  %v2728 = vpack.c.b16 %v2684, %v2680
  %v2729 = vpack.c.b16 %v2685, %v2681
  %v2730 = vpack.c.b16 %v2686, %v2682
  %v2731 = vpack.c.b16 %v2687, %v2683
  %v2732 = vpack.c.b16 %v2692, %v2688
  %v2733 = vpack.c.b16 %v2693, %v2689
  %v2734 = vpack.c.b16 %v2694, %v2690
  %v2735 = vpack.c.b16 %v2695, %v2691
  %v2736 = vpack.c.b16 %v2700, %v2696
  %v2737 = vpack.c.b16 %v2701, %v2697
  %v2738 = vpack.c.b16 %v2702, %v2698
  %v2739 = vpack.c.b16 %v2703, %v2699
  %v2740 = vpack.c.b16 %v2708, %v2704
  %v2741 = vpack.c.b16 %v2709, %v2705
  %v2742 = vpack.c.b16 %v2710, %v2706
  %v2743 = vpack.c.b16 %v2711, %v2707
  %2776 = vmatprep.subr.bf16.mxu0 %v2713
  %2777 = vmatpush1.bf16.msra.mxu0 %v2712
  %2778 = vmatprep.subr.bf16.mxu0 %v2717
  %2779 = vmatpush1.bf16.msra.mxu0 %v2716
  %2780 = vmatprep.subr.bf16.mxu0 %v2721
  %2781 = vmatpush1.bf16.msra.mxu0 %v2720
  %2782 = vmatprep.subr.bf16.mxu0 %v2725
  %2783 = vmatpush1.bf16.msra.mxu0 %v2724
  %2784 = vmatprep.subr.bf16.mxu0 %v2729
  %2785 = vmatpush1.bf16.msra.mxu0 %v2728
  %2786 = vmatprep.subr.bf16.mxu0 %v2733
  %2787 = vmatpush1.bf16.msra.mxu0 %v2732
  %2788 = vmatprep.subr.bf16.mxu0 %v2737
  %2789 = vmatpush1.bf16.msra.mxu0 %v2736
  %2790 = vmatprep.subr.bf16.mxu0 %v2741
  %2791 = vmatpush1.bf16.msra.mxu0 %v2740
  %2792 = vmatprep.subr.bf16.mxu0 0
  %2793 = vmatpush1.bf16.msra.mxu0 0
  %2794 = vmatprep.subr.bf16.mxu0 0
  %2795 = vmatpush1.bf16.msra.mxu0 0
  %2796 = vmatprep.subr.bf16.mxu0 0
  %2797 = vmatpush1.bf16.msra.mxu0 0
  %2798 = vmatprep.subr.bf16.mxu0 0
  %2799 = vmatpush1.bf16.msra.mxu0 0
  %2800 = vmatprep.subr.bf16.mxu0 0
  %2801 = vmatpush1.bf16.msra.mxu0 0
  %2802 = vmatprep.subr.bf16.mxu0 0
  %2803 = vmatpush1.bf16.msra.mxu0 0
  %2804 = vmatprep.subr.bf16.mxu0 0
  %2805 = vmatpush1.bf16.msra.mxu0 0
  %2806 = vmatprep.subr.bf16.mxu0 0
  %2807 = vmatpush1.bf16.msra.mxu0 0
  %2808 = vmatprep.mubr.bf16.mxu0 0
  %2809 = vmatmul.mubr.bf16.gmra.mrb[0].mxu0 %v2615
  %v2810 = vpop.f32.mrb[0].mxu0
  %v2811 = vadd.f32 0.0, %v2810
  %v2812 = vpop.f32.mrb[0].mxu0
  %v2813 = vadd.f32 0.0, %v2812
  %v2814 = vpop.f32.mrb[0].mxu0
  %v2815 = vadd.f32 0.0, %v2814
  %v2816 = vpop.f32.mrb[0].mxu0
  %v2817 = vadd.f32 0.0, %v2816
  %2818 = vdwg.mxu0
  %2819 = vmatprep.subr.bf16.mxu0 %v2715
  %2820 = vmatpush1.bf16.msra.mxu0 %v2714
  %2821 = vmatprep.subr.bf16.mxu0 %v2719
  %2822 = vmatpush1.bf16.msra.mxu0 %v2718
  %2823 = vmatprep.subr.bf16.mxu0 %v2723
  %2824 = vmatpush1.bf16.msra.mxu0 %v2722
  %2825 = vmatprep.subr.bf16.mxu0 %v2727
  %2826 = vmatpush1.bf16.msra.mxu0 %v2726
  %2827 = vmatprep.subr.bf16.mxu0 %v2731
  %2828 = vmatpush1.bf16.msra.mxu0 %v2730
  %2829 = vmatprep.subr.bf16.mxu0 %v2735
  %2830 = vmatpush1.bf16.msra.mxu0 %v2734
  %2831 = vmatprep.subr.bf16.mxu0 %v2739
  %2832 = vmatpush1.bf16.msra.mxu0 %v2738
  %2833 = vmatprep.subr.bf16.mxu0 %v2743
  %2834 = vmatpush1.bf16.msra.mxu0 %v2742
  %2835 = vmatprep.subr.bf16.mxu0 0
  %2836 = vmatpush1.bf16.msra.mxu0 0
  %2837 = vmatprep.subr.bf16.mxu0 0
  %2838 = vmatpush1.bf16.msra.mxu0 0
  %2839 = vmatprep.subr.bf16.mxu0 0
  %2840 = vmatpush1.bf16.msra.mxu0 0
  %2841 = vmatprep.subr.bf16.mxu0 0
  %2842 = vmatpush1.bf16.msra.mxu0 0
  %2843 = vmatprep.subr.bf16.mxu0 0
  %2844 = vmatpush1.bf16.msra.mxu0 0
  %2845 = vmatprep.subr.bf16.mxu0 0
  %2846 = vmatpush1.bf16.msra.mxu0 0
  %2847 = vmatprep.subr.bf16.mxu0 0
  %2848 = vmatpush1.bf16.msra.mxu0 0
  %2849 = vmatprep.subr.bf16.mxu0 0
  %2850 = vmatpush1.bf16.msra.mxu0 0
  %2851 = vmatprep.mubr.bf16.mxu0 0
  %2852 = vmatmul.mubr.bf16.gmra.mrb[0].mxu0 %v2615
  %v2853 = vpop.f32.mrb[0].mxu0
  %v2854 = vadd.f32 0.0, %v2853
  %v2855 = vpop.f32.mrb[0].mxu0
  %v2856 = vadd.f32 0.0, %v2855
  %v2857 = vpop.f32.mrb[0].mxu0
  %v2858 = vadd.f32 0.0, %v2857
  %v2859 = vpop.f32.mrb[0].mxu0
  %v2860 = vadd.f32 0.0, %v2859
  %2861 = vdwg.mxu0
  %v2862 = vadd.f32 %v2607, %v2811
  %v2863 = vadd.f32 %v2608, %v2813
  %v2864 = vadd.f32 %v2609, %v2854
  %v2865 = vadd.f32 %v2610, %v2856
  %v2866 = vadd.f32 %v2611, %v2815
  %v2867 = vadd.f32 %v2612, %v2817
  %v2868 = vadd.f32 %v2613, %v2858
  %v2869 = vadd.f32 %v2614, %v2860
  %v2870 = vxor.u32 %v2862, 2147483648
  %v2871 = vxor.u32 %v2863, 2147483648
  %v2872 = vxor.u32 %v2864, 2147483648
  %v2873 = vxor.u32 %v2866, 2147483648
  %v2874 = vxor.u32 %v2867, 2147483648
  %v2875 = vxor.u32 %v2868, 2147483648
  %v2876 = vmul.f32 %v2870, 1.442695
  %v2877 = vpow.pop %v2876
  %v2878 = vmul.f32 %v2871, 1.442695
  %v2879 = vpow.pop %v2878
  %v2880 = vmul.f32 %v2872, 1.442695
  %v2881 = vpow.pop %v2880
  %v2882 = vmul.f32 %v2873, 1.442695
  %v2883 = vpow.pop %v2882
  %v2884 = vmul.f32 %v2874, 1.442695
  %v2885 = vpow.pop %v2884
  %v2886 = vmul.f32 %v2875, 1.442695
  %v2887 = vpow.pop %v2886
  %v2888 = vadd.f32 %v2877, 1.0
  %v2889 = vadd.f32 %v2879, 1.0
  %v2890 = vadd.f32 %v2881, 1.0
  %v2891 = vadd.f32 %v2883, 1.0
  %v2892 = vadd.f32 %v2885, 1.0
  %v2893 = vadd.f32 %v2887, 1.0
  %v2894 = vrcp.pop %v2888
  %v2895 = vmul.f32 1.0, %v2894
  %v2896 = vrcp.pop %v2889
  %v2897 = vmul.f32 1.0, %v2896
  %v2898 = vrcp.pop %v2890
  %v2899 = vmul.f32 1.0, %v2898
  %v2900 = vrcp.pop %v2891
  %v2901 = vmul.f32 1.0, %v2900
  %v2902 = vrcp.pop %v2892
  %v2903 = vmul.f32 1.0, %v2902
  %v2904 = vrcp.pop %v2893
  %v2905 = vmul.f32 1.0, %v2904
  %v2906 = vtanh.pop %v2865
  %v2907 = vtanh.pop %v2869
  %v2908 = vmul.f32 %v2897, %v2603
  %v2909 = vmul.f32 %v2903, %v2604
  %v2910 = vmul.f32 %v2895, %v2906
  %v2911 = vmul.f32 %v2901, %v2907
  %v2912 = vadd.f32 %v2908, %v2910
  %v2913 = vadd.f32 %v2909, %v2911
  %v2914 = vtanh.pop %v2912
  %v2915 = vtanh.pop %v2913
  %v2916 = vmul.f32 %v2899, %v2914
  %v2917 = vmul.f32 %v2905, %v2915
  %v2918 = vsel %vm891, %v2916, %v2601
  %v2919 = vsel %vm891, %v2917, %v2602
  %v2920 = vsel %vm891, %v2912, %v2603
  %v2921 = vsel %vm891, %v2913, %v2604
  %s2922 = smul.addr %s898, 8
  %s2923 = scalar_lea.vmem [#allocation4], %s2922
  %v2924 = vld [vmem:[%s2923] sm:$0xff]
  %v2925 = vld [vmem:[%s2923 + $0x8] sm:$0xff]
  %v2926 = vld [vmem:[%s2923 + $0x10] sm:$0xff]
  %v2927 = vld [vmem:[%s2923 + $0x18] sm:$0xff]
  %v2928 = vld [vmem:[%s2923 + $0x20] sm:$0xff]
  %v2929 = vld [vmem:[%s2923 + $0x28] sm:$0xff]
  %v2930 = vld [vmem:[%s2923 + $0x30] sm:$0xff]
  %v2931 = vld [vmem:[%s2923 + $0x38] sm:$0xff]
  %v2932 = vpack.c.bf16 %v2919, %v2918
  %2933 = vmatprep.subr.bf16.mxu0 %v2713
  %2934 = vmatpush1.bf16.msra.mxu0 %v2712
  %2935 = vmatprep.subr.bf16.mxu0 %v2717
  %2936 = vmatpush1.bf16.msra.mxu0 %v2716
  %2937 = vmatprep.subr.bf16.mxu0 %v2721
  %2938 = vmatpush1.bf16.msra.mxu0 %v2720
  %2939 = vmatprep.subr.bf16.mxu0 %v2725
  %2940 = vmatpush1.bf16.msra.mxu0 %v2724
  %2941 = vmatprep.subr.bf16.mxu0 %v2729
  %2942 = vmatpush1.bf16.msra.mxu0 %v2728
  %2943 = vmatprep.subr.bf16.mxu0 %v2733
  %2944 = vmatpush1.bf16.msra.mxu0 %v2732
  %2945 = vmatprep.subr.bf16.mxu0 %v2737
  %2946 = vmatpush1.bf16.msra.mxu0 %v2736
  %2947 = vmatprep.subr.bf16.mxu0 %v2741
  %2948 = vmatpush1.bf16.msra.mxu0 %v2740
  %2949 = vmatprep.subr.bf16.mxu0 0
  %2950 = vmatpush1.bf16.msra.mxu0 0
  %2951 = vmatprep.subr.bf16.mxu0 0
  %2952 = vmatpush1.bf16.msra.mxu0 0
  %2953 = vmatprep.subr.bf16.mxu0 0
  %2954 = vmatpush1.bf16.msra.mxu0 0
  %2955 = vmatprep.subr.bf16.mxu0 0
  %2956 = vmatpush1.bf16.msra.mxu0 0
  %2957 = vmatprep.subr.bf16.mxu0 0
  %2958 = vmatpush1.bf16.msra.mxu0 0
  %2959 = vmatprep.subr.bf16.mxu0 0
  %2960 = vmatpush1.bf16.msra.mxu0 0
  %2961 = vmatprep.subr.bf16.mxu0 0
  %2962 = vmatpush1.bf16.msra.mxu0 0
  %2963 = vmatprep.subr.bf16.mxu0 0
  %2964 = vmatpush1.bf16.msra.mxu0 0
  %2965 = vmatprep.mubr.bf16.mxu0 0
  %2966 = vmatmul.mubr.bf16.gmra.mrb[0].mxu0 %v2932
  %v2967 = vpop.f32.mrb[0].mxu0
  %v2968 = vadd.f32 0.0, %v2967
  %v2969 = vpop.f32.mrb[0].mxu0
  %v2970 = vadd.f32 0.0, %v2969
  %v2971 = vpop.f32.mrb[0].mxu0
  %v2972 = vadd.f32 0.0, %v2971
  %v2973 = vpop.f32.mrb[0].mxu0
  %v2974 = vadd.f32 0.0, %v2973
  %2975 = vdwg.mxu0
  %2976 = vmatprep.subr.bf16.mxu0 %v2715
  %2977 = vmatpush1.bf16.msra.mxu0 %v2714
  %2978 = vmatprep.subr.bf16.mxu0 %v2719
  %2979 = vmatpush1.bf16.msra.mxu0 %v2718
  %2980 = vmatprep.subr.bf16.mxu0 %v2723
  %2981 = vmatpush1.bf16.msra.mxu0 %v2722
  %2982 = vmatprep.subr.bf16.mxu0 %v2727
  %2983 = vmatpush1.bf16.msra.mxu0 %v2726
  %2984 = vmatprep.subr.bf16.mxu0 %v2731
  %2985 = vmatpush1.bf16.msra.mxu0 %v2730
  %2986 = vmatprep.subr.bf16.mxu0 %v2735
  %2987 = vmatpush1.bf16.msra.mxu0 %v2734
  %2988 = vmatprep.subr.bf16.mxu0 %v2739
  %2989 = vmatpush1.bf16.msra.mxu0 %v2738
  %2990 = vmatprep.subr.bf16.mxu0 %v2743
  %2991 = vmatpush1.bf16.msra.mxu0 %v2742
  %2992 = vmatprep.subr.bf16.mxu0 0
  %2993 = vmatpush1.bf16.msra.mxu0 0
  %2994 = vmatprep.subr.bf16.mxu0 0
  %2995 = vmatpush1.bf16.msra.mxu0 0
  %2996 = vmatprep.subr.bf16.mxu0 0
  %2997 = vmatpush1.bf16.msra.mxu0 0
  %2998 = vmatprep.subr.bf16.mxu0 0
  %2999 = vmatpush1.bf16.msra.mxu0 0
  %3000 = vmatprep.subr.bf16.mxu0 0
  %3001 = vmatpush1.bf16.msra.mxu0 0
  %3002 = vmatprep.subr.bf16.mxu0 0
  %3003 = vmatpush1.bf16.msra.mxu0 0
  %3004 = vmatprep.subr.bf16.mxu0 0
  %3005 = vmatpush1.bf16.msra.mxu0 0
  %3006 = vmatprep.subr.bf16.mxu0 0
  %3007 = vmatpush1.bf16.msra.mxu0 0
  %3008 = vmatprep.mubr.bf16.mxu0 0
  %3009 = vmatmul.mubr.bf16.gmra.mrb[0].mxu0 %v2932
  %v3010 = vpop.f32.mrb[0].mxu0
  %v3011 = vadd.f32 0.0, %v3010
  %v3012 = vpop.f32.mrb[0].mxu0
  %v3013 = vadd.f32 0.0, %v3012
  %v3014 = vpop.f32.mrb[0].mxu0
  %v3015 = vadd.f32 0.0, %v3014
  %v3016 = vpop.f32.mrb[0].mxu0
  %v3017 = vadd.f32 0.0, %v3016
  %3018 = vdwg.mxu0
  %v3019 = vadd.f32 %v2924, %v2968
  %v3020 = vadd.f32 %v2925, %v2970
  %v3021 = vadd.f32 %v2926, %v3011
  %v3022 = vadd.f32 %v2927, %v3013
  %v3023 = vadd.f32 %v2928, %v2972
  %v3024 = vadd.f32 %v2929, %v2974
  %v3025 = vadd.f32 %v2930, %v3015
  %v3026 = vadd.f32 %v2931, %v3017
  %v3027 = vxor.u32 %v3019, 2147483648
  %v3028 = vxor.u32 %v3020, 2147483648
  %v3029 = vxor.u32 %v3021, 2147483648
  %v3030 = vxor.u32 %v3023, 2147483648
  %v3031 = vxor.u32 %v3024, 2147483648
  %v3032 = vxor.u32 %v3025, 2147483648
  %v3033 = vmul.f32 %v3027, 1.442695
  %v3034 = vpow.pop %v3033
  %v3035 = vmul.f32 %v3028, 1.442695
  %v3036 = vpow.pop %v3035
  %v3037 = vmul.f32 %v3029, 1.442695
  %v3038 = vpow.pop %v3037
  %v3039 = vmul.f32 %v3030, 1.442695
  %v3040 = vpow.pop %v3039
  %v3041 = vmul.f32 %v3031, 1.442695
  %v3042 = vpow.pop %v3041
  %v3043 = vmul.f32 %v3032, 1.442695
  %v3044 = vpow.pop %v3043
  %v3045 = vadd.f32 %v3034, 1.0
  %v3046 = vadd.f32 %v3036, 1.0
  %v3047 = vadd.f32 %v3038, 1.0
  %v3048 = vadd.f32 %v3040, 1.0
  %v3049 = vadd.f32 %v3042, 1.0
  %v3050 = vadd.f32 %v3044, 1.0
  %v3051 = vrcp.pop %v3045
  %v3052 = vmul.f32 1.0, %v3051
  %v3053 = vrcp.pop %v3046
  %v3054 = vmul.f32 1.0, %v3053
  %v3055 = vrcp.pop %v3047
  %v3056 = vmul.f32 1.0, %v3055
  %v3057 = vrcp.pop %v3048
  %v3058 = vmul.f32 1.0, %v3057
  %v3059 = vrcp.pop %v3049
  %v3060 = vmul.f32 1.0, %v3059
  %v3061 = vrcp.pop %v3050
  %v3062 = vmul.f32 1.0, %v3061
  %v3063 = vtanh.pop %v3022
  %v3064 = vtanh.pop %v3026
  %v3065 = vmul.f32 %v3054, %v2920
  %v3066 = vmul.f32 %v3060, %v2921
  %v3067 = vmul.f32 %v3052, %v3063
  %v3068 = vmul.f32 %v3058, %v3064
  %v3069 = vadd.f32 %v3065, %v3067
  %v3070 = vadd.f32 %v3066, %v3068
  %v3071 = vtanh.pop %v3069
  %v3072 = vtanh.pop %v3070
  %v3073 = vmul.f32 %v3056, %v3071
  %v3074 = vmul.f32 %v3062, %v3072
  %v3075 = vsel %vm1055, %v3073, %v2918
  %v3076 = vsel %vm1055, %v3074, %v2919
  %v3077 = vsel %vm1055, %v3069, %v2920
  %v3078 = vsel %vm1055, %v3070, %v2921
  %s3079 = smul.addr %s1063, 8
  %s3080 = scalar_lea.vmem [#allocation4], %s3079
  %v3081 = vld [vmem:[%s3080] sm:$0xff]
  %v3082 = vld [vmem:[%s3080 + $0x8] sm:$0xff]
  %v3083 = vld [vmem:[%s3080 + $0x10] sm:$0xff]
  %v3084 = vld [vmem:[%s3080 + $0x18] sm:$0xff]
  %v3085 = vld [vmem:[%s3080 + $0x20] sm:$0xff]
  %v3086 = vld [vmem:[%s3080 + $0x28] sm:$0xff]
  %v3087 = vld [vmem:[%s3080 + $0x30] sm:$0xff]
  %v3088 = vld [vmem:[%s3080 + $0x38] sm:$0xff]
  %v3089 = vpack.c.bf16 %v3076, %v3075
  %3090 = vmatprep.subr.bf16.mxu0 %v2713
  %3091 = vmatpush1.bf16.msra.mxu0 %v2712
  %3092 = vmatprep.subr.bf16.mxu0 %v2717
  %3093 = vmatpush1.bf16.msra.mxu0 %v2716
  %3094 = vmatprep.subr.bf16.mxu0 %v2721
  %3095 = vmatpush1.bf16.msra.mxu0 %v2720
  %3096 = vmatprep.subr.bf16.mxu0 %v2725
  %3097 = vmatpush1.bf16.msra.mxu0 %v2724
  %3098 = vmatprep.subr.bf16.mxu0 %v2729
  %3099 = vmatpush1.bf16.msra.mxu0 %v2728
  %3100 = vmatprep.subr.bf16.mxu0 %v2733
  %3101 = vmatpush1.bf16.msra.mxu0 %v2732
  %3102 = vmatprep.subr.bf16.mxu0 %v2737
  %3103 = vmatpush1.bf16.msra.mxu0 %v2736
  %3104 = vmatprep.subr.bf16.mxu0 %v2741
  %3105 = vmatpush1.bf16.msra.mxu0 %v2740
  %3106 = vmatprep.subr.bf16.mxu0 0
  %3107 = vmatpush1.bf16.msra.mxu0 0
  %3108 = vmatprep.subr.bf16.mxu0 0
  %3109 = vmatpush1.bf16.msra.mxu0 0
  %3110 = vmatprep.subr.bf16.mxu0 0
  %3111 = vmatpush1.bf16.msra.mxu0 0
  %3112 = vmatprep.subr.bf16.mxu0 0
  %3113 = vmatpush1.bf16.msra.mxu0 0
  %3114 = vmatprep.subr.bf16.mxu0 0
  %3115 = vmatpush1.bf16.msra.mxu0 0
  %3116 = vmatprep.subr.bf16.mxu0 0
  %3117 = vmatpush1.bf16.msra.mxu0 0
  %3118 = vmatprep.subr.bf16.mxu0 0
  %3119 = vmatpush1.bf16.msra.mxu0 0
  %3120 = vmatprep.subr.bf16.mxu0 0
  %3121 = vmatpush1.bf16.msra.mxu0 0
  %3122 = vmatprep.mubr.bf16.mxu0 0
  %3123 = vmatmul.mubr.bf16.gmra.mrb[0].mxu0 %v3089
  %v3124 = vpop.f32.mrb[0].mxu0
  %v3125 = vadd.f32 0.0, %v3124
  %v3126 = vpop.f32.mrb[0].mxu0
  %v3127 = vadd.f32 0.0, %v3126
  %v3128 = vpop.f32.mrb[0].mxu0
  %v3129 = vadd.f32 0.0, %v3128
  %v3130 = vpop.f32.mrb[0].mxu0
  %v3131 = vadd.f32 0.0, %v3130
  %3132 = vdwg.mxu0
  %3133 = vmatprep.subr.bf16.mxu0 %v2715
  %3134 = vmatpush1.bf16.msra.mxu0 %v2714
  %3135 = vmatprep.subr.bf16.mxu0 %v2719
  %3136 = vmatpush1.bf16.msra.mxu0 %v2718
  %3137 = vmatprep.subr.bf16.mxu0 %v2723
  %3138 = vmatpush1.bf16.msra.mxu0 %v2722
  %3139 = vmatprep.subr.bf16.mxu0 %v2727
  %3140 = vmatpush1.bf16.msra.mxu0 %v2726
  %3141 = vmatprep.subr.bf16.mxu0 %v2731
  %3142 = vmatpush1.bf16.msra.mxu0 %v2730
  %3143 = vmatprep.subr.bf16.mxu0 %v2735
  %3144 = vmatpush1.bf16.msra.mxu0 %v2734
  %3145 = vmatprep.subr.bf16.mxu0 %v2739
  %3146 = vmatpush1.bf16.msra.mxu0 %v2738
  %3147 = vmatprep.subr.bf16.mxu0 %v2743
  %3148 = vmatpush1.bf16.msra.mxu0 %v2742
  %3149 = vmatprep.subr.bf16.mxu0 0
  %3150 = vmatpush1.bf16.msra.mxu0 0
  %3151 = vmatprep.subr.bf16.mxu0 0
  %3152 = vmatpush1.bf16.msra.mxu0 0
  %3153 = vmatprep.subr.bf16.mxu0 0
  %3154 = vmatpush1.bf16.msra.mxu0 0
  %3155 = vmatprep.subr.bf16.mxu0 0
  %3156 = vmatpush1.bf16.msra.mxu0 0
  %3157 = vmatprep.subr.bf16.mxu0 0
  %3158 = vmatpush1.bf16.msra.mxu0 0
  %3159 = vmatprep.subr.bf16.mxu0 0
  %3160 = vmatpush1.bf16.msra.mxu0 0
  %3161 = vmatprep.subr.bf16.mxu0 0
  %3162 = vmatpush1.bf16.msra.mxu0 0
  %3163 = vmatprep.subr.bf16.mxu0 0
  %3164 = vmatpush1.bf16.msra.mxu0 0
  %3165 = vmatprep.mubr.bf16.mxu0 0
  %3166 = vmatmul.mubr.bf16.gmra.mrb[0].mxu0 %v3089
  %v3167 = vpop.f32.mrb[0].mxu0
  %v3168 = vadd.f32 0.0, %v3167
  %v3169 = vpop.f32.mrb[0].mxu0
  %v3170 = vadd.f32 0.0, %v3169
  %v3171 = vpop.f32.mrb[0].mxu0
  %v3172 = vadd.f32 0.0, %v3171
  %v3173 = vpop.f32.mrb[0].mxu0
  %v3174 = vadd.f32 0.0, %v3173
  %3175 = vdwg.mxu0
  %v3176 = vadd.f32 %v3081, %v3125
  %v3177 = vadd.f32 %v3082, %v3127
  %v3178 = vadd.f32 %v3083, %v3168
  %v3179 = vadd.f32 %v3084, %v3170
  %v3180 = vadd.f32 %v3085, %v3129
  %v3181 = vadd.f32 %v3086, %v3131
  %v3182 = vadd.f32 %v3087, %v3172
  %v3183 = vadd.f32 %v3088, %v3174
  %v3184 = vxor.u32 %v3176, 2147483648
  %v3185 = vxor.u32 %v3177, 2147483648
  %v3186 = vxor.u32 %v3178, 2147483648
  %v3187 = vxor.u32 %v3180, 2147483648
  %v3188 = vxor.u32 %v3181, 2147483648
  %v3189 = vxor.u32 %v3182, 2147483648
  %v3190 = vmul.f32 %v3184, 1.442695
  %v3191 = vpow.pop %v3190
  %v3192 = vmul.f32 %v3185, 1.442695
  %v3193 = vpow.pop %v3192
  %v3194 = vmul.f32 %v3186, 1.442695
  %v3195 = vpow.pop %v3194
  %v3196 = vmul.f32 %v3187, 1.442695
  %v3197 = vpow.pop %v3196
  %v3198 = vmul.f32 %v3188, 1.442695
  %v3199 = vpow.pop %v3198
  %v3200 = vmul.f32 %v3189, 1.442695
  %v3201 = vpow.pop %v3200
  %v3202 = vadd.f32 %v3191, 1.0
  %v3203 = vadd.f32 %v3193, 1.0
  %v3204 = vadd.f32 %v3195, 1.0
  %v3205 = vadd.f32 %v3197, 1.0
  %v3206 = vadd.f32 %v3199, 1.0
  %v3207 = vadd.f32 %v3201, 1.0
  %v3208 = vrcp.pop %v3202
  %v3209 = vmul.f32 1.0, %v3208
  %v3210 = vrcp.pop %v3203
  %v3211 = vmul.f32 1.0, %v3210
  %v3212 = vrcp.pop %v3204
  %v3213 = vmul.f32 1.0, %v3212
  %v3214 = vrcp.pop %v3205
  %v3215 = vmul.f32 1.0, %v3214
  %v3216 = vrcp.pop %v3206
  %v3217 = vmul.f32 1.0, %v3216
  %v3218 = vrcp.pop %v3207
  %v3219 = vmul.f32 1.0, %v3218
  %v3220 = vtanh.pop %v3179
  %v3221 = vtanh.pop %v3183
  %v3222 = vmul.f32 %v3211, %v3077
  %v3223 = vmul.f32 %v3217, %v3078
  %v3224 = vmul.f32 %v3209, %v3220
  %v3225 = vmul.f32 %v3215, %v3221
  %v3226 = vadd.f32 %v3222, %v3224
  %v3227 = vadd.f32 %v3223, %v3225
  %v3228 = vtanh.pop %v3226
  %v3229 = vtanh.pop %v3227
  %v3230 = vmul.f32 %v3213, %v3228
  %v3231 = vmul.f32 %v3219, %v3229
  %v3232 = vsel %vm1220, %v3230, %v3075
  %v3233 = vsel %vm1220, %v3231, %v3076
  %v3234 = vsel %vm1220, %v3226, %v3077
  %v3235 = vsel %vm1220, %v3227, %v3078
  %s3236 = smul.addr %s1228, 8
  %s3237 = scalar_lea.vmem [#allocation4], %s3236
  %v3238 = vld [vmem:[%s3237] sm:$0xff]
  %v3239 = vld [vmem:[%s3237 + $0x8] sm:$0xff]
  %v3240 = vld [vmem:[%s3237 + $0x10] sm:$0xff]
  %v3241 = vld [vmem:[%s3237 + $0x18] sm:$0xff]
  %v3242 = vld [vmem:[%s3237 + $0x20] sm:$0xff]
  %v3243 = vld [vmem:[%s3237 + $0x28] sm:$0xff]
  %v3244 = vld [vmem:[%s3237 + $0x30] sm:$0xff]
  %v3245 = vld [vmem:[%s3237 + $0x38] sm:$0xff]
  %v3246 = vpack.c.bf16 %v3233, %v3232
  %3247 = vmatprep.subr.bf16.mxu0 %v2713
  %3248 = vmatpush1.bf16.msra.mxu0 %v2712
  %3249 = vmatprep.subr.bf16.mxu0 %v2717
  %3250 = vmatpush1.bf16.msra.mxu0 %v2716
  %3251 = vmatprep.subr.bf16.mxu0 %v2721
  %3252 = vmatpush1.bf16.msra.mxu0 %v2720
  %3253 = vmatprep.subr.bf16.mxu0 %v2725
  %3254 = vmatpush1.bf16.msra.mxu0 %v2724
  %3255 = vmatprep.subr.bf16.mxu0 %v2729
  %3256 = vmatpush1.bf16.msra.mxu0 %v2728
  %3257 = vmatprep.subr.bf16.mxu0 %v2733
  %3258 = vmatpush1.bf16.msra.mxu0 %v2732
  %3259 = vmatprep.subr.bf16.mxu0 %v2737
  %3260 = vmatpush1.bf16.msra.mxu0 %v2736
  %3261 = vmatprep.subr.bf16.mxu0 %v2741
  %3262 = vmatpush1.bf16.msra.mxu0 %v2740
  %3263 = vmatprep.subr.bf16.mxu0 0
  %3264 = vmatpush1.bf16.msra.mxu0 0
  %3265 = vmatprep.subr.bf16.mxu0 0
  %3266 = vmatpush1.bf16.msra.mxu0 0
  %3267 = vmatprep.subr.bf16.mxu0 0
  %3268 = vmatpush1.bf16.msra.mxu0 0
  %3269 = vmatprep.subr.bf16.mxu0 0
  %3270 = vmatpush1.bf16.msra.mxu0 0
  %3271 = vmatprep.subr.bf16.mxu0 0
  %3272 = vmatpush1.bf16.msra.mxu0 0
  %3273 = vmatprep.subr.bf16.mxu0 0
  %3274 = vmatpush1.bf16.msra.mxu0 0
  %3275 = vmatprep.subr.bf16.mxu0 0
  %3276 = vmatpush1.bf16.msra.mxu0 0
  %3277 = vmatprep.subr.bf16.mxu0 0
  %3278 = vmatpush1.bf16.msra.mxu0 0
  %3279 = vmatprep.mubr.bf16.mxu0 0
  %3280 = vmatmul.mubr.bf16.gmra.mrb[0].mxu0 %v3246
  %v3281 = vpop.f32.mrb[0].mxu0
  %v3282 = vadd.f32 0.0, %v3281
  %v3283 = vpop.f32.mrb[0].mxu0
  %v3284 = vadd.f32 0.0, %v3283
  %v3285 = vpop.f32.mrb[0].mxu0
  %v3286 = vadd.f32 0.0, %v3285
  %v3287 = vpop.f32.mrb[0].mxu0
  %v3288 = vadd.f32 0.0, %v3287
  %3289 = vdwg.mxu0
  %3290 = vmatprep.subr.bf16.mxu0 %v2715
  %3291 = vmatpush1.bf16.msra.mxu0 %v2714
  %3292 = vmatprep.subr.bf16.mxu0 %v2719
  %3293 = vmatpush1.bf16.msra.mxu0 %v2718
  %3294 = vmatprep.subr.bf16.mxu0 %v2723
  %3295 = vmatpush1.bf16.msra.mxu0 %v2722
  %3296 = vmatprep.subr.bf16.mxu0 %v2727
  %3297 = vmatpush1.bf16.msra.mxu0 %v2726
  %3298 = vmatprep.subr.bf16.mxu0 %v2731
  %3299 = vmatpush1.bf16.msra.mxu0 %v2730
  %3300 = vmatprep.subr.bf16.mxu0 %v2735
  %3301 = vmatpush1.bf16.msra.mxu0 %v2734
  %3302 = vmatprep.subr.bf16.mxu0 %v2739
  %3303 = vmatpush1.bf16.msra.mxu0 %v2738
  %3304 = vmatprep.subr.bf16.mxu0 %v2743
  %3305 = vmatpush1.bf16.msra.mxu0 %v2742
  %3306 = vmatprep.subr.bf16.mxu0 0
  %3307 = vmatpush1.bf16.msra.mxu0 0
  %3308 = vmatprep.subr.bf16.mxu0 0
  %3309 = vmatpush1.bf16.msra.mxu0 0
  %3310 = vmatprep.subr.bf16.mxu0 0
  %3311 = vmatpush1.bf16.msra.mxu0 0
  %3312 = vmatprep.subr.bf16.mxu0 0
  %3313 = vmatpush1.bf16.msra.mxu0 0
  %3314 = vmatprep.subr.bf16.mxu0 0
  %3315 = vmatpush1.bf16.msra.mxu0 0
  %3316 = vmatprep.subr.bf16.mxu0 0
  %3317 = vmatpush1.bf16.msra.mxu0 0
  %3318 = vmatprep.subr.bf16.mxu0 0
  %3319 = vmatpush1.bf16.msra.mxu0 0
  %3320 = vmatprep.subr.bf16.mxu0 0
  %3321 = vmatpush1.bf16.msra.mxu0 0
  %3322 = vmatprep.mubr.bf16.mxu0 0
  %3323 = vmatmul.mubr.bf16.gmra.mrb[0].mxu0 %v3246
  %v3324 = vpop.f32.mrb[0].mxu0
  %v3325 = vadd.f32 0.0, %v3324
  %v3326 = vpop.f32.mrb[0].mxu0
  %v3327 = vadd.f32 0.0, %v3326
  %v3328 = vpop.f32.mrb[0].mxu0
  %v3329 = vadd.f32 0.0, %v3328
  %v3330 = vpop.f32.mrb[0].mxu0
  %v3331 = vadd.f32 0.0, %v3330
  %3332 = vdwg.mxu0
  %v3333 = vadd.f32 %v3238, %v3282
  %v3334 = vadd.f32 %v3239, %v3284
  %v3335 = vadd.f32 %v3240, %v3325
  %v3336 = vadd.f32 %v3241, %v3327
  %v3337 = vadd.f32 %v3242, %v3286
  %v3338 = vadd.f32 %v3243, %v3288
  %v3339 = vadd.f32 %v3244, %v3329
  %v3340 = vadd.f32 %v3245, %v3331
  %v3341 = vxor.u32 %v3333, 2147483648
  %v3342 = vxor.u32 %v3334, 2147483648
  %v3343 = vxor.u32 %v3335, 2147483648
  %v3344 = vxor.u32 %v3337, 2147483648
  %v3345 = vxor.u32 %v3338, 2147483648
  %v3346 = vxor.u32 %v3339, 2147483648
  %v3347 = vmul.f32 %v3341, 1.442695
  %v3348 = vpow.pop %v3347
  %v3349 = vmul.f32 %v3342, 1.442695
  %v3350 = vpow.pop %v3349
  %v3351 = vmul.f32 %v3343, 1.442695
  %v3352 = vpow.pop %v3351
  %v3353 = vmul.f32 %v3344, 1.442695
  %v3354 = vpow.pop %v3353
  %v3355 = vmul.f32 %v3345, 1.442695
  %v3356 = vpow.pop %v3355
  %v3357 = vmul.f32 %v3346, 1.442695
  %v3358 = vpow.pop %v3357
  %v3359 = vadd.f32 %v3348, 1.0
  %v3360 = vadd.f32 %v3350, 1.0
  %v3361 = vadd.f32 %v3352, 1.0
  %v3362 = vadd.f32 %v3354, 1.0
  %v3363 = vadd.f32 %v3356, 1.0
  %v3364 = vadd.f32 %v3358, 1.0
  %v3365 = vrcp.pop %v3359
  %v3366 = vmul.f32 1.0, %v3365
  %v3367 = vrcp.pop %v3360
  %v3368 = vmul.f32 1.0, %v3367
  %v3369 = vrcp.pop %v3361
  %v3370 = vmul.f32 1.0, %v3369
  %v3371 = vrcp.pop %v3362
  %v3372 = vmul.f32 1.0, %v3371
  %v3373 = vrcp.pop %v3363
  %v3374 = vmul.f32 1.0, %v3373
  %v3375 = vrcp.pop %v3364
  %v3376 = vmul.f32 1.0, %v3375
  %v3377 = vtanh.pop %v3336
  %v3378 = vtanh.pop %v3340
  %v3379 = vmul.f32 %v3368, %v3234
  %v3380 = vmul.f32 %v3374, %v3235
  %v3381 = vmul.f32 %v3366, %v3377
  %v3382 = vmul.f32 %v3372, %v3378
  %v3383 = vadd.f32 %v3379, %v3381
  %v3384 = vadd.f32 %v3380, %v3382
  %v3385 = vtanh.pop %v3383
  %v3386 = vtanh.pop %v3384
  %v3387 = vmul.f32 %v3370, %v3385
  %v3388 = vmul.f32 %v3376, %v3386
  %v3389 = vsel %vm1385, %v3387, %v3232
  %v3390 = vsel %vm1385, %v3388, %v3233
  %v3391 = vsel %vm1385, %v3383, %v3234
  %v3392 = vsel %vm1385, %v3384, %v3235
  %s3393 = smul.addr %s1393, 8
  %s3394 = scalar_lea.vmem [#allocation4], %s3393
  %v3395 = vld [vmem:[%s3394] sm:$0xff]
  %v3396 = vld [vmem:[%s3394 + $0x8] sm:$0xff]
  %v3397 = vld [vmem:[%s3394 + $0x10] sm:$0xff]
  %v3398 = vld [vmem:[%s3394 + $0x18] sm:$0xff]
  %v3399 = vld [vmem:[%s3394 + $0x20] sm:$0xff]
  %v3400 = vld [vmem:[%s3394 + $0x28] sm:$0xff]
  %v3401 = vld [vmem:[%s3394 + $0x30] sm:$0xff]
  %v3402 = vld [vmem:[%s3394 + $0x38] sm:$0xff]
  %v3403 = vpack.c.bf16 %v3390, %v3389
  %3404 = vmatprep.subr.bf16.mxu0 %v2713
  %3405 = vmatpush1.bf16.msra.mxu0 %v2712
  %3406 = vmatprep.subr.bf16.mxu0 %v2717
  %3407 = vmatpush1.bf16.msra.mxu0 %v2716
  %3408 = vmatprep.subr.bf16.mxu0 %v2721
  %3409 = vmatpush1.bf16.msra.mxu0 %v2720
  %3410 = vmatprep.subr.bf16.mxu0 %v2725
  %3411 = vmatpush1.bf16.msra.mxu0 %v2724
  %3412 = vmatprep.subr.bf16.mxu0 %v2729
  %3413 = vmatpush1.bf16.msra.mxu0 %v2728
  %3414 = vmatprep.subr.bf16.mxu0 %v2733
  %3415 = vmatpush1.bf16.msra.mxu0 %v2732
  %3416 = vmatprep.subr.bf16.mxu0 %v2737
  %3417 = vmatpush1.bf16.msra.mxu0 %v2736
  %3418 = vmatprep.subr.bf16.mxu0 %v2741
  %3419 = vmatpush1.bf16.msra.mxu0 %v2740
  %3420 = vmatprep.subr.bf16.mxu0 0
  %3421 = vmatpush1.bf16.msra.mxu0 0
  %3422 = vmatprep.subr.bf16.mxu0 0
  %3423 = vmatpush1.bf16.msra.mxu0 0
  %3424 = vmatprep.subr.bf16.mxu0 0
  %3425 = vmatpush1.bf16.msra.mxu0 0
  %3426 = vmatprep.subr.bf16.mxu0 0
  %3427 = vmatpush1.bf16.msra.mxu0 0
  %3428 = vmatprep.subr.bf16.mxu0 0
  %3429 = vmatpush1.bf16.msra.mxu0 0
  %3430 = vmatprep.subr.bf16.mxu0 0
  %3431 = vmatpush1.bf16.msra.mxu0 0
  %3432 = vmatprep.subr.bf16.mxu0 0
  %3433 = vmatpush1.bf16.msra.mxu0 0
  %3434 = vmatprep.subr.bf16.mxu0 0
  %3435 = vmatpush1.bf16.msra.mxu0 0
  %3436 = vmatprep.mubr.bf16.mxu0 0
  %3437 = vmatmul.mubr.bf16.gmra.mrb[0].mxu0 %v3403
  %v3438 = vpop.f32.mrb[0].mxu0
  %v3439 = vadd.f32 0.0, %v3438
  %v3440 = vpop.f32.mrb[0].mxu0
  %v3441 = vadd.f32 0.0, %v3440
  %v3442 = vpop.f32.mrb[0].mxu0
  %v3443 = vadd.f32 0.0, %v3442
  %v3444 = vpop.f32.mrb[0].mxu0
  %v3445 = vadd.f32 0.0, %v3444
  %3446 = vdwg.mxu0
  %3447 = vmatprep.subr.bf16.mxu0 %v2715
  %3448 = vmatpush1.bf16.msra.mxu0 %v2714
  %3449 = vmatprep.subr.bf16.mxu0 %v2719
  %3450 = vmatpush1.bf16.msra.mxu0 %v2718
  %3451 = vmatprep.subr.bf16.mxu0 %v2723
  %3452 = vmatpush1.bf16.msra.mxu0 %v2722
  %3453 = vmatprep.subr.bf16.mxu0 %v2727
  %3454 = vmatpush1.bf16.msra.mxu0 %v2726
  %3455 = vmatprep.subr.bf16.mxu0 %v2731
  %3456 = vmatpush1.bf16.msra.mxu0 %v2730
  %3457 = vmatprep.subr.bf16.mxu0 %v2735
  %3458 = vmatpush1.bf16.msra.mxu0 %v2734
  %3459 = vmatprep.subr.bf16.mxu0 %v2739
  %3460 = vmatpush1.bf16.msra.mxu0 %v2738
  %3461 = vmatprep.subr.bf16.mxu0 %v2743
  %3462 = vmatpush1.bf16.msra.mxu0 %v2742
  %3463 = vmatprep.subr.bf16.mxu0 0
  %3464 = vmatpush1.bf16.msra.mxu0 0
  %3465 = vmatprep.subr.bf16.mxu0 0
  %3466 = vmatpush1.bf16.msra.mxu0 0
  %3467 = vmatprep.subr.bf16.mxu0 0
  %3468 = vmatpush1.bf16.msra.mxu0 0
  %3469 = vmatprep.subr.bf16.mxu0 0
  %3470 = vmatpush1.bf16.msra.mxu0 0
  %3471 = vmatprep.subr.bf16.mxu0 0
  %3472 = vmatpush1.bf16.msra.mxu0 0
  %3473 = vmatprep.subr.bf16.mxu0 0
  %3474 = vmatpush1.bf16.msra.mxu0 0
  %3475 = vmatprep.subr.bf16.mxu0 0
  %3476 = vmatpush1.bf16.msra.mxu0 0
  %3477 = vmatprep.subr.bf16.mxu0 0
  %3478 = vmatpush1.bf16.msra.mxu0 0
  %3479 = vmatprep.mubr.bf16.mxu0 0
  %3480 = vmatmul.mubr.bf16.gmra.mrb[0].mxu0 %v3403
  %v3481 = vpop.f32.mrb[0].mxu0
  %v3482 = vadd.f32 0.0, %v3481
  %v3483 = vpop.f32.mrb[0].mxu0
  %v3484 = vadd.f32 0.0, %v3483
  %v3485 = vpop.f32.mrb[0].mxu0
  %v3486 = vadd.f32 0.0, %v3485
  %v3487 = vpop.f32.mrb[0].mxu0
  %v3488 = vadd.f32 0.0, %v3487
  %3489 = vdwg.mxu0
  %v3490 = vadd.f32 %v3395, %v3439
  %v3491 = vadd.f32 %v3396, %v3441
  %v3492 = vadd.f32 %v3397, %v3482
  %v3493 = vadd.f32 %v3398, %v3484
  %v3494 = vadd.f32 %v3399, %v3443
  %v3495 = vadd.f32 %v3400, %v3445
  %v3496 = vadd.f32 %v3401, %v3486
  %v3497 = vadd.f32 %v3402, %v3488
  %v3498 = vxor.u32 %v3490, 2147483648
  %v3499 = vxor.u32 %v3491, 2147483648
  %v3500 = vxor.u32 %v3492, 2147483648
  %v3501 = vxor.u32 %v3494, 2147483648
  %v3502 = vxor.u32 %v3495, 2147483648
  %v3503 = vxor.u32 %v3496, 2147483648
  %v3504 = vmul.f32 %v3498, 1.442695
  %v3505 = vpow.pop %v3504
  %v3506 = vmul.f32 %v3499, 1.442695
  %v3507 = vpow.pop %v3506
  %v3508 = vmul.f32 %v3500, 1.442695
  %v3509 = vpow.pop %v3508
  %v3510 = vmul.f32 %v3501, 1.442695
  %v3511 = vpow.pop %v3510
  %v3512 = vmul.f32 %v3502, 1.442695
  %v3513 = vpow.pop %v3512
  %v3514 = vmul.f32 %v3503, 1.442695
  %v3515 = vpow.pop %v3514
  %v3516 = vadd.f32 %v3505, 1.0
  %v3517 = vadd.f32 %v3507, 1.0
  %v3518 = vadd.f32 %v3509, 1.0
  %v3519 = vadd.f32 %v3511, 1.0
  %v3520 = vadd.f32 %v3513, 1.0
  %v3521 = vadd.f32 %v3515, 1.0
  %v3522 = vrcp.pop %v3516
  %v3523 = vmul.f32 1.0, %v3522
  %v3524 = vrcp.pop %v3517
  %v3525 = vmul.f32 1.0, %v3524
  %v3526 = vrcp.pop %v3518
  %v3527 = vmul.f32 1.0, %v3526
  %v3528 = vrcp.pop %v3519
  %v3529 = vmul.f32 1.0, %v3528
  %v3530 = vrcp.pop %v3520
  %v3531 = vmul.f32 1.0, %v3530
  %v3532 = vrcp.pop %v3521
  %v3533 = vmul.f32 1.0, %v3532
  %v3534 = vtanh.pop %v3493
  %v3535 = vtanh.pop %v3497
  %v3536 = vmul.f32 %v3525, %v3391
  %v3537 = vmul.f32 %v3531, %v3392
  %v3538 = vmul.f32 %v3523, %v3534
  %v3539 = vmul.f32 %v3529, %v3535
  %v3540 = vadd.f32 %v3536, %v3538
  %v3541 = vadd.f32 %v3537, %v3539
  %v3542 = vtanh.pop %v3540
  %v3543 = vtanh.pop %v3541
  %v3544 = vmul.f32 %v3527, %v3542
  %v3545 = vmul.f32 %v3533, %v3543
  %v3546 = vsel %vm1550, %v3544, %v3389
  %v3547 = vsel %vm1550, %v3545, %v3390
  %v3548 = vsel %vm1550, %v3540, %v3391
  %v3549 = vsel %vm1550, %v3541, %v3392
  %s3550 = smul.addr %s1558, 8
  %s3551 = scalar_lea.vmem [#allocation4], %s3550
  %v3552 = vld [vmem:[%s3551] sm:$0xff]
  %v3553 = vld [vmem:[%s3551 + $0x8] sm:$0xff]
  %v3554 = vld [vmem:[%s3551 + $0x10] sm:$0xff]
  %v3555 = vld [vmem:[%s3551 + $0x18] sm:$0xff]
  %v3556 = vld [vmem:[%s3551 + $0x20] sm:$0xff]
  %v3557 = vld [vmem:[%s3551 + $0x28] sm:$0xff]
  %v3558 = vld [vmem:[%s3551 + $0x30] sm:$0xff]
  %v3559 = vld [vmem:[%s3551 + $0x38] sm:$0xff]
  %v3560 = vpack.c.bf16 %v3547, %v3546
  %3561 = vmatprep.subr.bf16.mxu0 %v2713
  %3562 = vmatpush1.bf16.msra.mxu0 %v2712
  %3563 = vmatprep.subr.bf16.mxu0 %v2717
  %3564 = vmatpush1.bf16.msra.mxu0 %v2716
  %3565 = vmatprep.subr.bf16.mxu0 %v2721
  %3566 = vmatpush1.bf16.msra.mxu0 %v2720
  %3567 = vmatprep.subr.bf16.mxu0 %v2725
  %3568 = vmatpush1.bf16.msra.mxu0 %v2724
  %3569 = vmatprep.subr.bf16.mxu0 %v2729
  %3570 = vmatpush1.bf16.msra.mxu0 %v2728
  %3571 = vmatprep.subr.bf16.mxu0 %v2733
  %3572 = vmatpush1.bf16.msra.mxu0 %v2732
  %3573 = vmatprep.subr.bf16.mxu0 %v2737
  %3574 = vmatpush1.bf16.msra.mxu0 %v2736
  %3575 = vmatprep.subr.bf16.mxu0 %v2741
  %3576 = vmatpush1.bf16.msra.mxu0 %v2740
  %3577 = vmatprep.subr.bf16.mxu0 0
  %3578 = vmatpush1.bf16.msra.mxu0 0
  %3579 = vmatprep.subr.bf16.mxu0 0
  %3580 = vmatpush1.bf16.msra.mxu0 0
  %3581 = vmatprep.subr.bf16.mxu0 0
  %3582 = vmatpush1.bf16.msra.mxu0 0
  %3583 = vmatprep.subr.bf16.mxu0 0
  %3584 = vmatpush1.bf16.msra.mxu0 0
  %3585 = vmatprep.subr.bf16.mxu0 0
  %3586 = vmatpush1.bf16.msra.mxu0 0
  %3587 = vmatprep.subr.bf16.mxu0 0
  %3588 = vmatpush1.bf16.msra.mxu0 0
  %3589 = vmatprep.subr.bf16.mxu0 0
  %3590 = vmatpush1.bf16.msra.mxu0 0
  %3591 = vmatprep.subr.bf16.mxu0 0
  %3592 = vmatpush1.bf16.msra.mxu0 0
  %3593 = vmatprep.mubr.bf16.mxu0 0
  %3594 = vmatmul.mubr.bf16.gmra.mrb[0].mxu0 %v3560
  %v3595 = vpop.f32.mrb[0].mxu0
  %v3596 = vadd.f32 0.0, %v3595
  %v3597 = vpop.f32.mrb[0].mxu0
  %v3598 = vadd.f32 0.0, %v3597
  %v3599 = vpop.f32.mrb[0].mxu0
  %v3600 = vadd.f32 0.0, %v3599
  %v3601 = vpop.f32.mrb[0].mxu0
  %v3602 = vadd.f32 0.0, %v3601
  %3603 = vdwg.mxu0
  %3604 = vmatprep.subr.bf16.mxu0 %v2715
  %3605 = vmatpush1.bf16.msra.mxu0 %v2714
  %3606 = vmatprep.subr.bf16.mxu0 %v2719
  %3607 = vmatpush1.bf16.msra.mxu0 %v2718
  %3608 = vmatprep.subr.bf16.mxu0 %v2723
  %3609 = vmatpush1.bf16.msra.mxu0 %v2722
  %3610 = vmatprep.subr.bf16.mxu0 %v2727
  %3611 = vmatpush1.bf16.msra.mxu0 %v2726
  %3612 = vmatprep.subr.bf16.mxu0 %v2731
  %3613 = vmatpush1.bf16.msra.mxu0 %v2730
  %3614 = vmatprep.subr.bf16.mxu0 %v2735
  %3615 = vmatpush1.bf16.msra.mxu0 %v2734
  %3616 = vmatprep.subr.bf16.mxu0 %v2739
  %3617 = vmatpush1.bf16.msra.mxu0 %v2738
  %3618 = vmatprep.subr.bf16.mxu0 %v2743
  %3619 = vmatpush1.bf16.msra.mxu0 %v2742
  %3620 = vmatprep.subr.bf16.mxu0 0
  %3621 = vmatpush1.bf16.msra.mxu0 0
  %3622 = vmatprep.subr.bf16.mxu0 0
  %3623 = vmatpush1.bf16.msra.mxu0 0
  %3624 = vmatprep.subr.bf16.mxu0 0
  %3625 = vmatpush1.bf16.msra.mxu0 0
  %3626 = vmatprep.subr.bf16.mxu0 0
  %3627 = vmatpush1.bf16.msra.mxu0 0
  %3628 = vmatprep.subr.bf16.mxu0 0
  %3629 = vmatpush1.bf16.msra.mxu0 0
  %3630 = vmatprep.subr.bf16.mxu0 0
  %3631 = vmatpush1.bf16.msra.mxu0 0
  %3632 = vmatprep.subr.bf16.mxu0 0
  %3633 = vmatpush1.bf16.msra.mxu0 0
  %3634 = vmatprep.subr.bf16.mxu0 0
  %3635 = vmatpush1.bf16.msra.mxu0 0
  %3636 = vmatprep.mubr.bf16.mxu0 0
  %3637 = vmatmul.mubr.bf16.gmra.mrb[0].mxu0 %v3560
  %v3638 = vpop.f32.mrb[0].mxu0
  %v3639 = vadd.f32 0.0, %v3638
  %v3640 = vpop.f32.mrb[0].mxu0
  %v3641 = vadd.f32 0.0, %v3640
  %v3642 = vpop.f32.mrb[0].mxu0
  %v3643 = vadd.f32 0.0, %v3642
  %v3644 = vpop.f32.mrb[0].mxu0
  %v3645 = vadd.f32 0.0, %v3644
  %3646 = vdwg.mxu0
  %v3647 = vadd.f32 %v3552, %v3596
  %v3648 = vadd.f32 %v3553, %v3598
  %v3649 = vadd.f32 %v3554, %v3639
  %v3650 = vadd.f32 %v3555, %v3641
  %v3651 = vadd.f32 %v3556, %v3600
  %v3652 = vadd.f32 %v3557, %v3602
  %v3653 = vadd.f32 %v3558, %v3643
  %v3654 = vadd.f32 %v3559, %v3645
  %v3655 = vxor.u32 %v3647, 2147483648
  %v3656 = vxor.u32 %v3648, 2147483648
  %v3657 = vxor.u32 %v3649, 2147483648
  %v3658 = vxor.u32 %v3651, 2147483648
  %v3659 = vxor.u32 %v3652, 2147483648
  %v3660 = vxor.u32 %v3653, 2147483648
  %v3661 = vmul.f32 %v3655, 1.442695
  %v3662 = vpow.pop %v3661
  %v3663 = vmul.f32 %v3656, 1.442695
  %v3664 = vpow.pop %v3663
  %v3665 = vmul.f32 %v3657, 1.442695
  %v3666 = vpow.pop %v3665
  %v3667 = vmul.f32 %v3658, 1.442695
  %v3668 = vpow.pop %v3667
  %v3669 = vmul.f32 %v3659, 1.442695
  %v3670 = vpow.pop %v3669
  %v3671 = vmul.f32 %v3660, 1.442695
  %v3672 = vpow.pop %v3671
  %v3673 = vadd.f32 %v3662, 1.0
  %v3674 = vadd.f32 %v3664, 1.0
  %v3675 = vadd.f32 %v3666, 1.0
  %v3676 = vadd.f32 %v3668, 1.0
  %v3677 = vadd.f32 %v3670, 1.0
  %v3678 = vadd.f32 %v3672, 1.0
  %v3679 = vrcp.pop %v3673
  %v3680 = vmul.f32 1.0, %v3679
  %v3681 = vrcp.pop %v3674
  %v3682 = vmul.f32 1.0, %v3681
  %v3683 = vrcp.pop %v3675
  %v3684 = vmul.f32 1.0, %v3683
  %v3685 = vrcp.pop %v3676
  %v3686 = vmul.f32 1.0, %v3685
  %v3687 = vrcp.pop %v3677
  %v3688 = vmul.f32 1.0, %v3687
  %v3689 = vrcp.pop %v3678
  %v3690 = vmul.f32 1.0, %v3689
  %v3691 = vtanh.pop %v3650
  %v3692 = vtanh.pop %v3654
  %v3693 = vmul.f32 %v3682, %v3548
  %v3694 = vmul.f32 %v3688, %v3549
  %v3695 = vmul.f32 %v3680, %v3691
  %v3696 = vmul.f32 %v3686, %v3692
  %v3697 = vadd.f32 %v3693, %v3695
  %v3698 = vadd.f32 %v3694, %v3696
  %v3699 = vtanh.pop %v3697
  %v3700 = vtanh.pop %v3698
  %v3701 = vmul.f32 %v3684, %v3699
  %v3702 = vmul.f32 %v3690, %v3700
  %v3703 = vsel %vm1715, %v3701, %v3546
  %v3704 = vsel %vm1715, %v3702, %v3547
  %v3705 = vsel %vm1715, %v3697, %v3548
  %v3706 = vsel %vm1715, %v3698, %v3549
  %s3707 = smul.addr %s1723, 8
  %s3708 = scalar_lea.vmem [#allocation4], %s3707
  %v3709 = vld [vmem:[%s3708] sm:$0xff]
  %v3710 = vld [vmem:[%s3708 + $0x8] sm:$0xff]
  %v3711 = vld [vmem:[%s3708 + $0x10] sm:$0xff]
  %v3712 = vld [vmem:[%s3708 + $0x18] sm:$0xff]
  %v3713 = vld [vmem:[%s3708 + $0x20] sm:$0xff]
  %v3714 = vld [vmem:[%s3708 + $0x28] sm:$0xff]
  %v3715 = vld [vmem:[%s3708 + $0x30] sm:$0xff]
  %v3716 = vld [vmem:[%s3708 + $0x38] sm:$0xff]
  %v3717 = vpack.c.bf16 %v3704, %v3703
  %3718 = vmatprep.subr.bf16.mxu0 %v2713
  %3719 = vmatpush1.bf16.msra.mxu0 %v2712
  %3720 = vmatprep.subr.bf16.mxu0 %v2717
  %3721 = vmatpush1.bf16.msra.mxu0 %v2716
  %3722 = vmatprep.subr.bf16.mxu0 %v2721
  %3723 = vmatpush1.bf16.msra.mxu0 %v2720
  %3724 = vmatprep.subr.bf16.mxu0 %v2725
  %3725 = vmatpush1.bf16.msra.mxu0 %v2724
  %3726 = vmatprep.subr.bf16.mxu0 %v2729
  %3727 = vmatpush1.bf16.msra.mxu0 %v2728
  %3728 = vmatprep.subr.bf16.mxu0 %v2733
  %3729 = vmatpush1.bf16.msra.mxu0 %v2732
  %3730 = vmatprep.subr.bf16.mxu0 %v2737
  %3731 = vmatpush1.bf16.msra.mxu0 %v2736
  %3732 = vmatprep.subr.bf16.mxu0 %v2741
  %3733 = vmatpush1.bf16.msra.mxu0 %v2740
  %3734 = vmatprep.subr.bf16.mxu0 0
  %3735 = vmatpush1.bf16.msra.mxu0 0
  %3736 = vmatprep.subr.bf16.mxu0 0
  %3737 = vmatpush1.bf16.msra.mxu0 0
  %3738 = vmatprep.subr.bf16.mxu0 0
  %3739 = vmatpush1.bf16.msra.mxu0 0
  %3740 = vmatprep.subr.bf16.mxu0 0
  %3741 = vmatpush1.bf16.msra.mxu0 0
  %3742 = vmatprep.subr.bf16.mxu0 0
  %3743 = vmatpush1.bf16.msra.mxu0 0
  %3744 = vmatprep.subr.bf16.mxu0 0
  %3745 = vmatpush1.bf16.msra.mxu0 0
  %3746 = vmatprep.subr.bf16.mxu0 0
  %3747 = vmatpush1.bf16.msra.mxu0 0
  %3748 = vmatprep.subr.bf16.mxu0 0
  %3749 = vmatpush1.bf16.msra.mxu0 0
  %3750 = vmatprep.mubr.bf16.mxu0 0
  %3751 = vmatmul.mubr.bf16.gmra.mrb[0].mxu0 %v3717
  %v3752 = vpop.f32.mrb[0].mxu0
  %v3753 = vadd.f32 0.0, %v3752
  %v3754 = vpop.f32.mrb[0].mxu0
  %v3755 = vadd.f32 0.0, %v3754
  %v3756 = vpop.f32.mrb[0].mxu0
  %v3757 = vadd.f32 0.0, %v3756
  %v3758 = vpop.f32.mrb[0].mxu0
  %v3759 = vadd.f32 0.0, %v3758
  %3760 = vdwg.mxu0
  %3761 = vmatprep.subr.bf16.mxu0 %v2715
  %3762 = vmatpush1.bf16.msra.mxu0 %v2714
  %3763 = vmatprep.subr.bf16.mxu0 %v2719
  %3764 = vmatpush1.bf16.msra.mxu0 %v2718
  %3765 = vmatprep.subr.bf16.mxu0 %v2723
  %3766 = vmatpush1.bf16.msra.mxu0 %v2722
  %3767 = vmatprep.subr.bf16.mxu0 %v2727
  %3768 = vmatpush1.bf16.msra.mxu0 %v2726
  %3769 = vmatprep.subr.bf16.mxu0 %v2731
  %3770 = vmatpush1.bf16.msra.mxu0 %v2730
  %3771 = vmatprep.subr.bf16.mxu0 %v2735
  %3772 = vmatpush1.bf16.msra.mxu0 %v2734
  %3773 = vmatprep.subr.bf16.mxu0 %v2739
  %3774 = vmatpush1.bf16.msra.mxu0 %v2738
  %3775 = vmatprep.subr.bf16.mxu0 %v2743
  %3776 = vmatpush1.bf16.msra.mxu0 %v2742
  %3777 = vmatprep.subr.bf16.mxu0 0
  %3778 = vmatpush1.bf16.msra.mxu0 0
  %3779 = vmatprep.subr.bf16.mxu0 0
  %3780 = vmatpush1.bf16.msra.mxu0 0
  %3781 = vmatprep.subr.bf16.mxu0 0
  %3782 = vmatpush1.bf16.msra.mxu0 0
  %3783 = vmatprep.subr.bf16.mxu0 0
  %3784 = vmatpush1.bf16.msra.mxu0 0
  %3785 = vmatprep.subr.bf16.mxu0 0
  %3786 = vmatpush1.bf16.msra.mxu0 0
  %3787 = vmatprep.subr.bf16.mxu0 0
  %3788 = vmatpush1.bf16.msra.mxu0 0
  %3789 = vmatprep.subr.bf16.mxu0 0
  %3790 = vmatpush1.bf16.msra.mxu0 0
  %3791 = vmatprep.subr.bf16.mxu0 0
  %3792 = vmatpush1.bf16.msra.mxu0 0
  %3793 = vmatprep.mubr.bf16.mxu0 0
  %3794 = vmatmul.mubr.bf16.gmra.mrb[0].mxu0 %v3717
  %v3795 = vpop.f32.mrb[0].mxu0
  %v3796 = vadd.f32 0.0, %v3795
  %v3797 = vpop.f32.mrb[0].mxu0
  %v3798 = vadd.f32 0.0, %v3797
  %v3799 = vpop.f32.mrb[0].mxu0
  %v3800 = vadd.f32 0.0, %v3799
  %v3801 = vpop.f32.mrb[0].mxu0
  %v3802 = vadd.f32 0.0, %v3801
  %3803 = vdwg.mxu0
  %v3804 = vadd.f32 %v3709, %v3753
  %v3805 = vadd.f32 %v3710, %v3755
  %v3806 = vadd.f32 %v3711, %v3796
  %v3807 = vadd.f32 %v3712, %v3798
  %v3808 = vadd.f32 %v3713, %v3757
  %v3809 = vadd.f32 %v3714, %v3759
  %v3810 = vadd.f32 %v3715, %v3800
  %v3811 = vadd.f32 %v3716, %v3802
  %v3812 = vxor.u32 %v3804, 2147483648
  %v3813 = vxor.u32 %v3805, 2147483648
  %v3814 = vxor.u32 %v3806, 2147483648
  %v3815 = vxor.u32 %v3808, 2147483648
  %v3816 = vxor.u32 %v3809, 2147483648
  %v3817 = vxor.u32 %v3810, 2147483648
  %v3818 = vmul.f32 %v3812, 1.442695
  %v3819 = vpow.pop %v3818
  %v3820 = vmul.f32 %v3813, 1.442695
  %v3821 = vpow.pop %v3820
  %v3822 = vmul.f32 %v3814, 1.442695
  %v3823 = vpow.pop %v3822
  %v3824 = vmul.f32 %v3815, 1.442695
  %v3825 = vpow.pop %v3824
  %v3826 = vmul.f32 %v3816, 1.442695
  %v3827 = vpow.pop %v3826
  %v3828 = vmul.f32 %v3817, 1.442695
  %v3829 = vpow.pop %v3828
  %v3830 = vadd.f32 %v3819, 1.0
  %v3831 = vadd.f32 %v3821, 1.0
  %v3832 = vadd.f32 %v3823, 1.0
  %v3833 = vadd.f32 %v3825, 1.0
  %v3834 = vadd.f32 %v3827, 1.0
  %v3835 = vadd.f32 %v3829, 1.0
  %v3836 = vrcp.pop %v3830
  %v3837 = vmul.f32 1.0, %v3836
  %v3838 = vrcp.pop %v3831
  %v3839 = vmul.f32 1.0, %v3838
  %v3840 = vrcp.pop %v3832
  %v3841 = vmul.f32 1.0, %v3840
  %v3842 = vrcp.pop %v3833
  %v3843 = vmul.f32 1.0, %v3842
  %v3844 = vrcp.pop %v3834
  %v3845 = vmul.f32 1.0, %v3844
  %v3846 = vrcp.pop %v3835
  %v3847 = vmul.f32 1.0, %v3846
  %v3848 = vtanh.pop %v3807
  %v3849 = vtanh.pop %v3811
  %v3850 = vmul.f32 %v3839, %v3705
  %v3851 = vmul.f32 %v3845, %v3706
  %v3852 = vmul.f32 %v3837, %v3848
  %v3853 = vmul.f32 %v3843, %v3849
  %v3854 = vadd.f32 %v3850, %v3852
  %v3855 = vadd.f32 %v3851, %v3853
  %v3856 = vtanh.pop %v3854
  %v3857 = vtanh.pop %v3855
  %v3858 = vmul.f32 %v3841, %v3856
  %v3859 = vmul.f32 %v3847, %v3857
  %v3860 = vsel %vm1880, %v3858, %v3703
  %v3861 = vsel %vm1880, %v3859, %v3704
  %v3862 = vsel %vm1880, %v3854, %v3705
  %v3863 = vsel %vm1880, %v3855, %v3706
  %s3864 = smul.addr %s1888, 8
  %s3865 = scalar_lea.vmem [#allocation4], %s3864
  %v3866 = vld [vmem:[%s3865] sm:$0xff]
  %v3867 = vld [vmem:[%s3865 + $0x8] sm:$0xff]
  %v3868 = vld [vmem:[%s3865 + $0x10] sm:$0xff]
  %v3869 = vld [vmem:[%s3865 + $0x18] sm:$0xff]
  %v3870 = vld [vmem:[%s3865 + $0x20] sm:$0xff]
  %v3871 = vld [vmem:[%s3865 + $0x28] sm:$0xff]
  %v3872 = vld [vmem:[%s3865 + $0x30] sm:$0xff]
  %v3873 = vld [vmem:[%s3865 + $0x38] sm:$0xff]
  %v3874 = vpack.c.bf16 %v3861, %v3860
  %3875 = vmatprep.subr.bf16.mxu0 %v2713
  %3876 = vmatpush1.bf16.msra.mxu0 %v2712
  %3877 = vmatprep.subr.bf16.mxu0 %v2717
  %3878 = vmatpush1.bf16.msra.mxu0 %v2716
  %3879 = vmatprep.subr.bf16.mxu0 %v2721
  %3880 = vmatpush1.bf16.msra.mxu0 %v2720
  %3881 = vmatprep.subr.bf16.mxu0 %v2725
  %3882 = vmatpush1.bf16.msra.mxu0 %v2724
  %3883 = vmatprep.subr.bf16.mxu0 %v2729
  %3884 = vmatpush1.bf16.msra.mxu0 %v2728
  %3885 = vmatprep.subr.bf16.mxu0 %v2733
  %3886 = vmatpush1.bf16.msra.mxu0 %v2732
  %3887 = vmatprep.subr.bf16.mxu0 %v2737
  %3888 = vmatpush1.bf16.msra.mxu0 %v2736
  %3889 = vmatprep.subr.bf16.mxu0 %v2741
  %3890 = vmatpush1.bf16.msra.mxu0 %v2740
  %3891 = vmatprep.subr.bf16.mxu0 0
  %3892 = vmatpush1.bf16.msra.mxu0 0
  %3893 = vmatprep.subr.bf16.mxu0 0
  %3894 = vmatpush1.bf16.msra.mxu0 0
  %3895 = vmatprep.subr.bf16.mxu0 0
  %3896 = vmatpush1.bf16.msra.mxu0 0
  %3897 = vmatprep.subr.bf16.mxu0 0
  %3898 = vmatpush1.bf16.msra.mxu0 0
  %3899 = vmatprep.subr.bf16.mxu0 0
  %3900 = vmatpush1.bf16.msra.mxu0 0
  %3901 = vmatprep.subr.bf16.mxu0 0
  %3902 = vmatpush1.bf16.msra.mxu0 0
  %3903 = vmatprep.subr.bf16.mxu0 0
  %3904 = vmatpush1.bf16.msra.mxu0 0
  %3905 = vmatprep.subr.bf16.mxu0 0
  %3906 = vmatpush1.bf16.msra.mxu0 0
  %3907 = vmatprep.mubr.bf16.mxu0 0
  %3908 = vmatmul.mubr.bf16.gmra.mrb[0].mxu0 %v3874
  %v3909 = vpop.f32.mrb[0].mxu0
  %v3910 = vadd.f32 0.0, %v3909
  %v3911 = vpop.f32.mrb[0].mxu0
  %v3912 = vadd.f32 0.0, %v3911
  %v3913 = vpop.f32.mrb[0].mxu0
  %v3914 = vadd.f32 0.0, %v3913
  %v3915 = vpop.f32.mrb[0].mxu0
  %v3916 = vadd.f32 0.0, %v3915
  %3917 = vdwg.mxu0
  %3918 = vmatprep.subr.bf16.mxu0 %v2715
  %3919 = vmatpush1.bf16.msra.mxu0 %v2714
  %3920 = vmatprep.subr.bf16.mxu0 %v2719
  %3921 = vmatpush1.bf16.msra.mxu0 %v2718
  %3922 = vmatprep.subr.bf16.mxu0 %v2723
  %3923 = vmatpush1.bf16.msra.mxu0 %v2722
  %3924 = vmatprep.subr.bf16.mxu0 %v2727
  %3925 = vmatpush1.bf16.msra.mxu0 %v2726
  %3926 = vmatprep.subr.bf16.mxu0 %v2731
  %3927 = vmatpush1.bf16.msra.mxu0 %v2730
  %3928 = vmatprep.subr.bf16.mxu0 %v2735
  %3929 = vmatpush1.bf16.msra.mxu0 %v2734
  %3930 = vmatprep.subr.bf16.mxu0 %v2739
  %3931 = vmatpush1.bf16.msra.mxu0 %v2738
  %3932 = vmatprep.subr.bf16.mxu0 %v2743
  %3933 = vmatpush1.bf16.msra.mxu0 %v2742
  %3934 = vmatprep.subr.bf16.mxu0 0
  %3935 = vmatpush1.bf16.msra.mxu0 0
  %3936 = vmatprep.subr.bf16.mxu0 0
  %3937 = vmatpush1.bf16.msra.mxu0 0
  %3938 = vmatprep.subr.bf16.mxu0 0
  %3939 = vmatpush1.bf16.msra.mxu0 0
  %3940 = vmatprep.subr.bf16.mxu0 0
  %3941 = vmatpush1.bf16.msra.mxu0 0
  %3942 = vmatprep.subr.bf16.mxu0 0
  %3943 = vmatpush1.bf16.msra.mxu0 0
  %3944 = vmatprep.subr.bf16.mxu0 0
  %3945 = vmatpush1.bf16.msra.mxu0 0
  %3946 = vmatprep.subr.bf16.mxu0 0
  %3947 = vmatpush1.bf16.msra.mxu0 0
  %3948 = vmatprep.subr.bf16.mxu0 0
  %3949 = vmatpush1.bf16.msra.mxu0 0
  %3950 = vmatprep.mubr.bf16.mxu0 0
  %3951 = vmatmul.mubr.bf16.gmra.mrb[0].mxu0 %v3874
  %v3952 = vpop.f32.mrb[0].mxu0
  %v3953 = vadd.f32 0.0, %v3952
  %v3954 = vpop.f32.mrb[0].mxu0
  %v3955 = vadd.f32 0.0, %v3954
  %v3956 = vpop.f32.mrb[0].mxu0
  %v3957 = vadd.f32 0.0, %v3956
  %v3958 = vpop.f32.mrb[0].mxu0
  %v3959 = vadd.f32 0.0, %v3958
  %3960 = vdwg.mxu0
  %v3961 = vadd.f32 %v3866, %v3910
  %v3962 = vadd.f32 %v3867, %v3912
  %v3963 = vadd.f32 %v3868, %v3953
  %v3964 = vadd.f32 %v3869, %v3955
  %v3965 = vadd.f32 %v3870, %v3914
  %v3966 = vadd.f32 %v3871, %v3916
  %v3967 = vadd.f32 %v3872, %v3957
  %v3968 = vadd.f32 %v3873, %v3959
  %v3969 = vxor.u32 %v3961, 2147483648
  %v3970 = vxor.u32 %v3962, 2147483648
  %v3971 = vxor.u32 %v3963, 2147483648
  %v3972 = vxor.u32 %v3965, 2147483648
  %v3973 = vxor.u32 %v3966, 2147483648
  %v3974 = vxor.u32 %v3967, 2147483648
  %v3975 = vmul.f32 %v3969, 1.442695
  %v3976 = vpow.pop %v3975
  %v3977 = vmul.f32 %v3970, 1.442695
  %v3978 = vpow.pop %v3977
  %v3979 = vmul.f32 %v3971, 1.442695
  %v3980 = vpow.pop %v3979
  %v3981 = vmul.f32 %v3972, 1.442695
  %v3982 = vpow.pop %v3981
  %v3983 = vmul.f32 %v3973, 1.442695
  %v3984 = vpow.pop %v3983
  %v3985 = vmul.f32 %v3974, 1.442695
  %v3986 = vpow.pop %v3985
  %v3987 = vadd.f32 %v3976, 1.0
  %v3988 = vadd.f32 %v3978, 1.0
  %v3989 = vadd.f32 %v3980, 1.0
  %v3990 = vadd.f32 %v3982, 1.0
  %v3991 = vadd.f32 %v3984, 1.0
  %v3992 = vadd.f32 %v3986, 1.0
  %v3993 = vrcp.pop %v3987
  %v3994 = vmul.f32 1.0, %v3993
  %v3995 = vrcp.pop %v3988
  %v3996 = vmul.f32 1.0, %v3995
  %v3997 = vrcp.pop %v3989
  %v3998 = vmul.f32 1.0, %v3997
  %v3999 = vrcp.pop %v3990
  %v4000 = vmul.f32 1.0, %v3999
  %v4001 = vrcp.pop %v3991
  %v4002 = vmul.f32 1.0, %v4001
  %v4003 = vrcp.pop %v3992
  %v4004 = vmul.f32 1.0, %v4003
  %v4005 = vtanh.pop %v3964
  %v4006 = vtanh.pop %v3968
  %v4007 = vmul.f32 %v3996, %v3862
  %v4008 = vmul.f32 %v4002, %v3863
  %v4009 = vmul.f32 %v3994, %v4005
  %v4010 = vmul.f32 %v4000, %v4006
  %v4011 = vadd.f32 %v4007, %v4009
  %v4012 = vadd.f32 %v4008, %v4010
  %v4013 = vtanh.pop %v4011
  %v4014 = vtanh.pop %v4012
  %v4015 = vmul.f32 %v3998, %v4013
  %v4016 = vmul.f32 %v4004, %v4014
  %v4017 = vsel %vm2045, %v4015, %v3860
  %v4018 = vsel %vm2045, %v4016, %v3861
  %v4019 = vsel %vm2045, %v4011, %v3862
  %v4020 = vsel %vm2045, %v4012, %v3863
  %4021 = vst [vmem:[#allocation7] sm:$0xff] %v4017
  %4022 = vst [vmem:[#allocation7 + $0x8] sm:$0xff] %v4018
  %4023 = vst [vmem:[#allocation8] sm:$0xff] %v4019
  %4024 = vst [vmem:[#allocation8 + $0x8] sm:$0xff] %v4020
  // Predicated region
  $region42: #{genre_classifier_forward.1} parent=0 // pred_check
    %p4025 = pneg %p37
  $region43: #{genre_classifier_forward.1} parent=0 // pred_check_branch
    %4027 = sbr.rel (%p4025) target = $region45
  $region44: #{genre_classifier_forward.1} parent=0 // pred_region
    %v4028 = vpack.c.bf16 %v4018, %v4017
    %v4029 = vld [vmem:[%s8] sm:$0xf]
    %v4030 = vld [vmem:[%s8 + $0x4] sm:$0xf]
    %v4031 = vld [vmem:[%s8 + $0x8] sm:$0xf]
    %v4032 = vld [vmem:[%s8 + $0xc] sm:$0xf]
    %v4033 = vld [vmem:[%s8 + $0x10] sm:$0xf]
    %v4034 = vld [vmem:[%s8 + $0x14] sm:$0xf]
    %v4035 = vld [vmem:[%s8 + $0x18] sm:$0xf]
    %v4036 = vld [vmem:[%s8 + $0x1c] sm:$0xf]
    %v4037 = vld [vmem:[%s8 + $0x20] sm:$0xf]
    %v4038 = vld [vmem:[%s8 + $0x24] sm:$0xf]
    %v4039 = vld [vmem:[%s8 + $0x28] sm:$0xf]
    %v4040 = vld [vmem:[%s8 + $0x2c] sm:$0xf]
    %v4041 = vld [vmem:[%s8 + $0x30] sm:$0xf]
    %v4042 = vld [vmem:[%s8 + $0x34] sm:$0xf]
    %v4043 = vld [vmem:[%s8 + $0x38] sm:$0xf]
    %v4044 = vld [vmem:[%s8 + $0x3c] sm:$0xf]
    %v4045 = vld [vmem:[%s9] sm:$0x1]
    %v4047 = vlaneseq
    %v4048 = vshrl.u32 %v4047, 7
    %v4049 = vsub.s32 0, %v4048
    %v4050 = vrot.slane %v4045, %v4049
    %v4068 = vunpack.c.l.b16 %v4029
    %v4069 = vunpack.c.l.b16 %v4030
    %v4070 = vunpack.c.l.b16 %v4031
    %v4071 = vunpack.c.l.b16 %v4032
    %v4072 = vunpack.c.l.b16 %v4033
    %v4073 = vunpack.c.l.b16 %v4034
    %v4074 = vunpack.c.l.b16 %v4035
    %v4075 = vunpack.c.l.b16 %v4036
    %v4076 = vunpack.c.l.b16 %v4037
    %v4077 = vunpack.c.l.b16 %v4038
    %v4078 = vunpack.c.l.b16 %v4039
    %v4079 = vunpack.c.l.b16 %v4040
    %v4080 = vunpack.c.l.b16 %v4041
    %v4081 = vunpack.c.l.b16 %v4042
    %v4082 = vunpack.c.l.b16 %v4043
    %v4083 = vunpack.c.l.b16 %v4044
    %v4084 = vpack.c.b16 %v4069, %v4068
    %v4085 = vpack.c.b16 %v4071, %v4070
    %v4086 = vpack.c.b16 %v4073, %v4072
    %v4087 = vpack.c.b16 %v4075, %v4074
    %v4088 = vpack.c.b16 %v4077, %v4076
    %v4089 = vpack.c.b16 %v4079, %v4078
    %v4090 = vpack.c.b16 %v4081, %v4080
    %v4091 = vpack.c.b16 %v4083, %v4082
    %4100 = vmatprep.subr.bf16.mxu0 0
    %4101 = vmatpush1.bf16.msra.mxu0 %v4084
    %4102 = vmatprep.subr.bf16.mxu0 0
    %4103 = vmatpush1.bf16.msra.mxu0 %v4085
    %4104 = vmatprep.subr.bf16.mxu0 0
    %4105 = vmatpush1.bf16.msra.mxu0 %v4086
    %4106 = vmatprep.subr.bf16.mxu0 0
    %4107 = vmatpush1.bf16.msra.mxu0 %v4087
    %4108 = vmatprep.subr.bf16.mxu0 0
    %4109 = vmatpush1.bf16.msra.mxu0 %v4088
    %4110 = vmatprep.subr.bf16.mxu0 0
    %4111 = vmatpush1.bf16.msra.mxu0 %v4089
    %4112 = vmatprep.subr.bf16.mxu0 0
    %4113 = vmatpush1.bf16.msra.mxu0 %v4090
    %4114 = vmatprep.subr.bf16.mxu0 0
    %4115 = vmatpush1.bf16.msra.mxu0 %v4091
    %4116 = vmatprep.subr.bf16.mxu0 0
    %4117 = vmatpush1.bf16.msra.mxu0 0
    %4118 = vmatprep.subr.bf16.mxu0 0
    %4119 = vmatpush1.bf16.msra.mxu0 0
    %4120 = vmatprep.subr.bf16.mxu0 0
    %4121 = vmatpush1.bf16.msra.mxu0 0
    %4122 = vmatprep.subr.bf16.mxu0 0
    %4123 = vmatpush1.bf16.msra.mxu0 0
    %4124 = vmatprep.subr.bf16.mxu0 0
    %4125 = vmatpush1.bf16.msra.mxu0 0
    %4126 = vmatprep.subr.bf16.mxu0 0
    %4127 = vmatpush1.bf16.msra.mxu0 0
    %4128 = vmatprep.subr.bf16.mxu0 0
    %4129 = vmatpush1.bf16.msra.mxu0 0
    %4130 = vmatprep.subr.bf16.mxu0 0
    %4131 = vmatpush1.bf16.msra.mxu0 0
    %4132 = vmatprep.mubr.bf16.mxu0 0
    %4133 = vmatmul.mubr.bf16.gmra.mrb[0].mxu0 %v4028
    %v4134 = vpop.f32.mrb[0].mxu0
    %v4135 = vadd.f32 %v4050, %v4134
    %v4136 = vpop.f32.mrb[0].mxu0
    %v4137 = vpop.f32.mrb[0].mxu0
    %v4138 = vadd.f32 %v4050, %v4137
    %v4139 = vpop.f32.mrb[0].mxu0
    %4140 = vdwg.mxu0
    %vm4141 = vcmask 39936
    %v4142 = vsel %vm4141, %v4135, -inf
    %4143 = vmax.xlane.f32.xlu0 %v4142
    %v4144 = vpop.xlane.xlu0 %4143
    %v4145 = vsel %vm4141, %v4138, -inf
    %4146 = vmax.xlane.f32.xlu0 %v4145
    %v4147 = vpop.xlane.xlu0 %4146
    %v4148 = vsub.f32 %v4135, %v4144
    %v4149 = vsub.f32 %v4138, %v4147
    %v4150 = vmul.f32 %v4148, 1.442695
    %v4151 = vpow.pop %v4150
    %v4152 = vmul.f32 %v4149, 1.442695
    %v4153 = vpow.pop %v4152
    %v4154 = vsel %vm4141, %v4151, 0.0
    %4155 = vadd.xlane.f32.xlu0 %v4154
    %v4156 = vpop.xlane.xlu0 %4155
    %v4157 = vsel %vm4141, %v4153, 0.0
    %4158 = vadd.xlane.f32.xlu0 %v4157
    %v4159 = vpop.xlane.xlu0 %4158
    %v4160 = vrcp.pop %v4156
    %v4161 = vmul.f32 %v4151, %v4160
    %v4162 = vrcp.pop %v4159
    %v4163 = vmul.f32 %v4153, %v4162
    %4164 = vst.msk [vmem:[%s10] sm:$0xff] %vm4141, %v4161
    %4165 = vst.msk [vmem:[%s10 + $0x8] sm:$0xff] %vm4141, %v4163
  $region45: #{genre_classifier_forward.1} parent=0 // pred_fallthru
    _
  // Predicated region
  $region46: #{genre_classifier_forward.1} parent=0 // pred_check
    _
  $region47: #{genre_classifier_forward.1} parent=0 // pred_check_branch
    %4167 = sbr.rel (0) target = $region49
  $region48: #{genre_classifier_forward.1} parent=0 // pred_region
    _
  $region49: #{genre_classifier_forward.1} parent=0 // pred_fallthru
    _
  // Predicated region
  $region50: #{genre_classifier_forward.1} parent=0 // pred_check
    _
  $region51: #{genre_classifier_forward.1} parent=0 // pred_check_branch
    %4169 = sbr.rel (0) target = $region53
  $region52: #{genre_classifier_forward.1} parent=0 // pred_region
    _
  $region53: #{genre_classifier_forward.1} parent=0 // pred_fallthru
    _

</llo_original>
